<compile_context>
chip_gen: v5e
topology: v5e:2x2
jax: 0.10.0
libtpu: 0.0.40
codegen_flags: <defaults>
</compile_context>

<pallas_src>
import jax
import jax.numpy as jnp
from jax.experimental import pallas as pl
from jax.experimental.pallas import tpu as pltpu

EPS = 1e-5
NUM_CLASSES = 10
KPAD = 80          # shared zero-pad of the im2col contraction dim (audio 25, image 75)


# ----------------------------- Pallas kernels ------------------------------

def conv_bn_relu_pool_kernel(p_ref, w_ref, gamma_ref, beta_ref, o_ref):
    # p_ref:     [KPAD, 4*B*HP*WP] im2col patches^T (bf16); columns ordered
    #            (pool parity g, batch b, h2, w2).
    # w_ref:     [16, KPAD] conv weight (bf16), row = out channel.
    # gamma/beta:[16, 1]    f32 BN affine params (broadcast along lanes).
    # o_ref:     [B, 16, HP*WP] bf16 pooled features in PyTorch (c, h, w) order.
    nb, _, per_b = o_ref.shape
    npg = nb * per_b                      # pixels per 2x2-parity group
    n_tot = 4 * npg                       # = B*H*W, BatchNorm population

    y = jnp.dot(w_ref[...], p_ref[...], preferred_element_type=jnp.float32)   # [16, 4*npg]

    # Training-mode BatchNorm over all B*H*W pixels (two-pass, biased var).
    # Conv bias omitted: exactly cancelled by the mean subtraction.
    mean = jnp.sum(y, axis=1, keepdims=True) * (1.0 / n_tot)                   # lane reduce
    d = y - mean
    var = jnp.sum(d * d, axis=1, keepdims=True) * (1.0 / n_tot)
    z = jnp.maximum(d * (gamma_ref[...] * jax.lax.rsqrt(var + EPS)) + beta_ref[...], 0.0)

    # 2x2 max-pool == elementwise max over the four parity groups (lane slices).
    pooled = jnp.maximum(jnp.maximum(z[:, 0:npg],       z[:, npg:2 * npg]),
                         jnp.maximum(z[:, 2 * npg:3 * npg], z[:, 3 * npg:4 * npg]))

    for b in range(nb):                   # static unroll over batch
        o_ref[b] = pooled[:, b * per_b:(b + 1) * per_b].astype(o_ref.dtype)


def fc_fusion_kernel(feats_ref, wf_ref, bf_ref, w1a_ref, w1i_ref, b1_ref,
                     w2_ref, b2_ref, o_ref):
    # feats_ref: [2, B, 4096] bf16  (branch 0 = audio, 1 = image)
    # wf_ref:    [2, 4096, 128] bf16   bf_ref: [2, 1, 128] f32
    # w1a/w1i:   [128, 128] f32  (fusion W1 split so the concat folds away)
    # w2:        [128, C]   f32
    a = jnp.maximum(jnp.dot(feats_ref[0], wf_ref[0],
                            preferred_element_type=jnp.float32) + bf_ref[0], 0.0)
    i = jnp.maximum(jnp.dot(feats_ref[1], wf_ref[1],
                            preferred_element_type=jnp.float32) + bf_ref[1], 0.0)
    # concat([a, i]) @ W1  ==  a @ W1[:128] + i @ W1[128:]
    h = jnp.maximum(jnp.dot(a, w1a_ref[...], preferred_element_type=jnp.float32)
                    + jnp.dot(i, w1i_ref[...], preferred_element_type=jnp.float32)
                    + b1_ref[...], 0.0)
    o_ref[...] = jnp.dot(h, w2_ref[...], preferred_element_type=jnp.float32) + b2_ref[...]


# ----------------------------- kernel wrappers ------------------------------

def conv_bn_relu_pool(patches, wts, gamma, beta, batch, hp_wp):
    # patches: [2, KPAD, 4*batch*hp_wp] bf16, wts: [2, 16, KPAD] bf16,
    # gamma/beta: [2, 16, 1] f32  ->  [2, batch, 16, hp_wp] bf16
    nbranch, kpad, n = patches.shape
    return pl.pallas_call(
        conv_bn_relu_pool_kernel,
        out_shape=jax.ShapeDtypeStruct((nbranch, batch, 16, hp_wp), jnp.bfloat16),
        grid=(nbranch,),
        in_specs=[
            pl.BlockSpec((None, kpad, n), lambda b: (b, 0, 0)),
            pl.BlockSpec((None, 16, kpad), lambda b: (b, 0, 0)),
            pl.BlockSpec((None, 16, 1), lambda b: (b, 0, 0)),
            pl.BlockSpec((None, 16, 1), lambda b: (b, 0, 0)),
        ],
        out_specs=pl.BlockSpec((None, batch, 16, hp_wp), lambda b: (b, 0, 0, 0)),
        compiler_params=pltpu.CompilerParams(dimension_semantics=("parallel",)),
    )(patches, wts, gamma, beta)


def fc_fusion(feats, wf, bf, w1a, w1i, b1, w2, b2):
    # Grid-less single invocation: ~2.1 MB of weights sit fully in VMEM.
    _, b_sz, _ = feats.shape
    c = w2.shape[1]
    vmem = lambda: pl.BlockSpec(memory_space=pltpu.MemorySpace.VMEM)
    return pl.pallas_call(
        fc_fusion_kernel,
        out_shape=jax.ShapeDtypeStruct((b_sz, c), jnp.float32),
        in_specs=[vmem() for _ in range(8)],
        out_specs=vmem(),
    )(feats, wf, bf, w1a, w1i, b1, w2, b2)


# --------------------------------- glue -------------------------------------

def im2col_pooled_T(x_nchw, kpad):
    """Transposed im2col; columns ordered (pool parity, b, h2, w2), rows (c, kh, kw)."""
    B, C, H, W = x_nchw.shape
    xp = jnp.pad(x_nchw, ((0, 0), (0, 0), (2, 2), (2, 2)))
    shifts = [xp[:, :, kh:kh + H, kw:kw + W] for kh in range(5) for kw in range(5)]
    p = jnp.stack(shifts, axis=0)                        # [25, B, C, H, W]
    p = p.reshape(25, B, C, H // 2, 2, W // 2, 2)        # split 2x2 pool parity
    p = p.transpose(2, 0, 4, 6, 1, 3, 5)                 # [C, 25, gh, gw, B, H2, W2]
    p = p.reshape(C * 25, 4 * B * (H // 2) * (W // 2))
    p = jnp.pad(p, ((0, kpad - C * 25), (0, 0)))         # shared K pad (zeros)
    return p.astype(jnp.bfloat16)


def multimodal_forward(audio, image, kp):
    """mode='both': shared_branch(audio) ++ image_branch(image) -> fc_fusion."""
    B, _, H, W = audio.shape
    hp_wp = (H // 2) * (W // 2)

    patches = jnp.stack([im2col_pooled_T(audio, KPAD),
                         im2col_pooled_T(image, KPAD)], axis=0)     # [2, KPAD, 4*B*hp_wp]

    pooled = conv_bn_relu_pool(patches, kp["conv_w"], kp["bn_g"], kp["bn_b"],
                               B, hp_wp)                            # [2, B, 16, hp_wp] bf16
    feats = pooled.reshape(2, B, 16 * hp_wp)                        # free reshape, (c,h,w) order

    return fc_fusion(feats, kp["fc_w"], kp["fc_b"],
                     kp["fus_w1a"], kp["fus_w1i"], kp["fus_b1"],
                     kp["fus_w2"], kp["fus_b2"])                    # [B, num_classes]


# ----------------------------- parameters -----------------------------------

def init_params(key, num_classes):
    """PyTorch-shaped parameters (Linear weights are [out, in])."""
    ks = jax.random.split(key, 10)

    def conv_init(k, cin):
        return jax.random.normal(k, (16, cin, 5, 5), jnp.float32) / jnp.sqrt(cin * 25.0)

    def linear_init(kw, kb, fan_in, fan_out):
        return (jax.random.normal(kw, (fan_out, fan_in), jnp.float32) / jnp.sqrt(float(fan_in)),
                jax.random.normal(kb, (fan_out,), jnp.float32) * 0.01)

    fa_w, fa_b = linear_init(ks[2], ks[3], 4096, 128)
    fi_w, fi_b = linear_init(ks[4], ks[5], 4096, 128)
    f1_w, f1_b = linear_init(ks[6], ks[7], 256, 128)
    f2_w, f2_b = linear_init(ks[8], ks[9], 128, num_classes)
    # Conv2d biases are intentionally not created: under training-mode BatchNorm
    # they are exactly cancelled by the batch-mean subtraction.
    return {
        "audio": {"conv_w": conv_init(ks[0], 1),
                  "bn_g": jnp.ones((16,), jnp.float32), "bn_b": jnp.zeros((16,), jnp.float32),
                  "fc_w": fa_w, "fc_b": fa_b},
        "image": {"conv_w": conv_init(ks[1], 3),
                  "bn_g": jnp.ones((16,), jnp.float32), "bn_b": jnp.zeros((16,), jnp.float32),
                  "fc_w": fi_w, "fc_b": fi_b},
        "fus_w1": f1_w, "fus_b1": f1_b, "fus_w2": f2_w, "fus_b2": f2_b,
    }


def prepare_params(p):
    """One-time conversion to kernel layouts (transpose / pad / bf16 / stack)."""
    def conv_wT(w):                       # [16, C, 5, 5] -> [16, KPAD] bf16, cols (c, kh, kw)
        k = w.shape[1] * 25
        return jnp.pad(w.reshape(16, k), ((0, 0), (0, KPAD - k))).astype(jnp.bfloat16)

    w1 = p["fus_w1"]                      # [128, 256]; out = cat(a, i) @ w1.T + b1
    return {
        "conv_w": jnp.stack([conv_wT(p["audio"]["conv_w"]),
                             conv_wT(p["image"]["conv_w"])], axis=0),            # [2,16,KPAD]
        "bn_g": jnp.stack([p["audio"]["bn_g"], p["image"]["bn_g"]])[:, :, None],  # [2,16,1]
        "bn_b": jnp.stack([p["audio"]["bn_b"], p["image"]["bn_b"]])[:, :, None],
        "fc_w": jnp.stack([p["audio"]["fc_w"].T,
                           p["image"]["fc_w"].T]).astype(jnp.bfloat16),           # [2,4096,128]
        "fc_b": jnp.stack([p["audio"]["fc_b"], p["image"]["fc_b"]])[:, None, :],  # [2,1,128]
        "fus_w1a": w1[:, :128].T,                                                 # [128,128]
        "fus_w1i": w1[:, 128:].T,                                                 # [128,128]
        "fus_b1": p["fus_b1"][None, :],                                           # [1,128]
        "fus_w2": p["fus_w2"].T,                                                  # [128,C]
        "fus_b2": p["fus_b2"][None, :],                                           # [1,C]
    }


# ----------------------------------- main ------------------------------------

if __name__ == "__main__":
    key = jax.random.PRNGKey(0)
    k_a, k_i, k_p = jax.random.split(key, 3)

    B = 2
    # Linear(16*16*16, 128) after MaxPool2d(2) implies 32x32 spatial inputs.
    audio = jax.random.normal(k_a, (B, 1, 32, 32), jnp.float32)   # NCHW
    image = jax.random.normal(k_i, (B, 3, 32, 32), jnp.float32)   # NCHW

    params = prepare_params(init_params(k_p, NUM_CLASSES))        # one-time layout prep

    out = jax.jit(multimodal_forward)(audio, image, params)
    out = jax.block_until_ready(out)
    assert out.shape == (B, NUM_CLASSES), out.shape
    print("KERNEL_OK")
</pallas_src>

<mosaic_0001>
module attributes {stable_mosaic.version = 11 : i64} {
  func.func @conv_bn_relu_pool_kernel(%arg0: i32, %arg1: memref<1x80x2048xbf16, #tpu.memory_space<vmem>>, %arg2: memref<1x16x80xbf16, #tpu.memory_space<vmem>>, %arg3: memref<1x16x1xf32, #tpu.memory_space<vmem>>, %arg4: memref<1x16x1xf32, #tpu.memory_space<vmem>>, %arg5: memref<1x2x16x256xbf16, #tpu.memory_space<vmem>>) attributes {dimension_semantics = [#tpu.dimension_semantics<parallel>], iteration_bounds = array<i64: 2>, scalar_prefetch = 0 : i64, scratch_operands = 0 : i64, tpu.core_type = #tpu.core_type<tc>, window_params = [{transform_indices = @transform_0, window_bounds = array<i64: 1, 80, 2048>}, {transform_indices = @transform_1, window_bounds = array<i64: 1, 16, 80>}, {transform_indices = @transform_2, window_bounds = array<i64: 1, 16, 1>}, {transform_indices = @transform_3, window_bounds = array<i64: 1, 16, 1>}, {transform_indices = @transform_4, window_bounds = array<i64: 1, 2, 16, 256>}]} {
    %c0 = arith.constant 0 : index
    %c0_0 = arith.constant 0 : index
    %c0_1 = arith.constant 0 : index
    %0 = vector.load %arg2[%c0, %c0_0, %c0_1] : memref<1x16x80xbf16, #tpu.memory_space<vmem>>, vector<1x16x80xbf16>
    %1 = vector.shape_cast %0 : vector<1x16x80xbf16> to vector<16x80xbf16>
    %c0_2 = arith.constant 0 : index
    %c0_3 = arith.constant 0 : index
    %c0_4 = arith.constant 0 : index
    %2 = vector.load %arg1[%c0_2, %c0_3, %c0_4] : memref<1x80x2048xbf16, #tpu.memory_space<vmem>>, vector<1x80x2048xbf16>
    %3 = vector.shape_cast %2 : vector<1x80x2048xbf16> to vector<80x2048xbf16>
    %cst = arith.constant dense<0.000000e+00> : vector<16x2048xf32>
    %4 = tpu.matmul %1, %3, %cst {dimension_numbers = #tpu.dot_dimension_numbers<[1], [0], [0], [1], [0, 0, 1, 1], [], []>} : vector<16x80xbf16>, vector<80x2048xbf16>, vector<16x2048xf32> -> vector<16x2048xf32>
    %cst_5 = arith.constant dense<0.000000e+00> : vector<16xf32>
    %5 = vector.multi_reduction <add>, %4, %cst_5 [1] : vector<16x2048xf32> to vector<16xf32>
    %6 = vector.shape_cast %5 : vector<16xf32> to vector<16x1xf32>
    %cst_6 = arith.constant 4.8828125E-4 : f32
    %7 = vector.broadcast %cst_6 : f32 to vector<16x1xf32>
    %8 = arith.mulf %6, %7 : vector<16x1xf32>
    %9 = vector.broadcast %8 : vector<16x1xf32> to vector<16x2048xf32>
    %10 = arith.subf %4, %9 : vector<16x2048xf32>
    %11 = arith.mulf %10, %10 : vector<16x2048xf32>
    %cst_7 = arith.constant dense<0.000000e+00> : vector<16xf32>
    %12 = vector.multi_reduction <add>, %11, %cst_7 [1] : vector<16x2048xf32> to vector<16xf32>
    %13 = vector.shape_cast %12 : vector<16xf32> to vector<16x1xf32>
    %cst_8 = arith.constant 4.8828125E-4 : f32
    %14 = vector.broadcast %cst_8 : f32 to vector<16x1xf32>
    %15 = arith.mulf %13, %14 : vector<16x1xf32>
    %c0_9 = arith.constant 0 : index
    %c0_10 = arith.constant 0 : index
    %c0_11 = arith.constant 0 : index
    %16 = vector.load %arg3[%c0_9, %c0_10, %c0_11] : memref<1x16x1xf32, #tpu.memory_space<vmem>>, vector<1x16x1xf32>
    %17 = vector.shape_cast %16 : vector<1x16x1xf32> to vector<16x1xf32>
    %cst_12 = arith.constant 9.99999974E-6 : f32
    %18 = vector.broadcast %cst_12 : f32 to vector<16x1xf32>
    %19 = arith.addf %15, %18 : vector<16x1xf32>
    %20 = math.rsqrt %19 : vector<16x1xf32>
    %21 = arith.mulf %17, %20 : vector<16x1xf32>
    %22 = vector.broadcast %21 : vector<16x1xf32> to vector<16x2048xf32>
    %23 = arith.mulf %10, %22 : vector<16x2048xf32>
    %c0_13 = arith.constant 0 : index
    %c0_14 = arith.constant 0 : index
    %c0_15 = arith.constant 0 : index
    %24 = vector.load %arg4[%c0_13, %c0_14, %c0_15] : memref<1x16x1xf32, #tpu.memory_space<vmem>>, vector<1x16x1xf32>
    %25 = vector.shape_cast %24 : vector<1x16x1xf32> to vector<16x1xf32>
    %26 = vector.broadcast %25 : vector<16x1xf32> to vector<16x2048xf32>
    %27 = arith.addf %23, %26 : vector<16x2048xf32>
    %cst_16 = arith.constant 0.000000e+00 : f32
    %28 = vector.broadcast %cst_16 : f32 to vector<16x2048xf32>
    %29 = arith.maximumf %27, %28 : vector<16x2048xf32>
    %30 = vector.extract_strided_slice %29 {offsets = [0, 0], sizes = [16, 512], strides = [1, 1]} : vector<16x2048xf32> to vector<16x512xf32>
    %31 = vector.extract_strided_slice %29 {offsets = [0, 512], sizes = [16, 512], strides = [1, 1]} : vector<16x2048xf32> to vector<16x512xf32>
    %32 = arith.maximumf %30, %31 : vector<16x512xf32>
    %33 = vector.extract_strided_slice %29 {offsets = [0, 1024], sizes = [16, 512], strides = [1, 1]} : vector<16x2048xf32> to vector<16x512xf32>
    %34 = vector.extract_strided_slice %29 {offsets = [0, 1536], sizes = [16, 512], strides = [1, 1]} : vector<16x2048xf32> to vector<16x512xf32>
    %35 = arith.maximumf %33, %34 : vector<16x512xf32>
    %36 = arith.maximumf %32, %35 : vector<16x512xf32>
    %37 = vector.extract_strided_slice %36 {offsets = [0, 0], sizes = [16, 256], strides = [1, 1]} : vector<16x512xf32> to vector<16x256xf32>
    %38 = arith.truncf %37 : vector<16x256xf32> to vector<16x256xbf16>
    %c0_17 = arith.constant 0 : index
    %c0_18 = arith.constant 0 : index
    %c0_19 = arith.constant 0 : index
    %c0_20 = arith.constant 0 : index
    %39 = vector.load %arg5[%c0_17, %c0_18, %c0_19, %c0_20] : memref<1x2x16x256xbf16, #tpu.memory_space<vmem>>, vector<1x1x16x256xbf16>
    %40 = vector.shape_cast %39 : vector<1x1x16x256xbf16> to vector<16x256xbf16>
    %41 = vector.shape_cast %38 : vector<16x256xbf16> to vector<1x1x16x256xbf16>
    tpu.vector_store %arg5[%c0_17, %c0_18, %c0_19, %c0_20], %41 {strides = array<i32>} : memref<1x2x16x256xbf16, #tpu.memory_space<vmem>>, vector<1x1x16x256xbf16>,
    %42 = vector.extract_strided_slice %36 {offsets = [0, 256], sizes = [16, 256], strides = [1, 1]} : vector<16x512xf32> to vector<16x256xf32>
    %43 = arith.truncf %42 : vector<16x256xf32> to vector<16x256xbf16>
    %c0_21 = arith.constant 0 : index
    %c1 = arith.constant 1 : index
    %c0_22 = arith.constant 0 : index
    %c0_23 = arith.constant 0 : index
    %44 = vector.load %arg5[%c0_21, %c1, %c0_22, %c0_23] : memref<1x2x16x256xbf16, #tpu.memory_space<vmem>>, vector<1x1x16x256xbf16>
    %45 = vector.shape_cast %44 : vector<1x1x16x256xbf16> to vector<16x256xbf16>
    %46 = vector.shape_cast %43 : vector<16x256xbf16> to vector<1x1x16x256xbf16>
    tpu.vector_store %arg5[%c0_21, %c1, %c0_22, %c0_23], %46 {strides = array<i32>} : memref<1x2x16x256xbf16, #tpu.memory_space<vmem>>, vector<1x1x16x256xbf16>,
    return
  }
  func.func @transform_0(%arg0: i32) -> (i32, i32, i32) {
    %c0_i32 = arith.constant 0 : i32
    %c0_i32_0 = arith.constant 0 : i32
    %c0_i32_1 = arith.constant 0 : i32
    return %arg0, %c0_i32, %c0_i32_0 : i32, i32, i32
  }
  func.func @transform_1(%arg0: i32) -> (i32, i32, i32) {
    %c0_i32 = arith.constant 0 : i32
    %c0_i32_0 = arith.constant 0 : i32
    %c0_i32_1 = arith.constant 0 : i32
    return %arg0, %c0_i32, %c0_i32_0 : i32, i32, i32
  }
  func.func @transform_2(%arg0: i32) -> (i32, i32, i32) {
    %c0_i32 = arith.constant 0 : i32
    %c0_i32_0 = arith.constant 0 : i32
    %c0_i32_1 = arith.constant 0 : i32
    return %arg0, %c0_i32, %c0_i32_0 : i32, i32, i32
  }
  func.func @transform_3(%arg0: i32) -> (i32, i32, i32) {
    %c0_i32 = arith.constant 0 : i32
    %c0_i32_0 = arith.constant 0 : i32
    %c0_i32_1 = arith.constant 0 : i32
    return %arg0, %c0_i32, %c0_i32_0 : i32, i32, i32
  }
  func.func @transform_4(%arg0: i32) -> (i32, i32, i32, i32) {
    %c0_i32 = arith.constant 0 : i32
    %c0_i32_0 = arith.constant 0 : i32
    %c0_i32_1 = arith.constant 0 : i32
    %c0_i32_2 = arith.constant 0 : i32
    return %arg0, %c0_i32, %c0_i32_0, %c0_i32_1 : i32, i32, i32, i32
  }
}

module attributes {stable_mosaic.version = 11 : i64} {
  func.func @fc_fusion_kernel(%arg0: memref<2x2x4096xbf16, #tpu.memory_space<vmem>>, %arg1: memref<2x4096x128xbf16, #tpu.memory_space<vmem>>, %arg2: memref<2x1x128xf32, #tpu.memory_space<vmem>>, %arg3: memref<128x128xf32, #tpu.memory_space<vmem>>, %arg4: memref<128x128xf32, #tpu.memory_space<vmem>>, %arg5: memref<1x128xf32, #tpu.memory_space<vmem>>, %arg6: memref<128x10xf32, #tpu.memory_space<vmem>>, %arg7: memref<1x10xf32, #tpu.memory_space<vmem>>, %arg8: memref<2x10xf32, #tpu.memory_space<vmem>>) attributes {dimension_semantics = [], scalar_prefetch = 0 : i64, scratch_operands = 0 : i64, tpu.core_type = #tpu.core_type<tc>} {
    %c0 = arith.constant 0 : index
    %c0_0 = arith.constant 0 : index
    %c0_1 = arith.constant 0 : index
    %0 = vector.load %arg0[%c0, %c0_0, %c0_1] : memref<2x2x4096xbf16, #tpu.memory_space<vmem>>, vector<1x2x4096xbf16>
    %1 = vector.shape_cast %0 : vector<1x2x4096xbf16> to vector<2x4096xbf16>
    %c0_2 = arith.constant 0 : index
    %c0_3 = arith.constant 0 : index
    %c0_4 = arith.constant 0 : index
    %2 = vector.load %arg1[%c0_2, %c0_3, %c0_4] : memref<2x4096x128xbf16, #tpu.memory_space<vmem>>, vector<1x4096x128xbf16>
    %3 = vector.shape_cast %2 : vector<1x4096x128xbf16> to vector<4096x128xbf16>
    %cst = arith.constant dense<0.000000e+00> : vector<2x128xf32>
    %4 = tpu.matmul %1, %3, %cst {dimension_numbers = #tpu.dot_dimension_numbers<[1], [0], [0], [1], [0, 0, 1, 1], [], []>} : vector<2x4096xbf16>, vector<4096x128xbf16>, vector<2x128xf32> -> vector<2x128xf32>
    %c0_5 = arith.constant 0 : index
    %c0_6 = arith.constant 0 : index
    %c0_7 = arith.constant 0 : index
    %5 = vector.load %arg2[%c0_5, %c0_6, %c0_7] : memref<2x1x128xf32, #tpu.memory_space<vmem>>, vector<1x1x128xf32>
    %6 = vector.shape_cast %5 : vector<1x1x128xf32> to vector<1x128xf32>
    %7 = vector.broadcast %6 : vector<1x128xf32> to vector<2x128xf32>
    %8 = arith.addf %4, %7 : vector<2x128xf32>
    %cst_8 = arith.constant 0.000000e+00 : f32
    %9 = vector.broadcast %cst_8 : f32 to vector<2x128xf32>
    %10 = arith.maximumf %8, %9 : vector<2x128xf32>
    %c1 = arith.constant 1 : index
    %c0_9 = arith.constant 0 : index
    %c0_10 = arith.constant 0 : index
    %11 = vector.load %arg0[%c1, %c0_9, %c0_10] : memref<2x2x4096xbf16, #tpu.memory_space<vmem>>, vector<1x2x4096xbf16>
    %12 = vector.shape_cast %11 : vector<1x2x4096xbf16> to vector<2x4096xbf16>
    %c1_11 = arith.constant 1 : index
    %c0_12 = arith.constant 0 : index
    %c0_13 = arith.constant 0 : index
    %13 = vector.load %arg1[%c1_11, %c0_12, %c0_13] : memref<2x4096x128xbf16, #tpu.memory_space<vmem>>, vector<1x4096x128xbf16>
    %14 = vector.shape_cast %13 : vector<1x4096x128xbf16> to vector<4096x128xbf16>
    %cst_14 = arith.constant dense<0.000000e+00> : vector<2x128xf32>
    %15 = tpu.matmul %12, %14, %cst_14 {dimension_numbers = #tpu.dot_dimension_numbers<[1], [0], [0], [1], [0, 0, 1, 1], [], []>} : vector<2x4096xbf16>, vector<4096x128xbf16>, vector<2x128xf32> -> vector<2x128xf32>
    %c1_15 = arith.constant 1 : index
    %c0_16 = arith.constant 0 : index
    %c0_17 = arith.constant 0 : index
    %16 = vector.load %arg2[%c1_15, %c0_16, %c0_17] : memref<2x1x128xf32, #tpu.memory_space<vmem>>, vector<1x1x128xf32>
    %17 = vector.shape_cast %16 : vector<1x1x128xf32> to vector<1x128xf32>
    %18 = vector.broadcast %17 : vector<1x128xf32> to vector<2x128xf32>
    %19 = arith.addf %15, %18 : vector<2x128xf32>
    %cst_18 = arith.constant 0.000000e+00 : f32
    %20 = vector.broadcast %cst_18 : f32 to vector<2x128xf32>
    %21 = arith.maximumf %19, %20 : vector<2x128xf32>
    %c0_19 = arith.constant 0 : index
    %c0_20 = arith.constant 0 : index
    %22 = vector.load %arg3[%c0_19, %c0_20] : memref<128x128xf32, #tpu.memory_space<vmem>>, vector<128x128xf32>
    %cst_21 = arith.constant dense<0.000000e+00> : vector<2x128xf32>
    %23 = tpu.matmul %10, %22, %cst_21 {dimension_numbers = #tpu.dot_dimension_numbers<[1], [0], [0], [1], [0, 0, 1, 1], [], []>} : vector<2x128xf32>, vector<128x128xf32>, vector<2x128xf32> -> vector<2x128xf32>
    %c0_22 = arith.constant 0 : index
    %c0_23 = arith.constant 0 : index
    %24 = vector.load %arg4[%c0_22, %c0_23] : memref<128x128xf32, #tpu.memory_space<vmem>>, vector<128x128xf32>
    %cst_24 = arith.constant dense<0.000000e+00> : vector<2x128xf32>
    %25 = tpu.matmul %21, %24, %cst_24 {dimension_numbers = #tpu.dot_dimension_numbers<[1], [0], [0], [1], [0, 0, 1, 1], [], []>} : vector<2x128xf32>, vector<128x128xf32>, vector<2x128xf32> -> vector<2x128xf32>
    %26 = arith.addf %23, %25 : vector<2x128xf32>
    %c0_25 = arith.constant 0 : index
    %c0_26 = arith.constant 0 : index
    %27 = vector.load %arg5[%c0_25, %c0_26] : memref<1x128xf32, #tpu.memory_space<vmem>>, vector<1x128xf32>
    %28 = vector.broadcast %27 : vector<1x128xf32> to vector<2x128xf32>
    %29 = arith.addf %26, %28 : vector<2x128xf32>
    %cst_27 = arith.constant 0.000000e+00 : f32
    %30 = vector.broadcast %cst_27 : f32 to vector<2x128xf32>
    %31 = arith.maximumf %29, %30 : vector<2x128xf32>
    %c0_28 = arith.constant 0 : index
    %c0_29 = arith.constant 0 : index
    %32 = vector.load %arg6[%c0_28, %c0_29] : memref<128x10xf32, #tpu.memory_space<vmem>>, vector<128x10xf32>
    %cst_30 = arith.constant dense<0.000000e+00> : vector<2x10xf32>
    %33 = tpu.matmul %31, %32, %cst_30 {dimension_numbers = #tpu.dot_dimension_numbers<[1], [0], [0], [1], [0, 0, 1, 1], [], []>} : vector<2x128xf32>, vector<128x10xf32>, vector<2x10xf32> -> vector<2x10xf32>
    %c0_31 = arith.constant 0 : index
    %c0_32 = arith.constant 0 : index
    %34 = vector.load %arg7[%c0_31, %c0_32] : memref<1x10xf32, #tpu.memory_space<vmem>>, vector<1x10xf32>
    %35 = vector.broadcast %34 : vector<1x10xf32> to vector<2x10xf32>
    %36 = arith.addf %33, %35 : vector<2x10xf32>
    %c0_33 = arith.constant 0 : index
    %c0_34 = arith.constant 0 : index
    %37 = vector.load %arg8[%c0_33, %c0_34] : memref<2x10xf32, #tpu.memory_space<vmem>>, vector<2x10xf32>
    tpu.vector_store %arg8[%c0_33, %c0_34], %36 {strides = array<i32>} : memref<2x10xf32, #tpu.memory_space<vmem>>, vector<2x10xf32>,
    return
  }
}

</mosaic_0001>

<llo_original>
// kernel: multimodal_forward.2
$region0: #{multimodal_forward.2}
  #allocation0 [shape = 'u32[]', space=smem, size = 0x4, offset = 0x4, fixed_abs, tag = 'smem constant byte address 0x4 - core index']
  #allocation1 [shape = 'u32[72,128]{1,0:T(1,128)}', space=vmem, size = 0x9000, scoped, tag = 'internal scratch']
  %s0 = inlined_call_operand.vmem [shape: bf16[2,80,2048], index: 0, kind: input, shape index: {}]
  %s1 = inlined_call_operand.vmem [shape: bf16[2,16,80], index: 1, kind: input, shape index: {}]
  %s2 = inlined_call_operand.vmem [shape: f32[2,16,1], index: 2, kind: input, shape index: {}]
  %s3 = inlined_call_operand.vmem [shape: f32[2,16,1], index: 3, kind: input, shape index: {}]
  %s4 = inlined_call_operand.vmem [shape: bf16[2,2,16,256], index: 4, kind: output, shape index: {}]
  %s5 = sld [smem:[#allocation0]]
  $region49: #{multimodal_forward.2} parent=0
    _
  %s7 = ssub.s32 1, %s5
  %s8 = scalar_select 0, %s7, %s5
  loop: start=0, step=1, limit=4
  $region2: #{multimodal_forward.2} parent=0 // loop_pre_header
    _
  $region3: #{multimodal_forward.2} parent=0 // loop_header
    %s10 = sphi 0, %s14
    %p11 = scmp.ge.s32.totalorder %s10, 4
    %s20 = sphi 0, %s22
    %s23 = sphi 0, %s20
    %s24 = sphi 0, %s23
    %s40 = sphi 0, %s24
    %s46 = sphi 0, %s48
    %s49 = sphi 0, %s46
    %s50 = sphi 0, %s49
    %s66 = sphi 0, %s50
    %s72 = sphi 0, %s74
    %s75 = sphi 0, %s72
    %s76 = sphi 0, %s75
    %s92 = sphi 0, %s76
    %s98 = sphi 0, %s100
    %s101 = sphi 0, %s98
    %s102 = sphi 0, %s101
    %s118 = sphi 0, %s102
    %s124 = sphi 0, %s126
    %s127 = sphi 0, %s124
    %s128 = sphi 0, %s127
    %s144 = sphi 0, %s128
  $region4: #{multimodal_forward.2} parent=0 // loop_header_branch
    %13 = sbr.rel (%p11) target = $region8
  $region5: #{multimodal_forward.2} parent=0 // loop_body
    %s15 = ssub.s32 %s10, 1
    %s16 = ssub.s32 %s10, 2
    %s17 = sadd.s32 %s10, 1
    %s18 = ssub.s32 %s10, %s17
    %p19 = scmp.eq.s32.totalorder %s18, 0
    %s21 = sadd.s32 %s20, 1
    %s22 = scalar_select %p19, %s20, %s21
    %p25 = pneg %p19
    %p26 = scmp.eq.s32.totalorder %s10, 1
    %p27 = por %p25, %p26
    %p28 = scmp.ne.s32.totalorder %s20, %s23
    %p29 = scmp.eq.s32.totalorder %s10, 0
    %p30 = por %p28, %p29
    %p31 = scmp.ne.s32.totalorder %s20, %s23
    %p32 = scmp.eq.s32.totalorder %s15, 1
    %p33 = por %p31, %p32
    %p34 = scmp.ne.s32.totalorder %s23, %s24
    %p35 = scmp.eq.s32.totalorder %s15, 0
    %p36 = por %p34, %p35
    %p37 = scmp.ne.s32.totalorder %s23, %s24
    %p38 = scmp.eq.s32.totalorder %s16, 1
    %p39 = por %p37, %p38
    %p41 = scmp.ne.s32.totalorder %s24, %s40
    %p42 = scmp.eq.s32.totalorder %s16, 0
    %p43 = por %p41, %p42
    %s44 = ssub.s32 %s10, %s17
    %p45 = scmp.eq.s32.totalorder %s44, 0
    %s47 = sadd.s32 %s46, 1
    %s48 = scalar_select %p45, %s46, %s47
    %p51 = pneg %p45
    %p52 = scmp.eq.s32.totalorder %s10, 1
    %p53 = por %p51, %p52
    %p54 = scmp.ne.s32.totalorder %s46, %s49
    %p55 = scmp.eq.s32.totalorder %s10, 0
    %p56 = por %p54, %p55
    %p57 = scmp.ne.s32.totalorder %s46, %s49
    %p58 = scmp.eq.s32.totalorder %s15, 1
    %p59 = por %p57, %p58
    %p60 = scmp.ne.s32.totalorder %s49, %s50
    %p61 = scmp.eq.s32.totalorder %s15, 0
    %p62 = por %p60, %p61
    %p63 = scmp.ne.s32.totalorder %s49, %s50
    %p64 = scmp.eq.s32.totalorder %s16, 1
    %p65 = por %p63, %p64
    %p67 = scmp.ne.s32.totalorder %s50, %s66
    %p68 = scmp.eq.s32.totalorder %s16, 0
    %p69 = por %p67, %p68
    %s70 = ssub.s32 %s10, %s17
    %p71 = scmp.eq.s32.totalorder %s70, 0
    %s73 = sadd.s32 %s72, 1
    %s74 = scalar_select %p71, %s72, %s73
    %p77 = pneg %p71
    %p78 = scmp.eq.s32.totalorder %s10, 1
    %p79 = por %p77, %p78
    %p80 = scmp.ne.s32.totalorder %s72, %s75
    %p81 = scmp.eq.s32.totalorder %s10, 0
    %p82 = por %p80, %p81
    %p83 = scmp.ne.s32.totalorder %s72, %s75
    %p84 = scmp.eq.s32.totalorder %s15, 1
    %p85 = por %p83, %p84
    %p86 = scmp.ne.s32.totalorder %s75, %s76
    %p87 = scmp.eq.s32.totalorder %s15, 0
    %p88 = por %p86, %p87
    %p89 = scmp.ne.s32.totalorder %s75, %s76
    %p90 = scmp.eq.s32.totalorder %s16, 1
    %p91 = por %p89, %p90
    %p93 = scmp.ne.s32.totalorder %s76, %s92
    %p94 = scmp.eq.s32.totalorder %s16, 0
    %p95 = por %p93, %p94
    %s96 = ssub.s32 %s10, %s17
    %p97 = scmp.eq.s32.totalorder %s96, 0
    %s99 = sadd.s32 %s98, 1
    %s100 = scalar_select %p97, %s98, %s99
    %p103 = pneg %p97
    %p104 = scmp.eq.s32.totalorder %s10, 1
    %p105 = por %p103, %p104
    %p106 = scmp.ne.s32.totalorder %s98, %s101
    %p107 = scmp.eq.s32.totalorder %s10, 0
    %p108 = por %p106, %p107
    %p109 = scmp.ne.s32.totalorder %s98, %s101
    %p110 = scmp.eq.s32.totalorder %s15, 1
    %p111 = por %p109, %p110
    %p112 = scmp.ne.s32.totalorder %s101, %s102
    %p113 = scmp.eq.s32.totalorder %s15, 0
    %p114 = por %p112, %p113
    %p115 = scmp.ne.s32.totalorder %s101, %s102
    %p116 = scmp.eq.s32.totalorder %s16, 1
    %p117 = por %p115, %p116
    %p119 = scmp.ne.s32.totalorder %s102, %s118
    %p120 = scmp.eq.s32.totalorder %s16, 0
    %p121 = por %p119, %p120
    %s122 = ssub.s32 %s10, %s17
    %p123 = scmp.eq.s32.totalorder %s122, 0
    %s125 = sadd.s32 %s124, 1
    %s126 = scalar_select %p123, %s124, %s125
    %p129 = pneg %p123
    %p130 = scmp.eq.s32.totalorder %s10, 1
    %p131 = por %p129, %p130
    %p132 = scmp.ne.s32.totalorder %s124, %s127
    %p133 = scmp.eq.s32.totalorder %s10, 0
    %p134 = por %p132, %p133
    %p135 = scmp.ne.s32.totalorder %s124, %s127
    %p136 = scmp.eq.s32.totalorder %s15, 1
    %p137 = por %p135, %p136
    %p138 = scmp.ne.s32.totalorder %s127, %s128
    %p139 = scmp.eq.s32.totalorder %s15, 0
    %p140 = por %p138, %p139
    %p141 = scmp.ne.s32.totalorder %s127, %s128
    %p142 = scmp.eq.s32.totalorder %s16, 1
    %p143 = por %p141, %p142
    %p145 = scmp.ne.s32.totalorder %s128, %s144
    %p146 = scmp.eq.s32.totalorder %s16, 0
    %p147 = por %p145, %p146
    %p148 = scmp.le.s32.totalorder 1, %s10
    %p149 = scmp.lt.s32.totalorder %s10, 3
    %p150 = pnand %p148, %p149
    %p151 = pneg %p150
    // Predicated region
    $region9: #{multimodal_forward.2} parent=5 // pred_check
      _
    $region10: #{multimodal_forward.2} parent=5 // pred_check_branch
      %153 = sbr.rel (%p150) target = $region12
    $region11: #{multimodal_forward.2} parent=5 // pred_region
      %s154 = ssub.s32 %s10, 1
    $region12: #{multimodal_forward.2} parent=5 // pred_fallthru
      _
    %p155 = scmp.lt.s32.totalorder %s10, 2
    // Predicated region
    $region13: #{multimodal_forward.2} parent=5 // pred_check
      %p156 = pneg %p155
    $region14: #{multimodal_forward.2} parent=5 // pred_check_branch
      %158 = sbr.rel (%p156) target = $region16
    $region15: #{multimodal_forward.2} parent=5 // pred_region
      // Predicated region
      $region17: #{multimodal_forward.2} parent=15 // pred_check
        %p159 = pneg %p30
      $region18: #{multimodal_forward.2} parent=15 // pred_check_branch
        %161 = sbr.rel (%p159) target = $region20
      $region19: #{multimodal_forward.2} parent=15 // pred_region
        %p162 = scmp.lt.s32.totalorder %s10, 1
        %s163 = scalar_select %p162, %s10, 1
        %s164 = smul.addr %s163, 160
        %s165 = smul.addr %s164, 4
        %s166 = scalar_lea.vmem %s0, %s165
      $region20: #{multimodal_forward.2} parent=15 // pred_fallthru
        _
      // Predicated region
      $region21: #{multimodal_forward.2} parent=15 // pred_check
        %p167 = pneg %p56
      $region22: #{multimodal_forward.2} parent=15 // pred_check_branch
        %169 = sbr.rel (%p167) target = $region24
      $region23: #{multimodal_forward.2} parent=15 // pred_region
        %p170 = scmp.lt.s32.totalorder %s10, 1
        %s171 = scalar_select %p170, %s10, 1
        %s172 = smul.addr %s171, 2
        %s173 = smul.addr %s172, 4
        %s174 = scalar_lea.vmem %s1, %s173
      $region24: #{multimodal_forward.2} parent=15 // pred_fallthru
        _
      // Predicated region
      $region25: #{multimodal_forward.2} parent=15 // pred_check
        %p175 = pneg %p82
      $region26: #{multimodal_forward.2} parent=15 // pred_check_branch
        %177 = sbr.rel (%p175) target = $region28
      $region27: #{multimodal_forward.2} parent=15 // pred_region
        %p178 = scmp.lt.s32.totalorder %s10, 1
        %s179 = scalar_select %p178, %s10, 1
        %s180 = smul.addr %s179, 2
        %s181 = smul.addr %s180, 8
        %s182 = scalar_lea.vmem %s2, %s181
      $region28: #{multimodal_forward.2} parent=15 // pred_fallthru
        _
      // Predicated region
      $region29: #{multimodal_forward.2} parent=15 // pred_check
        %p183 = pneg %p108
      $region30: #{multimodal_forward.2} parent=15 // pred_check_branch
        %185 = sbr.rel (%p183) target = $region32
      $region31: #{multimodal_forward.2} parent=15 // pred_region
        %p186 = scmp.lt.s32.totalorder %s10, 1
        %s187 = scalar_select %p186, %s10, 1
        %s188 = smul.addr %s187, 2
        %s189 = smul.addr %s188, 8
        %s190 = scalar_lea.vmem %s3, %s189
      $region32: #{multimodal_forward.2} parent=15 // pred_fallthru
        _
    $region16: #{multimodal_forward.2} parent=5 // pred_fallthru
      _
    %p191 = scmp.le.s32.totalorder 1, %s10
    %p192 = scmp.lt.s32.totalorder %s10, 3
    %p193 = pnand %p191, %p192
    %p194 = pneg %p193
    // Predicated region
    $region33: #{multimodal_forward.2} parent=5 // pred_check
      _
    $region34: #{multimodal_forward.2} parent=5 // pred_check_branch
      %196 = sbr.rel (%p193) target = $region36
    $region35: #{multimodal_forward.2} parent=5 // pred_region
      %s197 = ssub.s32 %s10, 1
      %p198 = scmp.lt.s32.totalorder %s15, 1
      %s199 = scalar_select %p198, %s15, 1
      %s200 = smul.addr %s199, 160
      %s201 = smul.addr %s200, 4
      %s202 = scalar_lea.vmem %s0, %s201
      %p203 = pneg %p36
      %p204 = pneg %p33
      %p205 = scmp.lt.s32.totalorder %s15, 1
      %s206 = scalar_select %p205, %s15, 1
      %s207 = smul.addr %s206, 2
      %s208 = smul.addr %s207, 4
      %s209 = scalar_lea.vmem %s1, %s208
      %p210 = pneg %p62
      %p211 = pneg %p59
      %p212 = scmp.lt.s32.totalorder %s15, 1
      %s213 = scalar_select %p212, %s15, 1
      %s214 = smul.addr %s213, 2
      %s215 = smul.addr %s214, 8
      %s216 = scalar_lea.vmem %s2, %s215
      %p217 = pneg %p88
      %p218 = pneg %p85
      %p219 = scmp.lt.s32.totalorder %s15, 1
      %s220 = scalar_select %p219, %s15, 1
      %s221 = smul.addr %s220, 2
      %s222 = smul.addr %s221, 8
      %s223 = scalar_lea.vmem %s3, %s222
      %p224 = pneg %p114
      %p225 = pneg %p111
      %p226 = pneg %p140
      %p227 = pneg %p137
      %p228 = scmp.lt.s32.totalorder %s15, 1
      %s229 = scalar_select %p228, %s15, 1
      %s230 = smul.addr %s229, 8
      %s231 = smul.addr %s230, 4
      %s232 = scalar_lea.vmem %s4, %s231
      %p233 = scmp.lt.s32.totalorder %s15, 1
      %s234 = scalar_select %p233, %s15, 1
      %s235 = smul.addr %s234, 160
      %s236 = smul.addr %s235, 4
      %s237 = scalar_lea.vmem %s0, %s236
      %p238 = scmp.lt.s32.totalorder %s15, 1
      %s239 = scalar_select %p238, %s15, 1
      %s240 = smul.addr %s239, 2
      %s241 = smul.addr %s240, 4
      %s242 = scalar_lea.vmem %s1, %s241
      %p243 = scmp.lt.s32.totalorder %s15, 1
      %s244 = scalar_select %p243, %s15, 1
      %s245 = smul.addr %s244, 2
      %s246 = smul.addr %s245, 8
      %s247 = scalar_lea.vmem %s2, %s246
      %p248 = scmp.lt.s32.totalorder %s15, 1
      %s249 = scalar_select %p248, %s15, 1
      %s250 = smul.addr %s249, 2
      %s251 = smul.addr %s250, 8
      %s252 = scalar_lea.vmem %s3, %s251
      %p253 = scmp.lt.s32.totalorder %s15, 1
      %s254 = scalar_select %p253, %s15, 1
      %s255 = smul.addr %s254, 8
      %s256 = smul.addr %s255, 4
      %s257 = scalar_lea.vmem %s4, %s256
      %v259 = vld [vmem:[%s242] sm:$0xf]
      %v260 = vld [vmem:[%s242 + $0x4] sm:$0xf]
      %v261 = vld [vmem:[%s237] sm:$0xff]
      %v262 = vld [vmem:[%s237 + $0x8] sm:$0xff]
      %v263 = vld [vmem:[%s237 + $0x10] sm:$0xff]
      %v264 = vld [vmem:[%s237 + $0x18] sm:$0xff]
      %v265 = vld [vmem:[%s237 + $0x20] sm:$0xff]
      %v266 = vld [vmem:[%s237 + $0x28] sm:$0xff]
      %v267 = vld [vmem:[%s237 + $0x30] sm:$0xff]
      %v268 = vld [vmem:[%s237 + $0x38] sm:$0xff]
      %v269 = vld [vmem:[%s237 + $0x40] sm:$0xff]
      %v270 = vld [vmem:[%s237 + $0x48] sm:$0xff]
      %v271 = vld [vmem:[%s237 + $0x50] sm:$0xff]
      %v272 = vld [vmem:[%s237 + $0x58] sm:$0xff]
      %v273 = vld [vmem:[%s237 + $0x60] sm:$0xff]
      %v274 = vld [vmem:[%s237 + $0x68] sm:$0xff]
      %v275 = vld [vmem:[%s237 + $0x70] sm:$0xff]
      %v276 = vld [vmem:[%s237 + $0x78] sm:$0xff]
      %v277 = vld [vmem:[%s237 + $0x80] sm:$0xff]
      %v278 = vld [vmem:[%s237 + $0x88] sm:$0xff]
      %v279 = vld [vmem:[%s237 + $0x90] sm:$0xff]
      %v280 = vld [vmem:[%s237 + $0x98] sm:$0xff]
      %v281 = vld [vmem:[%s237 + $0xa0] sm:$0xff]
      %v282 = vld [vmem:[%s237 + $0xa8] sm:$0xff]
      %v283 = vld [vmem:[%s237 + $0xb0] sm:$0xff]
      %v284 = vld [vmem:[%s237 + $0xb8] sm:$0xff]
      %v285 = vld [vmem:[%s237 + $0xc0] sm:$0xff]
      %v286 = vld [vmem:[%s237 + $0xc8] sm:$0xff]
      %v287 = vld [vmem:[%s237 + $0xd0] sm:$0xff]
      %v288 = vld [vmem:[%s237 + $0xd8] sm:$0xff]
      %v289 = vld [vmem:[%s237 + $0xe0] sm:$0xff]
      %v290 = vld [vmem:[%s237 + $0xe8] sm:$0xff]
      %v291 = vld [vmem:[%s237 + $0xf0] sm:$0xff]
      %v292 = vld [vmem:[%s237 + $0xf8] sm:$0xff]
      %v293 = vld [vmem:[%s237 + $0x100] sm:$0xff]
      %v294 = vld [vmem:[%s237 + $0x108] sm:$0xff]
      %v295 = vld [vmem:[%s237 + $0x110] sm:$0xff]
      %v296 = vld [vmem:[%s237 + $0x118] sm:$0xff]
      %v297 = vld [vmem:[%s237 + $0x120] sm:$0xff]
      %v298 = vld [vmem:[%s237 + $0x128] sm:$0xff]
      %v299 = vld [vmem:[%s237 + $0x130] sm:$0xff]
      %v300 = vld [vmem:[%s237 + $0x138] sm:$0xff]
      %v301 = vld [vmem:[%s237 + $0x140] sm:$0xff]
      %v302 = vld [vmem:[%s237 + $0x148] sm:$0xff]
      %v303 = vld [vmem:[%s237 + $0x150] sm:$0xff]
      %v304 = vld [vmem:[%s237 + $0x158] sm:$0xff]
      %v305 = vld [vmem:[%s237 + $0x160] sm:$0xff]
      %v306 = vld [vmem:[%s237 + $0x168] sm:$0xff]
      %v307 = vld [vmem:[%s237 + $0x170] sm:$0xff]
      %v308 = vld [vmem:[%s237 + $0x178] sm:$0xff]
      %v309 = vld [vmem:[%s237 + $0x180] sm:$0xff]
      %v310 = vld [vmem:[%s237 + $0x188] sm:$0xff]
      %v311 = vld [vmem:[%s237 + $0x190] sm:$0xff]
      %v312 = vld [vmem:[%s237 + $0x198] sm:$0xff]
      %v313 = vld [vmem:[%s237 + $0x1a0] sm:$0xff]
      %v314 = vld [vmem:[%s237 + $0x1a8] sm:$0xff]
      %v315 = vld [vmem:[%s237 + $0x1b0] sm:$0xff]
      %v316 = vld [vmem:[%s237 + $0x1b8] sm:$0xff]
      %v317 = vld [vmem:[%s237 + $0x1c0] sm:$0xff]
      %v318 = vld [vmem:[%s237 + $0x1c8] sm:$0xff]
      %v319 = vld [vmem:[%s237 + $0x1d0] sm:$0xff]
      %v320 = vld [vmem:[%s237 + $0x1d8] sm:$0xff]
      %v321 = vld [vmem:[%s237 + $0x1e0] sm:$0xff]
      %v322 = vld [vmem:[%s237 + $0x1e8] sm:$0xff]
      %v323 = vld [vmem:[%s237 + $0x1f0] sm:$0xff]
      %v324 = vld [vmem:[%s237 + $0x1f8] sm:$0xff]
      %v325 = vld [vmem:[%s237 + $0x200] sm:$0xff]
      %v326 = vld [vmem:[%s237 + $0x208] sm:$0xff]
      %v327 = vld [vmem:[%s237 + $0x210] sm:$0xff]
      %v328 = vld [vmem:[%s237 + $0x218] sm:$0xff]
      %v329 = vld [vmem:[%s237 + $0x220] sm:$0xff]
      %v330 = vld [vmem:[%s237 + $0x228] sm:$0xff]
      %v331 = vld [vmem:[%s237 + $0x230] sm:$0xff]
      %v332 = vld [vmem:[%s237 + $0x238] sm:$0xff]
      %v333 = vld [vmem:[%s237 + $0x240] sm:$0xff]
      %v334 = vld [vmem:[%s237 + $0x248] sm:$0xff]
      %v335 = vld [vmem:[%s237 + $0x250] sm:$0xff]
      %v336 = vld [vmem:[%s237 + $0x258] sm:$0xff]
      %v337 = vld [vmem:[%s237 + $0x260] sm:$0xff]
      %v338 = vld [vmem:[%s237 + $0x268] sm:$0xff]
      %v339 = vld [vmem:[%s237 + $0x270] sm:$0xff]
      %v340 = vld [vmem:[%s237 + $0x278] sm:$0xff]
      %v343 = vunpack.c.l.b16 %v259
      %v344 = vunpack.c.l.b16 %v260
      %v345 = vpack.c.b16 %v344, %v343
      %v426 = vunpack.c.l.b16 %v261
      %v427 = vunpack.c.h.b16 %v261
      %v428 = vunpack.c.l.b16 %v262
      %v429 = vunpack.c.h.b16 %v262
      %v430 = vunpack.c.l.b16 %v263
      %v431 = vunpack.c.h.b16 %v263
      %v432 = vunpack.c.l.b16 %v264
      %v433 = vunpack.c.h.b16 %v264
      %v434 = vunpack.c.l.b16 %v265
      %v435 = vunpack.c.h.b16 %v265
      %v436 = vunpack.c.l.b16 %v266
      %v437 = vunpack.c.h.b16 %v266
      %v438 = vunpack.c.l.b16 %v267
      %v439 = vunpack.c.h.b16 %v267
      %v440 = vunpack.c.l.b16 %v268
      %v441 = vunpack.c.h.b16 %v268
      %v442 = vunpack.c.l.b16 %v269
      %v443 = vunpack.c.h.b16 %v269
      %v444 = vunpack.c.l.b16 %v270
      %v445 = vunpack.c.h.b16 %v270
      %v446 = vunpack.c.l.b16 %v271
      %v447 = vunpack.c.h.b16 %v271
      %v448 = vunpack.c.l.b16 %v272
      %v449 = vunpack.c.h.b16 %v272
      %v450 = vunpack.c.l.b16 %v273
      %v451 = vunpack.c.h.b16 %v273
      %v452 = vunpack.c.l.b16 %v274
      %v453 = vunpack.c.h.b16 %v274
      %v454 = vunpack.c.l.b16 %v275
      %v455 = vunpack.c.h.b16 %v275
      %v456 = vunpack.c.l.b16 %v276
      %v457 = vunpack.c.h.b16 %v276
      %v458 = vunpack.c.l.b16 %v277
      %v459 = vunpack.c.h.b16 %v277
      %v460 = vunpack.c.l.b16 %v278
      %v461 = vunpack.c.h.b16 %v278
      %v462 = vunpack.c.l.b16 %v279
      %v463 = vunpack.c.h.b16 %v279
      %v464 = vunpack.c.l.b16 %v280
      %v465 = vunpack.c.h.b16 %v280
      %v466 = vunpack.c.l.b16 %v281
      %v467 = vunpack.c.h.b16 %v281
      %v468 = vunpack.c.l.b16 %v282
      %v469 = vunpack.c.h.b16 %v282
      %v470 = vunpack.c.l.b16 %v283
      %v471 = vunpack.c.h.b16 %v283
      %v472 = vunpack.c.l.b16 %v284
      %v473 = vunpack.c.h.b16 %v284
      %v474 = vunpack.c.l.b16 %v285
      %v475 = vunpack.c.h.b16 %v285
      %v476 = vunpack.c.l.b16 %v286
      %v477 = vunpack.c.h.b16 %v286
      %v478 = vunpack.c.l.b16 %v287
      %v479 = vunpack.c.h.b16 %v287
      %v480 = vunpack.c.l.b16 %v288
      %v481 = vunpack.c.h.b16 %v288
      %v482 = vunpack.c.l.b16 %v289
      %v483 = vunpack.c.h.b16 %v289
      %v484 = vunpack.c.l.b16 %v290
      %v485 = vunpack.c.h.b16 %v290
      %v486 = vunpack.c.l.b16 %v291
      %v487 = vunpack.c.h.b16 %v291
      %v488 = vunpack.c.l.b16 %v292
      %v489 = vunpack.c.h.b16 %v292
      %v490 = vunpack.c.l.b16 %v293
      %v491 = vunpack.c.h.b16 %v293
      %v492 = vunpack.c.l.b16 %v294
      %v493 = vunpack.c.h.b16 %v294
      %v494 = vunpack.c.l.b16 %v295
      %v495 = vunpack.c.h.b16 %v295
      %v496 = vunpack.c.l.b16 %v296
      %v497 = vunpack.c.h.b16 %v296
      %v498 = vunpack.c.l.b16 %v297
      %v499 = vunpack.c.h.b16 %v297
      %v500 = vunpack.c.l.b16 %v298
      %v501 = vunpack.c.h.b16 %v298
      %v502 = vunpack.c.l.b16 %v299
      %v503 = vunpack.c.h.b16 %v299
      %v504 = vunpack.c.l.b16 %v300
      %v505 = vunpack.c.h.b16 %v300
      %v506 = vunpack.c.l.b16 %v301
      %v507 = vunpack.c.h.b16 %v301
      %v508 = vunpack.c.l.b16 %v302
      %v509 = vunpack.c.h.b16 %v302
      %v510 = vunpack.c.l.b16 %v303
      %v511 = vunpack.c.h.b16 %v303
      %v512 = vunpack.c.l.b16 %v304
      %v513 = vunpack.c.h.b16 %v304
      %v514 = vunpack.c.l.b16 %v305
      %v515 = vunpack.c.h.b16 %v305
      %v516 = vunpack.c.l.b16 %v306
      %v517 = vunpack.c.h.b16 %v306
      %v518 = vunpack.c.l.b16 %v307
      %v519 = vunpack.c.h.b16 %v307
      %v520 = vunpack.c.l.b16 %v308
      %v521 = vunpack.c.h.b16 %v308
      %v522 = vunpack.c.l.b16 %v309
      %v523 = vunpack.c.h.b16 %v309
      %v524 = vunpack.c.l.b16 %v310
      %v525 = vunpack.c.h.b16 %v310
      %v526 = vunpack.c.l.b16 %v311
      %v527 = vunpack.c.h.b16 %v311
      %v528 = vunpack.c.l.b16 %v312
      %v529 = vunpack.c.h.b16 %v312
      %v530 = vunpack.c.l.b16 %v313
      %v531 = vunpack.c.h.b16 %v313
      %v532 = vunpack.c.l.b16 %v314
      %v533 = vunpack.c.h.b16 %v314
      %v534 = vunpack.c.l.b16 %v315
      %v535 = vunpack.c.h.b16 %v315
      %v536 = vunpack.c.l.b16 %v316
      %v537 = vunpack.c.h.b16 %v316
      %v538 = vunpack.c.l.b16 %v317
      %v539 = vunpack.c.h.b16 %v317
      %v540 = vunpack.c.l.b16 %v318
      %v541 = vunpack.c.h.b16 %v318
      %v542 = vunpack.c.l.b16 %v319
      %v543 = vunpack.c.h.b16 %v319
      %v544 = vunpack.c.l.b16 %v320
      %v545 = vunpack.c.h.b16 %v320
      %v546 = vunpack.c.l.b16 %v321
      %v547 = vunpack.c.h.b16 %v321
      %v548 = vunpack.c.l.b16 %v322
      %v549 = vunpack.c.h.b16 %v322
      %v550 = vunpack.c.l.b16 %v323
      %v551 = vunpack.c.h.b16 %v323
      %v552 = vunpack.c.l.b16 %v324
      %v553 = vunpack.c.h.b16 %v324
      %v554 = vunpack.c.l.b16 %v325
      %v555 = vunpack.c.h.b16 %v325
      %v556 = vunpack.c.l.b16 %v326
      %v557 = vunpack.c.h.b16 %v326
      %v558 = vunpack.c.l.b16 %v327
      %v559 = vunpack.c.h.b16 %v327
      %v560 = vunpack.c.l.b16 %v328
      %v561 = vunpack.c.h.b16 %v328
      %v562 = vunpack.c.l.b16 %v329
      %v563 = vunpack.c.h.b16 %v329
      %v564 = vunpack.c.l.b16 %v330
      %v565 = vunpack.c.h.b16 %v330
      %v566 = vunpack.c.l.b16 %v331
      %v567 = vunpack.c.h.b16 %v331
      %v568 = vunpack.c.l.b16 %v332
      %v569 = vunpack.c.h.b16 %v332
      %v570 = vunpack.c.l.b16 %v333
      %v571 = vunpack.c.h.b16 %v333
      %v572 = vunpack.c.l.b16 %v334
      %v573 = vunpack.c.h.b16 %v334
      %v574 = vunpack.c.l.b16 %v335
      %v575 = vunpack.c.h.b16 %v335
      %v576 = vunpack.c.l.b16 %v336
      %v577 = vunpack.c.h.b16 %v336
      %v578 = vunpack.c.l.b16 %v337
      %v579 = vunpack.c.h.b16 %v337
      %v580 = vunpack.c.l.b16 %v338
      %v581 = vunpack.c.h.b16 %v338
      %v582 = vunpack.c.l.b16 %v339
      %v583 = vunpack.c.h.b16 %v339
      %v584 = vunpack.c.l.b16 %v340
      %v585 = vunpack.c.h.b16 %v340
      %v586 = vpack.c.b16 %v442, %v426
      %v587 = vpack.c.b16 %v443, %v427
      %v588 = vpack.c.b16 %v444, %v428
      %v589 = vpack.c.b16 %v445, %v429
      %v590 = vpack.c.b16 %v446, %v430
      %v591 = vpack.c.b16 %v447, %v431
      %v592 = vpack.c.b16 %v448, %v432
      %v593 = vpack.c.b16 %v449, %v433
      %v594 = vpack.c.b16 %v450, %v434
      %v595 = vpack.c.b16 %v451, %v435
      %v596 = vpack.c.b16 %v452, %v436
      %v597 = vpack.c.b16 %v453, %v437
      %v598 = vpack.c.b16 %v454, %v438
      %v599 = vpack.c.b16 %v455, %v439
      %v600 = vpack.c.b16 %v456, %v440
      %v601 = vpack.c.b16 %v457, %v441
      %v602 = vpack.c.b16 %v474, %v458
      %v603 = vpack.c.b16 %v475, %v459
      %v604 = vpack.c.b16 %v476, %v460
      %v605 = vpack.c.b16 %v477, %v461
      %v606 = vpack.c.b16 %v478, %v462
      %v607 = vpack.c.b16 %v479, %v463
      %v608 = vpack.c.b16 %v480, %v464
      %v609 = vpack.c.b16 %v481, %v465
      %v610 = vpack.c.b16 %v482, %v466
      %v611 = vpack.c.b16 %v483, %v467
      %v612 = vpack.c.b16 %v484, %v468
      %v613 = vpack.c.b16 %v485, %v469
      %v614 = vpack.c.b16 %v486, %v470
      %v615 = vpack.c.b16 %v487, %v471
      %v616 = vpack.c.b16 %v488, %v472
      %v617 = vpack.c.b16 %v489, %v473
      %v618 = vpack.c.b16 %v506, %v490
      %v619 = vpack.c.b16 %v507, %v491
      %v620 = vpack.c.b16 %v508, %v492
      %v621 = vpack.c.b16 %v509, %v493
      %v622 = vpack.c.b16 %v510, %v494
      %v623 = vpack.c.b16 %v511, %v495
      %v624 = vpack.c.b16 %v512, %v496
      %v625 = vpack.c.b16 %v513, %v497
      %v626 = vpack.c.b16 %v514, %v498
      %v627 = vpack.c.b16 %v515, %v499
      %v628 = vpack.c.b16 %v516, %v500
      %v629 = vpack.c.b16 %v517, %v501
      %v630 = vpack.c.b16 %v518, %v502
      %v631 = vpack.c.b16 %v519, %v503
      %v632 = vpack.c.b16 %v520, %v504
      %v633 = vpack.c.b16 %v521, %v505
      %v634 = vpack.c.b16 %v538, %v522
      %v635 = vpack.c.b16 %v539, %v523
      %v636 = vpack.c.b16 %v540, %v524
      %v637 = vpack.c.b16 %v541, %v525
      %v638 = vpack.c.b16 %v542, %v526
      %v639 = vpack.c.b16 %v543, %v527
      %v640 = vpack.c.b16 %v544, %v528
      %v641 = vpack.c.b16 %v545, %v529
      %v642 = vpack.c.b16 %v546, %v530
      %v643 = vpack.c.b16 %v547, %v531
      %v644 = vpack.c.b16 %v548, %v532
      %v645 = vpack.c.b16 %v549, %v533
      %v646 = vpack.c.b16 %v550, %v534
      %v647 = vpack.c.b16 %v551, %v535
      %v648 = vpack.c.b16 %v552, %v536
      %v649 = vpack.c.b16 %v553, %v537
      %v650 = vpack.c.b16 %v570, %v554
      %v651 = vpack.c.b16 %v571, %v555
      %v652 = vpack.c.b16 %v572, %v556
      %v653 = vpack.c.b16 %v573, %v557
      %v654 = vpack.c.b16 %v574, %v558
      %v655 = vpack.c.b16 %v575, %v559
      %v656 = vpack.c.b16 %v576, %v560
      %v657 = vpack.c.b16 %v577, %v561
      %v658 = vpack.c.b16 %v578, %v562
      %v659 = vpack.c.b16 %v579, %v563
      %v660 = vpack.c.b16 %v580, %v564
      %v661 = vpack.c.b16 %v581, %v565
      %v662 = vpack.c.b16 %v582, %v566
      %v663 = vpack.c.b16 %v583, %v567
      %v664 = vpack.c.b16 %v584, %v568
      %v665 = vpack.c.b16 %v585, %v569
      %vm746 = vcmask 654336
      %v748 = vsel %vm746, %v345, 0
      %750 = vmatpush.bf16.msra.mxu0 0
      %751 = vmatpush.bf16.msra.mxu0 0
      %752 = vmatpush.bf16.msra.mxu0 0
      %753 = vmatpush.bf16.msra.mxu0 %v650
      %754 = vmatpush.bf16.msra.mxu0 %v634
      %755 = vmatpush.bf16.msra.mxu0 %v618
      %756 = vmatpush.bf16.msra.mxu0 %v602
      %757 = vmatpush.bf16.msra.mxu0 %v586
      %758 = vmatmul.bf16.gmra.mxu0 %v748
      %v759 = vpop.f32.mrf.mxu0
      %v760 = vadd.f32 0.0, %v759
      %v761 = vpop.f32.mrf.mxu0
      %v762 = vadd.f32 0.0, %v761
      %763 = vdwg.mxu0
      %764 = vmatpush.bf16.msra.mxu0 0
      %765 = vmatpush.bf16.msra.mxu0 0
      %766 = vmatpush.bf16.msra.mxu0 0
      %767 = vmatpush.bf16.msra.mxu0 %v651
      %768 = vmatpush.bf16.msra.mxu0 %v635
      %769 = vmatpush.bf16.msra.mxu0 %v619
      %770 = vmatpush.bf16.msra.mxu0 %v603
      %771 = vmatpush.bf16.msra.mxu0 %v587
      %772 = vmatmul.bf16.gmra.mxu0 %v748
      %v773 = vpop.f32.mrf.mxu0
      %v774 = vadd.f32 0.0, %v773
      %v775 = vpop.f32.mrf.mxu0
      %v776 = vadd.f32 0.0, %v775
      %777 = vdwg.mxu0
      %778 = vmatpush.bf16.msra.mxu0 0
      %779 = vmatpush.bf16.msra.mxu0 0
      %780 = vmatpush.bf16.msra.mxu0 0
      %781 = vmatpush.bf16.msra.mxu0 %v652
      %782 = vmatpush.bf16.msra.mxu0 %v636
      %783 = vmatpush.bf16.msra.mxu0 %v620
      %784 = vmatpush.bf16.msra.mxu0 %v604
      %785 = vmatpush.bf16.msra.mxu0 %v588
      %786 = vmatmul.bf16.gmra.mxu0 %v748
      %v787 = vpop.f32.mrf.mxu0
      %v788 = vadd.f32 0.0, %v787
      %v789 = vpop.f32.mrf.mxu0
      %v790 = vadd.f32 0.0, %v789
      %791 = vdwg.mxu0
      %792 = vmatpush.bf16.msra.mxu0 0
      %793 = vmatpush.bf16.msra.mxu0 0
      %794 = vmatpush.bf16.msra.mxu0 0
      %795 = vmatpush.bf16.msra.mxu0 %v653
      %796 = vmatpush.bf16.msra.mxu0 %v637
      %797 = vmatpush.bf16.msra.mxu0 %v621
      %798 = vmatpush.bf16.msra.mxu0 %v605
      %799 = vmatpush.bf16.msra.mxu0 %v589
      %800 = vmatmul.bf16.gmra.mxu0 %v748
      %v801 = vpop.f32.mrf.mxu0
      %v802 = vadd.f32 0.0, %v801
      %v803 = vpop.f32.mrf.mxu0
      %v804 = vadd.f32 0.0, %v803
      %805 = vdwg.mxu0
      %806 = vmatpush.bf16.msra.mxu0 0
      %807 = vmatpush.bf16.msra.mxu0 0
      %808 = vmatpush.bf16.msra.mxu0 0
      %809 = vmatpush.bf16.msra.mxu0 %v654
      %810 = vmatpush.bf16.msra.mxu0 %v638
      %811 = vmatpush.bf16.msra.mxu0 %v622
      %812 = vmatpush.bf16.msra.mxu0 %v606
      %813 = vmatpush.bf16.msra.mxu0 %v590
      %814 = vmatmul.bf16.gmra.mxu0 %v748
      %v815 = vpop.f32.mrf.mxu0
      %v816 = vadd.f32 0.0, %v815
      %v817 = vpop.f32.mrf.mxu0
      %v818 = vadd.f32 0.0, %v817
      %819 = vdwg.mxu0
      %820 = vmatpush.bf16.msra.mxu0 0
      %821 = vmatpush.bf16.msra.mxu0 0
      %822 = vmatpush.bf16.msra.mxu0 0
      %823 = vmatpush.bf16.msra.mxu0 %v655
      %824 = vmatpush.bf16.msra.mxu0 %v639
      %825 = vmatpush.bf16.msra.mxu0 %v623
      %826 = vmatpush.bf16.msra.mxu0 %v607
      %827 = vmatpush.bf16.msra.mxu0 %v591
      %828 = vmatmul.bf16.gmra.mxu0 %v748
      %v829 = vpop.f32.mrf.mxu0
      %v830 = vadd.f32 0.0, %v829
      %v831 = vpop.f32.mrf.mxu0
      %v832 = vadd.f32 0.0, %v831
      %833 = vdwg.mxu0
      %834 = vmatpush.bf16.msra.mxu0 0
      %835 = vmatpush.bf16.msra.mxu0 0
      %836 = vmatpush.bf16.msra.mxu0 0
      %837 = vmatpush.bf16.msra.mxu0 %v656
      %838 = vmatpush.bf16.msra.mxu0 %v640
      %839 = vmatpush.bf16.msra.mxu0 %v624
      %840 = vmatpush.bf16.msra.mxu0 %v608
      %841 = vmatpush.bf16.msra.mxu0 %v592
      %842 = vmatmul.bf16.gmra.mxu0 %v748
      %v843 = vpop.f32.mrf.mxu0
      %v844 = vadd.f32 0.0, %v843
      %v845 = vpop.f32.mrf.mxu0
      %v846 = vadd.f32 0.0, %v845
      %847 = vdwg.mxu0
      %848 = vmatpush.bf16.msra.mxu0 0
      %849 = vmatpush.bf16.msra.mxu0 0
      %850 = vmatpush.bf16.msra.mxu0 0
      %851 = vmatpush.bf16.msra.mxu0 %v657
      %852 = vmatpush.bf16.msra.mxu0 %v641
      %853 = vmatpush.bf16.msra.mxu0 %v625
      %854 = vmatpush.bf16.msra.mxu0 %v609
      %855 = vmatpush.bf16.msra.mxu0 %v593
      %856 = vmatmul.bf16.gmra.mxu0 %v748
      %v857 = vpop.f32.mrf.mxu0
      %v858 = vadd.f32 0.0, %v857
      %v859 = vpop.f32.mrf.mxu0
      %v860 = vadd.f32 0.0, %v859
      %861 = vdwg.mxu0
      %862 = vmatpush.bf16.msra.mxu0 0
      %863 = vmatpush.bf16.msra.mxu0 0
      %864 = vmatpush.bf16.msra.mxu0 0
      %865 = vmatpush.bf16.msra.mxu0 %v658
      %866 = vmatpush.bf16.msra.mxu0 %v642
      %867 = vmatpush.bf16.msra.mxu0 %v626
      %868 = vmatpush.bf16.msra.mxu0 %v610
      %869 = vmatpush.bf16.msra.mxu0 %v594
      %870 = vmatmul.bf16.gmra.mxu0 %v748
      %v871 = vpop.f32.mrf.mxu0
      %v872 = vadd.f32 0.0, %v871
      %v873 = vpop.f32.mrf.mxu0
      %v874 = vadd.f32 0.0, %v873
      %875 = vdwg.mxu0
      %876 = vmatpush.bf16.msra.mxu0 0
      %877 = vmatpush.bf16.msra.mxu0 0
      %878 = vmatpush.bf16.msra.mxu0 0
      %879 = vmatpush.bf16.msra.mxu0 %v659
      %880 = vmatpush.bf16.msra.mxu0 %v643
      %881 = vmatpush.bf16.msra.mxu0 %v627
      %882 = vmatpush.bf16.msra.mxu0 %v611
      %883 = vmatpush.bf16.msra.mxu0 %v595
      %884 = vmatmul.bf16.gmra.mxu0 %v748
      %v885 = vpop.f32.mrf.mxu0
      %v886 = vadd.f32 0.0, %v885
      %v887 = vpop.f32.mrf.mxu0
      %v888 = vadd.f32 0.0, %v887
      %889 = vdwg.mxu0
      %890 = vmatpush.bf16.msra.mxu0 0
      %891 = vmatpush.bf16.msra.mxu0 0
      %892 = vmatpush.bf16.msra.mxu0 0
      %893 = vmatpush.bf16.msra.mxu0 %v660
      %894 = vmatpush.bf16.msra.mxu0 %v644
      %895 = vmatpush.bf16.msra.mxu0 %v628
      %896 = vmatpush.bf16.msra.mxu0 %v612
      %897 = vmatpush.bf16.msra.mxu0 %v596
      %898 = vmatmul.bf16.gmra.mxu0 %v748
      %v899 = vpop.f32.mrf.mxu0
      %v900 = vadd.f32 0.0, %v899
      %v901 = vpop.f32.mrf.mxu0
      %v902 = vadd.f32 0.0, %v901
      %903 = vdwg.mxu0
      %904 = vmatpush.bf16.msra.mxu0 0
      %905 = vmatpush.bf16.msra.mxu0 0
      %906 = vmatpush.bf16.msra.mxu0 0
      %907 = vmatpush.bf16.msra.mxu0 %v661
      %908 = vmatpush.bf16.msra.mxu0 %v645
      %909 = vmatpush.bf16.msra.mxu0 %v629
      %910 = vmatpush.bf16.msra.mxu0 %v613
      %911 = vmatpush.bf16.msra.mxu0 %v597
      %912 = vmatmul.bf16.gmra.mxu0 %v748
      %v913 = vpop.f32.mrf.mxu0
      %v914 = vadd.f32 0.0, %v913
      %v915 = vpop.f32.mrf.mxu0
      %v916 = vadd.f32 0.0, %v915
      %917 = vdwg.mxu0
      %918 = vmatpush.bf16.msra.mxu0 0
      %919 = vmatpush.bf16.msra.mxu0 0
      %920 = vmatpush.bf16.msra.mxu0 0
      %921 = vmatpush.bf16.msra.mxu0 %v662
      %922 = vmatpush.bf16.msra.mxu0 %v646
      %923 = vmatpush.bf16.msra.mxu0 %v630
      %924 = vmatpush.bf16.msra.mxu0 %v614
      %925 = vmatpush.bf16.msra.mxu0 %v598
      %926 = vmatmul.bf16.gmra.mxu0 %v748
      %v927 = vpop.f32.mrf.mxu0
      %v928 = vadd.f32 0.0, %v927
      %v929 = vpop.f32.mrf.mxu0
      %v930 = vadd.f32 0.0, %v929
      %931 = vdwg.mxu0
      %932 = vmatpush.bf16.msra.mxu0 0
      %933 = vmatpush.bf16.msra.mxu0 0
      %934 = vmatpush.bf16.msra.mxu0 0
      %935 = vmatpush.bf16.msra.mxu0 %v663
      %936 = vmatpush.bf16.msra.mxu0 %v647
      %937 = vmatpush.bf16.msra.mxu0 %v631
      %938 = vmatpush.bf16.msra.mxu0 %v615
      %939 = vmatpush.bf16.msra.mxu0 %v599
      %940 = vmatmul.bf16.gmra.mxu0 %v748
      %v941 = vpop.f32.mrf.mxu0
      %v942 = vadd.f32 0.0, %v941
      %v943 = vpop.f32.mrf.mxu0
      %v944 = vadd.f32 0.0, %v943
      %945 = vdwg.mxu0
      %946 = vmatpush.bf16.msra.mxu0 0
      %947 = vmatpush.bf16.msra.mxu0 0
      %948 = vmatpush.bf16.msra.mxu0 0
      %949 = vmatpush.bf16.msra.mxu0 %v664
      %950 = vmatpush.bf16.msra.mxu0 %v648
      %951 = vmatpush.bf16.msra.mxu0 %v632
      %952 = vmatpush.bf16.msra.mxu0 %v616
      %953 = vmatpush.bf16.msra.mxu0 %v600
      %954 = vmatmul.bf16.gmra.mxu0 %v748
      %v955 = vpop.f32.mrf.mxu0
      %v956 = vadd.f32 0.0, %v955
      %v957 = vpop.f32.mrf.mxu0
      %v958 = vadd.f32 0.0, %v957
      %959 = vdwg.mxu0
      %960 = vmatpush.bf16.msra.mxu0 0
      %961 = vmatpush.bf16.msra.mxu0 0
      %962 = vmatpush.bf16.msra.mxu0 0
      %963 = vmatpush.bf16.msra.mxu0 %v665
      %964 = vmatpush.bf16.msra.mxu0 %v649
      %965 = vmatpush.bf16.msra.mxu0 %v633
      %966 = vmatpush.bf16.msra.mxu0 %v617
      %967 = vmatpush.bf16.msra.mxu0 %v601
      %968 = vmatmul.bf16.gmra.mxu0 %v748
      %v969 = vpop.f32.mrf.mxu0
      %v970 = vadd.f32 0.0, %v969
      %v971 = vpop.f32.mrf.mxu0
      %v972 = vadd.f32 0.0, %v971
      %973 = vdwg.mxu0
      %v974 = vadd.f32 %v760, %v774
      %v975 = vadd.f32 %v974, %v788
      %v976 = vadd.f32 %v975, %v802
      %v977 = vadd.f32 %v976, %v816
      %v978 = vadd.f32 %v977, %v830
      %v979 = vadd.f32 %v978, %v844
      %v980 = vadd.f32 %v979, %v858
      %v981 = vadd.f32 %v980, %v872
      %v982 = vadd.f32 %v981, %v886
      %v983 = vadd.f32 %v982, %v900
      %v984 = vadd.f32 %v983, %v914
      %v985 = vadd.f32 %v984, %v928
      %v986 = vadd.f32 %v985, %v942
      %v987 = vadd.f32 %v986, %v956
      %v988 = vadd.f32 %v987, %v970
      %989 = vadd.xlane.f32.xlu0 %v988
      %v990 = vpop.xlane.xlu0 %989
      %v991 = vadd.f32 %v762, %v776
      %v992 = vadd.f32 %v991, %v790
      %v993 = vadd.f32 %v992, %v804
      %v994 = vadd.f32 %v993, %v818
      %v995 = vadd.f32 %v994, %v832
      %v996 = vadd.f32 %v995, %v846
      %v997 = vadd.f32 %v996, %v860
      %v998 = vadd.f32 %v997, %v874
      %v999 = vadd.f32 %v998, %v888
      %v1000 = vadd.f32 %v999, %v902
      %v1001 = vadd.f32 %v1000, %v916
      %v1002 = vadd.f32 %v1001, %v930
      %v1003 = vadd.f32 %v1002, %v944
      %v1004 = vadd.f32 %v1003, %v958
      %v1005 = vadd.f32 %v1004, %v972
      %1006 = vadd.xlane.f32.xlu0 %v1005
      %v1007 = vpop.xlane.xlu0 %1006
      %v1008 = vmul.f32 %v990, 0.00048828125
      %v1009 = vmul.f32 %v1007, 0.00048828125
      %v1010 = vsub.f32 %v760, %v1008
      %v1011 = vsub.f32 %v774, %v1008
      %v1012 = vsub.f32 %v788, %v1008
      %v1013 = vsub.f32 %v802, %v1008
      %v1014 = vsub.f32 %v816, %v1008
      %v1015 = vsub.f32 %v830, %v1008
      %v1016 = vsub.f32 %v844, %v1008
      %v1017 = vsub.f32 %v858, %v1008
      %v1018 = vsub.f32 %v872, %v1008
      %v1019 = vsub.f32 %v886, %v1008
      %v1020 = vsub.f32 %v900, %v1008
      %v1021 = vsub.f32 %v914, %v1008
      %v1022 = vsub.f32 %v928, %v1008
      %v1023 = vsub.f32 %v942, %v1008
      %v1024 = vsub.f32 %v956, %v1008
      %v1025 = vsub.f32 %v970, %v1008
      %v1026 = vsub.f32 %v762, %v1009
      %v1027 = vsub.f32 %v776, %v1009
      %v1028 = vsub.f32 %v790, %v1009
      %v1029 = vsub.f32 %v804, %v1009
      %v1030 = vsub.f32 %v818, %v1009
      %v1031 = vsub.f32 %v832, %v1009
      %v1032 = vsub.f32 %v846, %v1009
      %v1033 = vsub.f32 %v860, %v1009
      %v1034 = vsub.f32 %v874, %v1009
      %v1035 = vsub.f32 %v888, %v1009
      %v1036 = vsub.f32 %v902, %v1009
      %v1037 = vsub.f32 %v916, %v1009
      %v1038 = vsub.f32 %v930, %v1009
      %v1039 = vsub.f32 %v944, %v1009
      %v1040 = vsub.f32 %v958, %v1009
      %v1041 = vsub.f32 %v972, %v1009
      %v1042 = vmul.f32 %v1010, %v1010
      %v1043 = vmul.f32 %v1011, %v1011
      %v1044 = vmul.f32 %v1012, %v1012
      %v1045 = vmul.f32 %v1013, %v1013
      %v1046 = vmul.f32 %v1014, %v1014
      %v1047 = vmul.f32 %v1015, %v1015
      %v1048 = vmul.f32 %v1016, %v1016
      %v1049 = vmul.f32 %v1017, %v1017
      %v1050 = vmul.f32 %v1018, %v1018
      %v1051 = vmul.f32 %v1019, %v1019
      %v1052 = vmul.f32 %v1020, %v1020
      %v1053 = vmul.f32 %v1021, %v1021
      %v1054 = vmul.f32 %v1022, %v1022
      %v1055 = vmul.f32 %v1023, %v1023
      %v1056 = vmul.f32 %v1024, %v1024
      %v1057 = vmul.f32 %v1025, %v1025
      %v1058 = vmul.f32 %v1026, %v1026
      %v1059 = vmul.f32 %v1027, %v1027
      %v1060 = vmul.f32 %v1028, %v1028
      %v1061 = vmul.f32 %v1029, %v1029
      %v1062 = vmul.f32 %v1030, %v1030
      %v1063 = vmul.f32 %v1031, %v1031
      %v1064 = vmul.f32 %v1032, %v1032
      %v1065 = vmul.f32 %v1033, %v1033
      %v1066 = vmul.f32 %v1034, %v1034
      %v1067 = vmul.f32 %v1035, %v1035
      %v1068 = vmul.f32 %v1036, %v1036
      %v1069 = vmul.f32 %v1037, %v1037
      %v1070 = vmul.f32 %v1038, %v1038
      %v1071 = vmul.f32 %v1039, %v1039
      %v1072 = vmul.f32 %v1040, %v1040
      %v1073 = vmul.f32 %v1041, %v1041
      %v1074 = vadd.f32 %v1042, %v1043
      %v1075 = vadd.f32 %v1074, %v1044
      %v1076 = vadd.f32 %v1075, %v1045
      %v1077 = vadd.f32 %v1076, %v1046
      %v1078 = vadd.f32 %v1077, %v1047
      %v1079 = vadd.f32 %v1078, %v1048
      %v1080 = vadd.f32 %v1079, %v1049
      %v1081 = vadd.f32 %v1080, %v1050
      %v1082 = vadd.f32 %v1081, %v1051
      %v1083 = vadd.f32 %v1082, %v1052
      %v1084 = vadd.f32 %v1083, %v1053
      %v1085 = vadd.f32 %v1084, %v1054
      %v1086 = vadd.f32 %v1085, %v1055
      %v1087 = vadd.f32 %v1086, %v1056
      %v1088 = vadd.f32 %v1087, %v1057
      %1089 = vadd.xlane.f32.xlu0 %v1088
      %v1090 = vpop.xlane.xlu0 %1089
      %v1091 = vadd.f32 %v1058, %v1059
      %v1092 = vadd.f32 %v1091, %v1060
      %v1093 = vadd.f32 %v1092, %v1061
      %v1094 = vadd.f32 %v1093, %v1062
      %v1095 = vadd.f32 %v1094, %v1063
      %v1096 = vadd.f32 %v1095, %v1064
      %v1097 = vadd.f32 %v1096, %v1065
      %v1098 = vadd.f32 %v1097, %v1066
      %v1099 = vadd.f32 %v1098, %v1067
      %v1100 = vadd.f32 %v1099, %v1068
      %v1101 = vadd.f32 %v1100, %v1069
      %v1102 = vadd.f32 %v1101, %v1070
      %v1103 = vadd.f32 %v1102, %v1071
      %v1104 = vadd.f32 %v1103, %v1072
      %v1105 = vadd.f32 %v1104, %v1073
      %1106 = vadd.xlane.f32.xlu0 %v1105
      %v1107 = vpop.xlane.xlu0 %1106
      %v1108 = vmul.f32 %v1090, 0.00048828125
      %v1109 = vmul.f32 %v1107, 0.00048828125
      %v1110 = vld [vmem:[%s247] sm:$0xff]
      %v1111 = vld [vmem:[%s247 + $0x8] sm:$0xff]
      %v1112 = vadd.f32 %v1108, 1e-05
      %v1113 = vadd.f32 %v1109, 1e-05
      %v1114 = vrsqrt.pop %v1112
      %v1115 = vmul.f32 %v1114, %v1112
      %v1116 = vmul.f32 %v1115, %v1114
      %v1117 = vmul.f32 0.5, %v1116
      %v1118 = vsub.f32 1.5, %v1117
      %v1119 = vmul.f32 %v1114, %v1118
      %vm1120 = vweird.f32 %v1112
      %vm1121 = vweird.f32 %v1114
      %vm1122 = vmor %vm1120, %vm1121
      %v1123 = vsel %vm1122, %v1114, %v1119
      %v1124 = vrsqrt.pop %v1113
      %v1125 = vmul.f32 %v1124, %v1113
      %v1126 = vmul.f32 %v1125, %v1124
      %v1127 = vmul.f32 0.5, %v1126
      %v1128 = vsub.f32 1.5, %v1127
      %v1129 = vmul.f32 %v1124, %v1128
      %vm1130 = vweird.f32 %v1113
      %vm1131 = vweird.f32 %v1124
      %vm1132 = vmor %vm1130, %vm1131
      %v1133 = vsel %vm1132, %v1124, %v1129
      %v1134 = vmul.f32 %v1110, %v1123
      %v1135 = vmul.f32 %v1111, %v1133
      %1137 = vset.pattern.permute.xlu0 0
      %1138 = vperm.xlu0 %1137, %v1134
      %v1139 = vpop.permute.xlu0 %1138
      %1142 = vset.pattern.permute.xlu0 0
      %1143 = vperm.xlu0 %1142, %v1135
      %v1144 = vpop.permute.xlu0 %1143
      %v1146 = vmul.f32 %v1010, %v1139
      %v1147 = vmul.f32 %v1011, %v1139
      %v1148 = vmul.f32 %v1012, %v1139
      %v1149 = vmul.f32 %v1013, %v1139
      %v1150 = vmul.f32 %v1014, %v1139
      %v1151 = vmul.f32 %v1015, %v1139
      %v1152 = vmul.f32 %v1016, %v1139
      %v1153 = vmul.f32 %v1017, %v1139
      %v1154 = vmul.f32 %v1018, %v1139
      %v1155 = vmul.f32 %v1019, %v1139
      %v1156 = vmul.f32 %v1020, %v1139
      %v1157 = vmul.f32 %v1021, %v1139
      %v1158 = vmul.f32 %v1022, %v1139
      %v1159 = vmul.f32 %v1023, %v1139
      %v1160 = vmul.f32 %v1024, %v1139
      %v1161 = vmul.f32 %v1025, %v1139
      %v1162 = vmul.f32 %v1026, %v1144
      %v1163 = vmul.f32 %v1027, %v1144
      %v1164 = vmul.f32 %v1028, %v1144
      %v1165 = vmul.f32 %v1029, %v1144
      %v1166 = vmul.f32 %v1030, %v1144
      %v1167 = vmul.f32 %v1031, %v1144
      %v1168 = vmul.f32 %v1032, %v1144
      %v1169 = vmul.f32 %v1033, %v1144
      %v1170 = vmul.f32 %v1034, %v1144
      %v1171 = vmul.f32 %v1035, %v1144
      %v1172 = vmul.f32 %v1036, %v1144
      %v1173 = vmul.f32 %v1037, %v1144
      %v1174 = vmul.f32 %v1038, %v1144
      %v1175 = vmul.f32 %v1039, %v1144
      %v1176 = vmul.f32 %v1040, %v1144
      %v1177 = vmul.f32 %v1041, %v1144
      %v1178 = vld [vmem:[%s252] sm:$0xff]
      %v1179 = vld [vmem:[%s252 + $0x8] sm:$0xff]
      %1181 = vset.pattern.permute.xlu0 0
      %1182 = vperm.xlu0 %1181, %v1178
      %v1183 = vpop.permute.xlu0 %1182
      %1186 = vset.pattern.permute.xlu0 0
      %1187 = vperm.xlu0 %1186, %v1179
      %v1188 = vpop.permute.xlu0 %1187
      %v1190 = vadd.f32 %v1146, %v1183
      %v1191 = vadd.f32 %v1147, %v1183
      %v1192 = vadd.f32 %v1148, %v1183
      %v1193 = vadd.f32 %v1149, %v1183
      %v1194 = vadd.f32 %v1150, %v1183
      %v1195 = vadd.f32 %v1151, %v1183
      %v1196 = vadd.f32 %v1152, %v1183
      %v1197 = vadd.f32 %v1153, %v1183
      %v1198 = vadd.f32 %v1154, %v1183
      %v1199 = vadd.f32 %v1155, %v1183
      %v1200 = vadd.f32 %v1156, %v1183
      %v1201 = vadd.f32 %v1157, %v1183
      %v1202 = vadd.f32 %v1158, %v1183
      %v1203 = vadd.f32 %v1159, %v1183
      %v1204 = vadd.f32 %v1160, %v1183
      %v1205 = vadd.f32 %v1161, %v1183
      %v1206 = vadd.f32 %v1162, %v1188
      %v1207 = vadd.f32 %v1163, %v1188
      %v1208 = vadd.f32 %v1164, %v1188
      %v1209 = vadd.f32 %v1165, %v1188
      %v1210 = vadd.f32 %v1166, %v1188
      %v1211 = vadd.f32 %v1167, %v1188
      %v1212 = vadd.f32 %v1168, %v1188
      %v1213 = vadd.f32 %v1169, %v1188
      %v1214 = vadd.f32 %v1170, %v1188
      %v1215 = vadd.f32 %v1171, %v1188
      %v1216 = vadd.f32 %v1172, %v1188
      %v1217 = vadd.f32 %v1173, %v1188
      %v1218 = vadd.f32 %v1174, %v1188
      %v1219 = vadd.f32 %v1175, %v1188
      %v1220 = vadd.f32 %v1176, %v1188
      %v1221 = vadd.f32 %v1177, %v1188
      %v1222 = vmax.f32 %v1190, 0.0
      %v1223 = vmax.f32 %v1191, 0.0
      %v1224 = vmax.f32 %v1192, 0.0
      %v1225 = vmax.f32 %v1193, 0.0
      %v1226 = vmax.f32 %v1194, 0.0
      %v1227 = vmax.f32 %v1195, 0.0
      %v1228 = vmax.f32 %v1196, 0.0
      %v1229 = vmax.f32 %v1197, 0.0
      %v1230 = vmax.f32 %v1198, 0.0
      %v1231 = vmax.f32 %v1199, 0.0
      %v1232 = vmax.f32 %v1200, 0.0
      %v1233 = vmax.f32 %v1201, 0.0
      %v1234 = vmax.f32 %v1202, 0.0
      %v1235 = vmax.f32 %v1203, 0.0
      %v1236 = vmax.f32 %v1204, 0.0
      %v1237 = vmax.f32 %v1205, 0.0
      %v1238 = vmax.f32 %v1206, 0.0
      %v1239 = vmax.f32 %v1207, 0.0
      %v1240 = vmax.f32 %v1208, 0.0
      %v1241 = vmax.f32 %v1209, 0.0
      %v1242 = vmax.f32 %v1210, 0.0
      %v1243 = vmax.f32 %v1211, 0.0
      %v1244 = vmax.f32 %v1212, 0.0
      %v1245 = vmax.f32 %v1213, 0.0
      %v1246 = vmax.f32 %v1214, 0.0
      %v1247 = vmax.f32 %v1215, 0.0
      %v1248 = vmax.f32 %v1216, 0.0
      %v1249 = vmax.f32 %v1217, 0.0
      %v1250 = vmax.f32 %v1218, 0.0
      %v1251 = vmax.f32 %v1219, 0.0
      %v1252 = vmax.f32 %v1220, 0.0
      %v1253 = vmax.f32 %v1221, 0.0
      %v1254 = vmax.f32 %v1222, %v1226
      %v1255 = vmax.f32 %v1223, %v1227
      %v1256 = vmax.f32 %v1224, %v1228
      %v1257 = vmax.f32 %v1225, %v1229
      %v1258 = vmax.f32 %v1238, %v1242
      %v1259 = vmax.f32 %v1239, %v1243
      %v1260 = vmax.f32 %v1240, %v1244
      %v1261 = vmax.f32 %v1241, %v1245
      %v1262 = vmax.f32 %v1230, %v1234
      %v1263 = vmax.f32 %v1231, %v1235
      %v1264 = vmax.f32 %v1232, %v1236
      %v1265 = vmax.f32 %v1233, %v1237
      %v1266 = vmax.f32 %v1246, %v1250
      %v1267 = vmax.f32 %v1247, %v1251
      %v1268 = vmax.f32 %v1248, %v1252
      %v1269 = vmax.f32 %v1249, %v1253
      %v1270 = vmax.f32 %v1254, %v1262
      %v1271 = vmax.f32 %v1255, %v1263
      %v1272 = vmax.f32 %v1256, %v1264
      %v1273 = vmax.f32 %v1257, %v1265
      %v1274 = vmax.f32 %v1258, %v1266
      %v1275 = vmax.f32 %v1259, %v1267
      %v1276 = vmax.f32 %v1260, %v1268
      %v1277 = vmax.f32 %v1261, %v1269
      %v1278 = vpack.c.bf16 %v1271, %v1270
      %v1279 = vpack.c.bf16 %v1275, %v1274
      %1280 = vst [vmem:[%s257] sm:$0xff] %v1278
      %1281 = vst [vmem:[%s257 + $0x8] sm:$0xff] %v1279
      %v1282 = vpack.c.bf16 %v1273, %v1272
      %v1283 = vpack.c.bf16 %v1277, %v1276
      %s1284 = scalar_lea.vmem %s257, 16
      %1285 = vst [vmem:[%s1284] sm:$0xff] %v1282
      %1286 = vst [vmem:[%s1284 + $0x8] sm:$0xff] %v1283
      %p1287 = scmp.lt.s32.totalorder %s15, 1
      %s1288 = scalar_select %p1287, %s15, 1
      %s1289 = smul.addr %s1288, 8
      %s1290 = smul.addr %s1289, 4
      %s1291 = scalar_lea.vmem %s4, %s1290
      // Predicated region
      $region37: #{multimodal_forward.2} parent=35 // pred_check
        %p1292 = pneg %p137
      $region38: #{multimodal_forward.2} parent=35 // pred_check_branch
        %1294 = sbr.rel (%p1292) target = $region40
      $region39: #{multimodal_forward.2} parent=35 // pred_region
        _
      $region40: #{multimodal_forward.2} parent=35 // pred_fallthru
        _
    $region36: #{multimodal_forward.2} parent=5 // pred_fallthru
      _
    %p1295 = scmp.le.s32.totalorder 2, %s10
    // Predicated region
    $region41: #{multimodal_forward.2} parent=5 // pred_check
      %p1296 = pneg %p1295
    $region42: #{multimodal_forward.2} parent=5 // pred_check_branch
      %1298 = sbr.rel (%p1296) target = $region44
    $region43: #{multimodal_forward.2} parent=5 // pred_region
      %s1299 = ssub.s32 %s10, 2
      // Predicated region
      $region45: #{multimodal_forward.2} parent=43 // pred_check
        %p1300 = pneg %p143
      $region46: #{multimodal_forward.2} parent=43 // pred_check_branch
        %1302 = sbr.rel (%p1300) target = $region48
      $region47: #{multimodal_forward.2} parent=43 // pred_region
        %p1303 = scmp.lt.s32.totalorder %s16, 1
        %s1304 = scalar_select %p1303, %s16, 1
        %s1305 = smul.addr %s1304, 8
        %s1306 = smul.addr %s1305, 4
        %s1307 = scalar_lea.vmem %s4, %s1306
      $region48: #{multimodal_forward.2} parent=43 // pred_fallthru
        _
    $region44: #{multimodal_forward.2} parent=5 // pred_fallthru
      _
  $region6: #{multimodal_forward.2} parent=0 // loop_footer
    %s14 = sadd.s32 1, %s10
  $region7: #{multimodal_forward.2} parent=0 // loop_footer_branch
    %9 = sbr.rel target = $region3
  $region8: #{multimodal_forward.2} parent=0 // loop_exit
    _

// kernel: multimodal_forward.3
$region0: #{multimodal_forward.3}
  #allocation0 [shape = 'u32[]', space=smem, size = 0x4, offset = 0x4, fixed_abs, tag = 'smem constant byte address 0x4 - core index']
  #allocation1 [shape = 'u32[72,128]{1,0:T(1,128)}', space=vmem, size = 0x9000, scoped, tag = 'internal scratch']
  %s0 = inlined_call_operand.vmem [shape: bf16[2,2,4096], index: 0, kind: input, shape index: {}]
  %s1 = inlined_call_operand.vmem [shape: bf16[2,4096,128], index: 1, kind: input, shape index: {}]
  %s2 = inlined_call_operand.vmem [shape: f32[2,1,128], index: 2, kind: input, shape index: {}]
  %s3 = inlined_call_operand.vmem [shape: f32[128,128], index: 3, kind: input, shape index: {}]
  %s4 = inlined_call_operand.vmem [shape: f32[128,128], index: 4, kind: input, shape index: {}]
  %s5 = inlined_call_operand.vmem [shape: f32[1,128], index: 5, kind: input, shape index: {}]
  %s6 = inlined_call_operand.vmem [shape: f32[128,10], index: 6, kind: input, shape index: {}]
  %s7 = inlined_call_operand.vmem [shape: f32[1,10], index: 7, kind: input, shape index: {}]
  %s8 = inlined_call_operand.hbm [shape: f32[2,10], index: 8, kind: output, shape index: {}]
  %s9 = sld [smem:[#allocation0]]
  $region42: #{multimodal_forward.3} parent=0
    _
  %s11 = ssub.s32 1, %s9
  %s12 = scalar_select 0, %s11, %s9
  $region1: #{multimodal_forward.3} parent=0
    #allocation2 [shape = 'u8[1024]{0}', space=vmem, size = 0x400, scoped, tag = 'output window, operand 0, single buffered']
    #allocation3 [shape = 's32[1]{0}', space=sflag, size = 0x4, scoped, tag = 'scoped memory for multimodal_forward.3']
    %13 = vsyncpa [#allocation3], 0
    // Predicated region
    $region2: #{multimodal_forward.3} parent=1 // pred_check
      _
    $region3: #{multimodal_forward.3} parent=1 // pred_check_branch
      %15 = sbr.rel (0) target = $region5
    $region4: #{multimodal_forward.3} parent=1 // pred_region
      _
    $region5: #{multimodal_forward.3} parent=1 // pred_fallthru
      _
    // Predicated region
    $region6: #{multimodal_forward.3} parent=1 // pred_check
      _
    $region7: #{multimodal_forward.3} parent=1 // pred_check_branch
      %17 = sbr.rel (0) target = $region9
    $region8: #{multimodal_forward.3} parent=1 // pred_region
      _
    $region9: #{multimodal_forward.3} parent=1 // pred_fallthru
      _
    // Predicated region
    $region10: #{multimodal_forward.3} parent=1 // pred_check
      _
    $region11: #{multimodal_forward.3} parent=1 // pred_check_branch
      %19 = sbr.rel (0) target = $region13
    $region12: #{multimodal_forward.3} parent=1 // pred_region
      _
    $region13: #{multimodal_forward.3} parent=1 // pred_fallthru
      _
    // Predicated region
    $region14: #{multimodal_forward.3} parent=1 // pred_check
      _
    $region15: #{multimodal_forward.3} parent=1 // pred_check_branch
      %21 = sbr.rel (0) target = $region17
    $region16: #{multimodal_forward.3} parent=1 // pred_region
      _
    $region17: #{multimodal_forward.3} parent=1 // pred_fallthru
      _
    // Predicated region
    $region18: #{multimodal_forward.3} parent=1 // pred_check
      _
    $region19: #{multimodal_forward.3} parent=1 // pred_check_branch
      %23 = sbr.rel (0) target = $region21
    $region20: #{multimodal_forward.3} parent=1 // pred_region
      _
    $region21: #{multimodal_forward.3} parent=1 // pred_fallthru
      _
    // Predicated region
    $region22: #{multimodal_forward.3} parent=1 // pred_check
      _
    $region23: #{multimodal_forward.3} parent=1 // pred_check_branch
      %25 = sbr.rel (0) target = $region25
    $region24: #{multimodal_forward.3} parent=1 // pred_region
      _
    $region25: #{multimodal_forward.3} parent=1 // pred_fallthru
      _
    // Predicated region
    $region26: #{multimodal_forward.3} parent=1 // pred_check
      _
    $region27: #{multimodal_forward.3} parent=1 // pred_check_branch
      %27 = sbr.rel (0) target = $region29
    $region28: #{multimodal_forward.3} parent=1 // pred_region
      _
    $region29: #{multimodal_forward.3} parent=1 // pred_fallthru
      _
    // Predicated region
    $region30: #{multimodal_forward.3} parent=1 // pred_check
      _
    $region31: #{multimodal_forward.3} parent=1 // pred_check_branch
      %29 = sbr.rel (0) target = $region33
    $region32: #{multimodal_forward.3} parent=1 // pred_region
      _
    $region33: #{multimodal_forward.3} parent=1 // pred_fallthru
      _
    %v30 = vld [vmem:[%s0] sm:$0xff]
    %v31 = vld [vmem:[%s0 + $0x8] sm:$0xff]
    %v32 = vld [vmem:[%s0 + $0x10] sm:$0xff]
    %v33 = vld [vmem:[%s0 + $0x18] sm:$0xff]
    %v34 = vld [vmem:[%s1] sm:$0xf]
    %v35 = vld [vmem:[%s1 + $0x4] sm:$0xf]
    %v36 = vld [vmem:[%s1 + $0x8] sm:$0xf]
    %v37 = vld [vmem:[%s1 + $0xc] sm:$0xf]
    %v38 = vld [vmem:[%s1 + $0x10] sm:$0xf]
    %v39 = vld [vmem:[%s1 + $0x14] sm:$0xf]
    %v40 = vld [vmem:[%s1 + $0x18] sm:$0xf]
    %v41 = vld [vmem:[%s1 + $0x1c] sm:$0xf]
    %v42 = vld [vmem:[%s1 + $0x20] sm:$0xf]
    %v43 = vld [vmem:[%s1 + $0x24] sm:$0xf]
    %v44 = vld [vmem:[%s1 + $0x28] sm:$0xf]
    %v45 = vld [vmem:[%s1 + $0x2c] sm:$0xf]
    %v46 = vld [vmem:[%s1 + $0x30] sm:$0xf]
    %v47 = vld [vmem:[%s1 + $0x34] sm:$0xf]
    %v48 = vld [vmem:[%s1 + $0x38] sm:$0xf]
    %v49 = vld [vmem:[%s1 + $0x3c] sm:$0xf]
    %v50 = vld [vmem:[%s1 + $0x40] sm:$0xf]
    %v51 = vld [vmem:[%s1 + $0x44] sm:$0xf]
    %v52 = vld [vmem:[%s1 + $0x48] sm:$0xf]
    %v53 = vld [vmem:[%s1 + $0x4c] sm:$0xf]
    %v54 = vld [vmem:[%s1 + $0x50] sm:$0xf]
    %v55 = vld [vmem:[%s1 + $0x54] sm:$0xf]
    %v56 = vld [vmem:[%s1 + $0x58] sm:$0xf]
    %v57 = vld [vmem:[%s1 + $0x5c] sm:$0xf]
    %v58 = vld [vmem:[%s1 + $0x60] sm:$0xf]
    %v59 = vld [vmem:[%s1 + $0x64] sm:$0xf]
    %v60 = vld [vmem:[%s1 + $0x68] sm:$0xf]
    %v61 = vld [vmem:[%s1 + $0x6c] sm:$0xf]
    %v62 = vld [vmem:[%s1 + $0x70] sm:$0xf]
    %v63 = vld [vmem:[%s1 + $0x74] sm:$0xf]
    %v64 = vld [vmem:[%s1 + $0x78] sm:$0xf]
    %v65 = vld [vmem:[%s1 + $0x7c] sm:$0xf]
    %v66 = vld [vmem:[%s1 + $0x80] sm:$0xf]
    %v67 = vld [vmem:[%s1 + $0x84] sm:$0xf]
    %v68 = vld [vmem:[%s1 + $0x88] sm:$0xf]
    %v69 = vld [vmem:[%s1 + $0x8c] sm:$0xf]
    %v70 = vld [vmem:[%s1 + $0x90] sm:$0xf]
    %v71 = vld [vmem:[%s1 + $0x94] sm:$0xf]
    %v72 = vld [vmem:[%s1 + $0x98] sm:$0xf]
    %v73 = vld [vmem:[%s1 + $0x9c] sm:$0xf]
    %v74 = vld [vmem:[%s1 + $0xa0] sm:$0xf]
    %v75 = vld [vmem:[%s1 + $0xa4] sm:$0xf]
    %v76 = vld [vmem:[%s1 + $0xa8] sm:$0xf]
    %v77 = vld [vmem:[%s1 + $0xac] sm:$0xf]
    %v78 = vld [vmem:[%s1 + $0xb0] sm:$0xf]
    %v79 = vld [vmem:[%s1 + $0xb4] sm:$0xf]
    %v80 = vld [vmem:[%s1 + $0xb8] sm:$0xf]
    %v81 = vld [vmem:[%s1 + $0xbc] sm:$0xf]
    %v82 = vld [vmem:[%s1 + $0xc0] sm:$0xf]
    %v83 = vld [vmem:[%s1 + $0xc4] sm:$0xf]
    %v84 = vld [vmem:[%s1 + $0xc8] sm:$0xf]
    %v85 = vld [vmem:[%s1 + $0xcc] sm:$0xf]
    %v86 = vld [vmem:[%s1 + $0xd0] sm:$0xf]
    %v87 = vld [vmem:[%s1 + $0xd4] sm:$0xf]
    %v88 = vld [vmem:[%s1 + $0xd8] sm:$0xf]
    %v89 = vld [vmem:[%s1 + $0xdc] sm:$0xf]
    %v90 = vld [vmem:[%s1 + $0xe0] sm:$0xf]
    %v91 = vld [vmem:[%s1 + $0xe4] sm:$0xf]
    %v92 = vld [vmem:[%s1 + $0xe8] sm:$0xf]
    %v93 = vld [vmem:[%s1 + $0xec] sm:$0xf]
    %v94 = vld [vmem:[%s1 + $0xf0] sm:$0xf]
    %v95 = vld [vmem:[%s1 + $0xf4] sm:$0xf]
    %v96 = vld [vmem:[%s1 + $0xf8] sm:$0xf]
    %v97 = vld [vmem:[%s1 + $0xfc] sm:$0xf]
    %v98 = vld [vmem:[%s1 + $0x100] sm:$0xf]
    %v99 = vld [vmem:[%s1 + $0x104] sm:$0xf]
    %v100 = vld [vmem:[%s1 + $0x108] sm:$0xf]
    %v101 = vld [vmem:[%s1 + $0x10c] sm:$0xf]
    %v102 = vld [vmem:[%s1 + $0x110] sm:$0xf]
    %v103 = vld [vmem:[%s1 + $0x114] sm:$0xf]
    %v104 = vld [vmem:[%s1 + $0x118] sm:$0xf]
    %v105 = vld [vmem:[%s1 + $0x11c] sm:$0xf]
    %v106 = vld [vmem:[%s1 + $0x120] sm:$0xf]
    %v107 = vld [vmem:[%s1 + $0x124] sm:$0xf]
    %v108 = vld [vmem:[%s1 + $0x128] sm:$0xf]
    %v109 = vld [vmem:[%s1 + $0x12c] sm:$0xf]
    %v110 = vld [vmem:[%s1 + $0x130] sm:$0xf]
    %v111 = vld [vmem:[%s1 + $0x134] sm:$0xf]
    %v112 = vld [vmem:[%s1 + $0x138] sm:$0xf]
    %v113 = vld [vmem:[%s1 + $0x13c] sm:$0xf]
    %v114 = vld [vmem:[%s1 + $0x140] sm:$0xf]
    %v115 = vld [vmem:[%s1 + $0x144] sm:$0xf]
    %v116 = vld [vmem:[%s1 + $0x148] sm:$0xf]
    %v117 = vld [vmem:[%s1 + $0x14c] sm:$0xf]
    %v118 = vld [vmem:[%s1 + $0x150] sm:$0xf]
    %v119 = vld [vmem:[%s1 + $0x154] sm:$0xf]
    %v120 = vld [vmem:[%s1 + $0x158] sm:$0xf]
    %v121 = vld [vmem:[%s1 + $0x15c] sm:$0xf]
    %v122 = vld [vmem:[%s1 + $0x160] sm:$0xf]
    %v123 = vld [vmem:[%s1 + $0x164] sm:$0xf]
    %v124 = vld [vmem:[%s1 + $0x168] sm:$0xf]
    %v125 = vld [vmem:[%s1 + $0x16c] sm:$0xf]
    %v126 = vld [vmem:[%s1 + $0x170] sm:$0xf]
    %v127 = vld [vmem:[%s1 + $0x174] sm:$0xf]
    %v128 = vld [vmem:[%s1 + $0x178] sm:$0xf]
    %v129 = vld [vmem:[%s1 + $0x17c] sm:$0xf]
    %v130 = vld [vmem:[%s1 + $0x180] sm:$0xf]
    %v131 = vld [vmem:[%s1 + $0x184] sm:$0xf]
    %v132 = vld [vmem:[%s1 + $0x188] sm:$0xf]
    %v133 = vld [vmem:[%s1 + $0x18c] sm:$0xf]
    %v134 = vld [vmem:[%s1 + $0x190] sm:$0xf]
    %v135 = vld [vmem:[%s1 + $0x194] sm:$0xf]
    %v136 = vld [vmem:[%s1 + $0x198] sm:$0xf]
    %v137 = vld [vmem:[%s1 + $0x19c] sm:$0xf]
    %v138 = vld [vmem:[%s1 + $0x1a0] sm:$0xf]
    %v139 = vld [vmem:[%s1 + $0x1a4] sm:$0xf]
    %v140 = vld [vmem:[%s1 + $0x1a8] sm:$0xf]
    %v141 = vld [vmem:[%s1 + $0x1ac] sm:$0xf]
    %v142 = vld [vmem:[%s1 + $0x1b0] sm:$0xf]
    %v143 = vld [vmem:[%s1 + $0x1b4] sm:$0xf]
    %v144 = vld [vmem:[%s1 + $0x1b8] sm:$0xf]
    %v145 = vld [vmem:[%s1 + $0x1bc] sm:$0xf]
    %v146 = vld [vmem:[%s1 + $0x1c0] sm:$0xf]
    %v147 = vld [vmem:[%s1 + $0x1c4] sm:$0xf]
    %v148 = vld [vmem:[%s1 + $0x1c8] sm:$0xf]
    %v149 = vld [vmem:[%s1 + $0x1cc] sm:$0xf]
    %v150 = vld [vmem:[%s1 + $0x1d0] sm:$0xf]
    %v151 = vld [vmem:[%s1 + $0x1d4] sm:$0xf]
    %v152 = vld [vmem:[%s1 + $0x1d8] sm:$0xf]
    %v153 = vld [vmem:[%s1 + $0x1dc] sm:$0xf]
    %v154 = vld [vmem:[%s1 + $0x1e0] sm:$0xf]
    %v155 = vld [vmem:[%s1 + $0x1e4] sm:$0xf]
    %v156 = vld [vmem:[%s1 + $0x1e8] sm:$0xf]
    %v157 = vld [vmem:[%s1 + $0x1ec] sm:$0xf]
    %v158 = vld [vmem:[%s1 + $0x1f0] sm:$0xf]
    %v159 = vld [vmem:[%s1 + $0x1f4] sm:$0xf]
    %v160 = vld [vmem:[%s1 + $0x1f8] sm:$0xf]
    %v161 = vld [vmem:[%s1 + $0x1fc] sm:$0xf]
    %v162 = vld [vmem:[%s1 + $0x200] sm:$0xf]
    %v163 = vld [vmem:[%s1 + $0x204] sm:$0xf]
    %v164 = vld [vmem:[%s1 + $0x208] sm:$0xf]
    %v165 = vld [vmem:[%s1 + $0x20c] sm:$0xf]
    %v166 = vld [vmem:[%s1 + $0x210] sm:$0xf]
    %v167 = vld [vmem:[%s1 + $0x214] sm:$0xf]
    %v168 = vld [vmem:[%s1 + $0x218] sm:$0xf]
    %v169 = vld [vmem:[%s1 + $0x21c] sm:$0xf]
    %v170 = vld [vmem:[%s1 + $0x220] sm:$0xf]
    %v171 = vld [vmem:[%s1 + $0x224] sm:$0xf]
    %v172 = vld [vmem:[%s1 + $0x228] sm:$0xf]
    %v173 = vld [vmem:[%s1 + $0x22c] sm:$0xf]
    %v174 = vld [vmem:[%s1 + $0x230] sm:$0xf]
    %v175 = vld [vmem:[%s1 + $0x234] sm:$0xf]
    %v176 = vld [vmem:[%s1 + $0x238] sm:$0xf]
    %v177 = vld [vmem:[%s1 + $0x23c] sm:$0xf]
    %v178 = vld [vmem:[%s1 + $0x240] sm:$0xf]
    %v179 = vld [vmem:[%s1 + $0x244] sm:$0xf]
    %v180 = vld [vmem:[%s1 + $0x248] sm:$0xf]
    %v181 = vld [vmem:[%s1 + $0x24c] sm:$0xf]
    %v182 = vld [vmem:[%s1 + $0x250] sm:$0xf]
    %v183 = vld [vmem:[%s1 + $0x254] sm:$0xf]
    %v184 = vld [vmem:[%s1 + $0x258] sm:$0xf]
    %v185 = vld [vmem:[%s1 + $0x25c] sm:$0xf]
    %v186 = vld [vmem:[%s1 + $0x260] sm:$0xf]
    %v187 = vld [vmem:[%s1 + $0x264] sm:$0xf]
    %v188 = vld [vmem:[%s1 + $0x268] sm:$0xf]
    %v189 = vld [vmem:[%s1 + $0x26c] sm:$0xf]
    %v190 = vld [vmem:[%s1 + $0x270] sm:$0xf]
    %v191 = vld [vmem:[%s1 + $0x274] sm:$0xf]
    %v192 = vld [vmem:[%s1 + $0x278] sm:$0xf]
    %v193 = vld [vmem:[%s1 + $0x27c] sm:$0xf]
    %v194 = vld [vmem:[%s1 + $0x280] sm:$0xf]
    %v195 = vld [vmem:[%s1 + $0x284] sm:$0xf]
    %v196 = vld [vmem:[%s1 + $0x288] sm:$0xf]
    %v197 = vld [vmem:[%s1 + $0x28c] sm:$0xf]
    %v198 = vld [vmem:[%s1 + $0x290] sm:$0xf]
    %v199 = vld [vmem:[%s1 + $0x294] sm:$0xf]
    %v200 = vld [vmem:[%s1 + $0x298] sm:$0xf]
    %v201 = vld [vmem:[%s1 + $0x29c] sm:$0xf]
    %v202 = vld [vmem:[%s1 + $0x2a0] sm:$0xf]
    %v203 = vld [vmem:[%s1 + $0x2a4] sm:$0xf]
    %v204 = vld [vmem:[%s1 + $0x2a8] sm:$0xf]
    %v205 = vld [vmem:[%s1 + $0x2ac] sm:$0xf]
    %v206 = vld [vmem:[%s1 + $0x2b0] sm:$0xf]
    %v207 = vld [vmem:[%s1 + $0x2b4] sm:$0xf]
    %v208 = vld [vmem:[%s1 + $0x2b8] sm:$0xf]
    %v209 = vld [vmem:[%s1 + $0x2bc] sm:$0xf]
    %v210 = vld [vmem:[%s1 + $0x2c0] sm:$0xf]
    %v211 = vld [vmem:[%s1 + $0x2c4] sm:$0xf]
    %v212 = vld [vmem:[%s1 + $0x2c8] sm:$0xf]
    %v213 = vld [vmem:[%s1 + $0x2cc] sm:$0xf]
    %v214 = vld [vmem:[%s1 + $0x2d0] sm:$0xf]
    %v215 = vld [vmem:[%s1 + $0x2d4] sm:$0xf]
    %v216 = vld [vmem:[%s1 + $0x2d8] sm:$0xf]
    %v217 = vld [vmem:[%s1 + $0x2dc] sm:$0xf]
    %v218 = vld [vmem:[%s1 + $0x2e0] sm:$0xf]
    %v219 = vld [vmem:[%s1 + $0x2e4] sm:$0xf]
    %v220 = vld [vmem:[%s1 + $0x2e8] sm:$0xf]
    %v221 = vld [vmem:[%s1 + $0x2ec] sm:$0xf]
    %v222 = vld [vmem:[%s1 + $0x2f0] sm:$0xf]
    %v223 = vld [vmem:[%s1 + $0x2f4] sm:$0xf]
    %v224 = vld [vmem:[%s1 + $0x2f8] sm:$0xf]
    %v225 = vld [vmem:[%s1 + $0x2fc] sm:$0xf]
    %v226 = vld [vmem:[%s1 + $0x300] sm:$0xf]
    %v227 = vld [vmem:[%s1 + $0x304] sm:$0xf]
    %v228 = vld [vmem:[%s1 + $0x308] sm:$0xf]
    %v229 = vld [vmem:[%s1 + $0x30c] sm:$0xf]
    %v230 = vld [vmem:[%s1 + $0x310] sm:$0xf]
    %v231 = vld [vmem:[%s1 + $0x314] sm:$0xf]
    %v232 = vld [vmem:[%s1 + $0x318] sm:$0xf]
    %v233 = vld [vmem:[%s1 + $0x31c] sm:$0xf]
    %v234 = vld [vmem:[%s1 + $0x320] sm:$0xf]
    %v235 = vld [vmem:[%s1 + $0x324] sm:$0xf]
    %v236 = vld [vmem:[%s1 + $0x328] sm:$0xf]
    %v237 = vld [vmem:[%s1 + $0x32c] sm:$0xf]
    %v238 = vld [vmem:[%s1 + $0x330] sm:$0xf]
    %v239 = vld [vmem:[%s1 + $0x334] sm:$0xf]
    %v240 = vld [vmem:[%s1 + $0x338] sm:$0xf]
    %v241 = vld [vmem:[%s1 + $0x33c] sm:$0xf]
    %v242 = vld [vmem:[%s1 + $0x340] sm:$0xf]
    %v243 = vld [vmem:[%s1 + $0x344] sm:$0xf]
    %v244 = vld [vmem:[%s1 + $0x348] sm:$0xf]
    %v245 = vld [vmem:[%s1 + $0x34c] sm:$0xf]
    %v246 = vld [vmem:[%s1 + $0x350] sm:$0xf]
    %v247 = vld [vmem:[%s1 + $0x354] sm:$0xf]
    %v248 = vld [vmem:[%s1 + $0x358] sm:$0xf]
    %v249 = vld [vmem:[%s1 + $0x35c] sm:$0xf]
    %v250 = vld [vmem:[%s1 + $0x360] sm:$0xf]
    %v251 = vld [vmem:[%s1 + $0x364] sm:$0xf]
    %v252 = vld [vmem:[%s1 + $0x368] sm:$0xf]
    %v253 = vld [vmem:[%s1 + $0x36c] sm:$0xf]
    %v254 = vld [vmem:[%s1 + $0x370] sm:$0xf]
    %v255 = vld [vmem:[%s1 + $0x374] sm:$0xf]
    %v256 = vld [vmem:[%s1 + $0x378] sm:$0xf]
    %v257 = vld [vmem:[%s1 + $0x37c] sm:$0xf]
    %v258 = vld [vmem:[%s1 + $0x380] sm:$0xf]
    %v259 = vld [vmem:[%s1 + $0x384] sm:$0xf]
    %v260 = vld [vmem:[%s1 + $0x388] sm:$0xf]
    %v261 = vld [vmem:[%s1 + $0x38c] sm:$0xf]
    %v262 = vld [vmem:[%s1 + $0x390] sm:$0xf]
    %v263 = vld [vmem:[%s1 + $0x394] sm:$0xf]
    %v264 = vld [vmem:[%s1 + $0x398] sm:$0xf]
    %v265 = vld [vmem:[%s1 + $0x39c] sm:$0xf]
    %v266 = vld [vmem:[%s1 + $0x3a0] sm:$0xf]
    %v267 = vld [vmem:[%s1 + $0x3a4] sm:$0xf]
    %v268 = vld [vmem:[%s1 + $0x3a8] sm:$0xf]
    %v269 = vld [vmem:[%s1 + $0x3ac] sm:$0xf]
    %v270 = vld [vmem:[%s1 + $0x3b0] sm:$0xf]
    %v271 = vld [vmem:[%s1 + $0x3b4] sm:$0xf]
    %v272 = vld [vmem:[%s1 + $0x3b8] sm:$0xf]
    %v273 = vld [vmem:[%s1 + $0x3bc] sm:$0xf]
    %v274 = vld [vmem:[%s1 + $0x3c0] sm:$0xf]
    %v275 = vld [vmem:[%s1 + $0x3c4] sm:$0xf]
    %v276 = vld [vmem:[%s1 + $0x3c8] sm:$0xf]
    %v277 = vld [vmem:[%s1 + $0x3cc] sm:$0xf]
    %v278 = vld [vmem:[%s1 + $0x3d0] sm:$0xf]
    %v279 = vld [vmem:[%s1 + $0x3d4] sm:$0xf]
    %v280 = vld [vmem:[%s1 + $0x3d8] sm:$0xf]
    %v281 = vld [vmem:[%s1 + $0x3dc] sm:$0xf]
    %v282 = vld [vmem:[%s1 + $0x3e0] sm:$0xf]
    %v283 = vld [vmem:[%s1 + $0x3e4] sm:$0xf]
    %v284 = vld [vmem:[%s1 + $0x3e8] sm:$0xf]
    %v285 = vld [vmem:[%s1 + $0x3ec] sm:$0xf]
    %v286 = vld [vmem:[%s1 + $0x3f0] sm:$0xf]
    %v287 = vld [vmem:[%s1 + $0x3f4] sm:$0xf]
    %v288 = vld [vmem:[%s1 + $0x3f8] sm:$0xf]
    %v289 = vld [vmem:[%s1 + $0x3fc] sm:$0xf]
    %v290 = vld [vmem:[%s1 + $0x400] sm:$0xf]
    %v291 = vld [vmem:[%s1 + $0x404] sm:$0xf]
    %v292 = vld [vmem:[%s1 + $0x408] sm:$0xf]
    %v293 = vld [vmem:[%s1 + $0x40c] sm:$0xf]
    %v294 = vld [vmem:[%s1 + $0x410] sm:$0xf]
    %v295 = vld [vmem:[%s1 + $0x414] sm:$0xf]
    %v296 = vld [vmem:[%s1 + $0x418] sm:$0xf]
    %v297 = vld [vmem:[%s1 + $0x41c] sm:$0xf]
    %v298 = vld [vmem:[%s1 + $0x420] sm:$0xf]
    %v299 = vld [vmem:[%s1 + $0x424] sm:$0xf]
    %v300 = vld [vmem:[%s1 + $0x428] sm:$0xf]
    %v301 = vld [vmem:[%s1 + $0x42c] sm:$0xf]
    %v302 = vld [vmem:[%s1 + $0x430] sm:$0xf]
    %v303 = vld [vmem:[%s1 + $0x434] sm:$0xf]
    %v304 = vld [vmem:[%s1 + $0x438] sm:$0xf]
    %v305 = vld [vmem:[%s1 + $0x43c] sm:$0xf]
    %v306 = vld [vmem:[%s1 + $0x440] sm:$0xf]
    %v307 = vld [vmem:[%s1 + $0x444] sm:$0xf]
    %v308 = vld [vmem:[%s1 + $0x448] sm:$0xf]
    %v309 = vld [vmem:[%s1 + $0x44c] sm:$0xf]
    %v310 = vld [vmem:[%s1 + $0x450] sm:$0xf]
    %v311 = vld [vmem:[%s1 + $0x454] sm:$0xf]
    %v312 = vld [vmem:[%s1 + $0x458] sm:$0xf]
    %v313 = vld [vmem:[%s1 + $0x45c] sm:$0xf]
    %v314 = vld [vmem:[%s1 + $0x460] sm:$0xf]
    %v315 = vld [vmem:[%s1 + $0x464] sm:$0xf]
    %v316 = vld [vmem:[%s1 + $0x468] sm:$0xf]
    %v317 = vld [vmem:[%s1 + $0x46c] sm:$0xf]
    %v318 = vld [vmem:[%s1 + $0x470] sm:$0xf]
    %v319 = vld [vmem:[%s1 + $0x474] sm:$0xf]
    %v320 = vld [vmem:[%s1 + $0x478] sm:$0xf]
    %v321 = vld [vmem:[%s1 + $0x47c] sm:$0xf]
    %v322 = vld [vmem:[%s1 + $0x480] sm:$0xf]
    %v323 = vld [vmem:[%s1 + $0x484] sm:$0xf]
    %v324 = vld [vmem:[%s1 + $0x488] sm:$0xf]
    %v325 = vld [vmem:[%s1 + $0x48c] sm:$0xf]
    %v326 = vld [vmem:[%s1 + $0x490] sm:$0xf]
    %v327 = vld [vmem:[%s1 + $0x494] sm:$0xf]
    %v328 = vld [vmem:[%s1 + $0x498] sm:$0xf]
    %v329 = vld [vmem:[%s1 + $0x49c] sm:$0xf]
    %v330 = vld [vmem:[%s1 + $0x4a0] sm:$0xf]
    %v331 = vld [vmem:[%s1 + $0x4a4] sm:$0xf]
    %v332 = vld [vmem:[%s1 + $0x4a8] sm:$0xf]
    %v333 = vld [vmem:[%s1 + $0x4ac] sm:$0xf]
    %v334 = vld [vmem:[%s1 + $0x4b0] sm:$0xf]
    %v335 = vld [vmem:[%s1 + $0x4b4] sm:$0xf]
    %v336 = vld [vmem:[%s1 + $0x4b8] sm:$0xf]
    %v337 = vld [vmem:[%s1 + $0x4bc] sm:$0xf]
    %v338 = vld [vmem:[%s1 + $0x4c0] sm:$0xf]
    %v339 = vld [vmem:[%s1 + $0x4c4] sm:$0xf]
    %v340 = vld [vmem:[%s1 + $0x4c8] sm:$0xf]
    %v341 = vld [vmem:[%s1 + $0x4cc] sm:$0xf]
    %v342 = vld [vmem:[%s1 + $0x4d0] sm:$0xf]
    %v343 = vld [vmem:[%s1 + $0x4d4] sm:$0xf]
    %v344 = vld [vmem:[%s1 + $0x4d8] sm:$0xf]
    %v345 = vld [vmem:[%s1 + $0x4dc] sm:$0xf]
    %v346 = vld [vmem:[%s1 + $0x4e0] sm:$0xf]
    %v347 = vld [vmem:[%s1 + $0x4e4] sm:$0xf]
    %v348 = vld [vmem:[%s1 + $0x4e8] sm:$0xf]
    %v349 = vld [vmem:[%s1 + $0x4ec] sm:$0xf]
    %v350 = vld [vmem:[%s1 + $0x4f0] sm:$0xf]
    %v351 = vld [vmem:[%s1 + $0x4f4] sm:$0xf]
    %v352 = vld [vmem:[%s1 + $0x4f8] sm:$0xf]
    %v353 = vld [vmem:[%s1 + $0x4fc] sm:$0xf]
    %v354 = vld [vmem:[%s1 + $0x500] sm:$0xf]
    %v355 = vld [vmem:[%s1 + $0x504] sm:$0xf]
    %v356 = vld [vmem:[%s1 + $0x508] sm:$0xf]
    %v357 = vld [vmem:[%s1 + $0x50c] sm:$0xf]
    %v358 = vld [vmem:[%s1 + $0x510] sm:$0xf]
    %v359 = vld [vmem:[%s1 + $0x514] sm:$0xf]
    %v360 = vld [vmem:[%s1 + $0x518] sm:$0xf]
    %v361 = vld [vmem:[%s1 + $0x51c] sm:$0xf]
    %v362 = vld [vmem:[%s1 + $0x520] sm:$0xf]
    %v363 = vld [vmem:[%s1 + $0x524] sm:$0xf]
    %v364 = vld [vmem:[%s1 + $0x528] sm:$0xf]
    %v365 = vld [vmem:[%s1 + $0x52c] sm:$0xf]
    %v366 = vld [vmem:[%s1 + $0x530] sm:$0xf]
    %v367 = vld [vmem:[%s1 + $0x534] sm:$0xf]
    %v368 = vld [vmem:[%s1 + $0x538] sm:$0xf]
    %v369 = vld [vmem:[%s1 + $0x53c] sm:$0xf]
    %v370 = vld [vmem:[%s1 + $0x540] sm:$0xf]
    %v371 = vld [vmem:[%s1 + $0x544] sm:$0xf]
    %v372 = vld [vmem:[%s1 + $0x548] sm:$0xf]
    %v373 = vld [vmem:[%s1 + $0x54c] sm:$0xf]
    %v374 = vld [vmem:[%s1 + $0x550] sm:$0xf]
    %v375 = vld [vmem:[%s1 + $0x554] sm:$0xf]
    %v376 = vld [vmem:[%s1 + $0x558] sm:$0xf]
    %v377 = vld [vmem:[%s1 + $0x55c] sm:$0xf]
    %v378 = vld [vmem:[%s1 + $0x560] sm:$0xf]
    %v379 = vld [vmem:[%s1 + $0x564] sm:$0xf]
    %v380 = vld [vmem:[%s1 + $0x568] sm:$0xf]
    %v381 = vld [vmem:[%s1 + $0x56c] sm:$0xf]
    %v382 = vld [vmem:[%s1 + $0x570] sm:$0xf]
    %v383 = vld [vmem:[%s1 + $0x574] sm:$0xf]
    %v384 = vld [vmem:[%s1 + $0x578] sm:$0xf]
    %v385 = vld [vmem:[%s1 + $0x57c] sm:$0xf]
    %v386 = vld [vmem:[%s1 + $0x580] sm:$0xf]
    %v387 = vld [vmem:[%s1 + $0x584] sm:$0xf]
    %v388 = vld [vmem:[%s1 + $0x588] sm:$0xf]
    %v389 = vld [vmem:[%s1 + $0x58c] sm:$0xf]
    %v390 = vld [vmem:[%s1 + $0x590] sm:$0xf]
    %v391 = vld [vmem:[%s1 + $0x594] sm:$0xf]
    %v392 = vld [vmem:[%s1 + $0x598] sm:$0xf]
    %v393 = vld [vmem:[%s1 + $0x59c] sm:$0xf]
    %v394 = vld [vmem:[%s1 + $0x5a0] sm:$0xf]
    %v395 = vld [vmem:[%s1 + $0x5a4] sm:$0xf]
    %v396 = vld [vmem:[%s1 + $0x5a8] sm:$0xf]
    %v397 = vld [vmem:[%s1 + $0x5ac] sm:$0xf]
    %v398 = vld [vmem:[%s1 + $0x5b0] sm:$0xf]
    %v399 = vld [vmem:[%s1 + $0x5b4] sm:$0xf]
    %v400 = vld [vmem:[%s1 + $0x5b8] sm:$0xf]
    %v401 = vld [vmem:[%s1 + $0x5bc] sm:$0xf]
    %v402 = vld [vmem:[%s1 + $0x5c0] sm:$0xf]
    %v403 = vld [vmem:[%s1 + $0x5c4] sm:$0xf]
    %v404 = vld [vmem:[%s1 + $0x5c8] sm:$0xf]
    %v405 = vld [vmem:[%s1 + $0x5cc] sm:$0xf]
    %v406 = vld [vmem:[%s1 + $0x5d0] sm:$0xf]
    %v407 = vld [vmem:[%s1 + $0x5d4] sm:$0xf]
    %v408 = vld [vmem:[%s1 + $0x5d8] sm:$0xf]
    %v409 = vld [vmem:[%s1 + $0x5dc] sm:$0xf]
    %v410 = vld [vmem:[%s1 + $0x5e0] sm:$0xf]
    %v411 = vld [vmem:[%s1 + $0x5e4] sm:$0xf]
    %v412 = vld [vmem:[%s1 + $0x5e8] sm:$0xf]
    %v413 = vld [vmem:[%s1 + $0x5ec] sm:$0xf]
    %v414 = vld [vmem:[%s1 + $0x5f0] sm:$0xf]
    %v415 = vld [vmem:[%s1 + $0x5f4] sm:$0xf]
    %v416 = vld [vmem:[%s1 + $0x5f8] sm:$0xf]
    %v417 = vld [vmem:[%s1 + $0x5fc] sm:$0xf]
    %v418 = vld [vmem:[%s1 + $0x600] sm:$0xf]
    %v419 = vld [vmem:[%s1 + $0x604] sm:$0xf]
    %v420 = vld [vmem:[%s1 + $0x608] sm:$0xf]
    %v421 = vld [vmem:[%s1 + $0x60c] sm:$0xf]
    %v422 = vld [vmem:[%s1 + $0x610] sm:$0xf]
    %v423 = vld [vmem:[%s1 + $0x614] sm:$0xf]
    %v424 = vld [vmem:[%s1 + $0x618] sm:$0xf]
    %v425 = vld [vmem:[%s1 + $0x61c] sm:$0xf]
    %v426 = vld [vmem:[%s1 + $0x620] sm:$0xf]
    %v427 = vld [vmem:[%s1 + $0x624] sm:$0xf]
    %v428 = vld [vmem:[%s1 + $0x628] sm:$0xf]
    %v429 = vld [vmem:[%s1 + $0x62c] sm:$0xf]
    %v430 = vld [vmem:[%s1 + $0x630] sm:$0xf]
    %v431 = vld [vmem:[%s1 + $0x634] sm:$0xf]
    %v432 = vld [vmem:[%s1 + $0x638] sm:$0xf]
    %v433 = vld [vmem:[%s1 + $0x63c] sm:$0xf]
    %v434 = vld [vmem:[%s1 + $0x640] sm:$0xf]
    %v435 = vld [vmem:[%s1 + $0x644] sm:$0xf]
    %v436 = vld [vmem:[%s1 + $0x648] sm:$0xf]
    %v437 = vld [vmem:[%s1 + $0x64c] sm:$0xf]
    %v438 = vld [vmem:[%s1 + $0x650] sm:$0xf]
    %v439 = vld [vmem:[%s1 + $0x654] sm:$0xf]
    %v440 = vld [vmem:[%s1 + $0x658] sm:$0xf]
    %v441 = vld [vmem:[%s1 + $0x65c] sm:$0xf]
    %v442 = vld [vmem:[%s1 + $0x660] sm:$0xf]
    %v443 = vld [vmem:[%s1 + $0x664] sm:$0xf]
    %v444 = vld [vmem:[%s1 + $0x668] sm:$0xf]
    %v445 = vld [vmem:[%s1 + $0x66c] sm:$0xf]
    %v446 = vld [vmem:[%s1 + $0x670] sm:$0xf]
    %v447 = vld [vmem:[%s1 + $0x674] sm:$0xf]
    %v448 = vld [vmem:[%s1 + $0x678] sm:$0xf]
    %v449 = vld [vmem:[%s1 + $0x67c] sm:$0xf]
    %v450 = vld [vmem:[%s1 + $0x680] sm:$0xf]
    %v451 = vld [vmem:[%s1 + $0x684] sm:$0xf]
    %v452 = vld [vmem:[%s1 + $0x688] sm:$0xf]
    %v453 = vld [vmem:[%s1 + $0x68c] sm:$0xf]
    %v454 = vld [vmem:[%s1 + $0x690] sm:$0xf]
    %v455 = vld [vmem:[%s1 + $0x694] sm:$0xf]
    %v456 = vld [vmem:[%s1 + $0x698] sm:$0xf]
    %v457 = vld [vmem:[%s1 + $0x69c] sm:$0xf]
    %v458 = vld [vmem:[%s1 + $0x6a0] sm:$0xf]
    %v459 = vld [vmem:[%s1 + $0x6a4] sm:$0xf]
    %v460 = vld [vmem:[%s1 + $0x6a8] sm:$0xf]
    %v461 = vld [vmem:[%s1 + $0x6ac] sm:$0xf]
    %v462 = vld [vmem:[%s1 + $0x6b0] sm:$0xf]
    %v463 = vld [vmem:[%s1 + $0x6b4] sm:$0xf]
    %v464 = vld [vmem:[%s1 + $0x6b8] sm:$0xf]
    %v465 = vld [vmem:[%s1 + $0x6bc] sm:$0xf]
    %v466 = vld [vmem:[%s1 + $0x6c0] sm:$0xf]
    %v467 = vld [vmem:[%s1 + $0x6c4] sm:$0xf]
    %v468 = vld [vmem:[%s1 + $0x6c8] sm:$0xf]
    %v469 = vld [vmem:[%s1 + $0x6cc] sm:$0xf]
    %v470 = vld [vmem:[%s1 + $0x6d0] sm:$0xf]
    %v471 = vld [vmem:[%s1 + $0x6d4] sm:$0xf]
    %v472 = vld [vmem:[%s1 + $0x6d8] sm:$0xf]
    %v473 = vld [vmem:[%s1 + $0x6dc] sm:$0xf]
    %v474 = vld [vmem:[%s1 + $0x6e0] sm:$0xf]
    %v475 = vld [vmem:[%s1 + $0x6e4] sm:$0xf]
    %v476 = vld [vmem:[%s1 + $0x6e8] sm:$0xf]
    %v477 = vld [vmem:[%s1 + $0x6ec] sm:$0xf]
    %v478 = vld [vmem:[%s1 + $0x6f0] sm:$0xf]
    %v479 = vld [vmem:[%s1 + $0x6f4] sm:$0xf]
    %v480 = vld [vmem:[%s1 + $0x6f8] sm:$0xf]
    %v481 = vld [vmem:[%s1 + $0x6fc] sm:$0xf]
    %v482 = vld [vmem:[%s1 + $0x700] sm:$0xf]
    %v483 = vld [vmem:[%s1 + $0x704] sm:$0xf]
    %v484 = vld [vmem:[%s1 + $0x708] sm:$0xf]
    %v485 = vld [vmem:[%s1 + $0x70c] sm:$0xf]
    %v486 = vld [vmem:[%s1 + $0x710] sm:$0xf]
    %v487 = vld [vmem:[%s1 + $0x714] sm:$0xf]
    %v488 = vld [vmem:[%s1 + $0x718] sm:$0xf]
    %v489 = vld [vmem:[%s1 + $0x71c] sm:$0xf]
    %v490 = vld [vmem:[%s1 + $0x720] sm:$0xf]
    %v491 = vld [vmem:[%s1 + $0x724] sm:$0xf]
    %v492 = vld [vmem:[%s1 + $0x728] sm:$0xf]
    %v493 = vld [vmem:[%s1 + $0x72c] sm:$0xf]
    %v494 = vld [vmem:[%s1 + $0x730] sm:$0xf]
    %v495 = vld [vmem:[%s1 + $0x734] sm:$0xf]
    %v496 = vld [vmem:[%s1 + $0x738] sm:$0xf]
    %v497 = vld [vmem:[%s1 + $0x73c] sm:$0xf]
    %v498 = vld [vmem:[%s1 + $0x740] sm:$0xf]
    %v499 = vld [vmem:[%s1 + $0x744] sm:$0xf]
    %v500 = vld [vmem:[%s1 + $0x748] sm:$0xf]
    %v501 = vld [vmem:[%s1 + $0x74c] sm:$0xf]
    %v502 = vld [vmem:[%s1 + $0x750] sm:$0xf]
    %v503 = vld [vmem:[%s1 + $0x754] sm:$0xf]
    %v504 = vld [vmem:[%s1 + $0x758] sm:$0xf]
    %v505 = vld [vmem:[%s1 + $0x75c] sm:$0xf]
    %v506 = vld [vmem:[%s1 + $0x760] sm:$0xf]
    %v507 = vld [vmem:[%s1 + $0x764] sm:$0xf]
    %v508 = vld [vmem:[%s1 + $0x768] sm:$0xf]
    %v509 = vld [vmem:[%s1 + $0x76c] sm:$0xf]
    %v510 = vld [vmem:[%s1 + $0x770] sm:$0xf]
    %v511 = vld [vmem:[%s1 + $0x774] sm:$0xf]
    %v512 = vld [vmem:[%s1 + $0x778] sm:$0xf]
    %v513 = vld [vmem:[%s1 + $0x77c] sm:$0xf]
    %v514 = vld [vmem:[%s1 + $0x780] sm:$0xf]
    %v515 = vld [vmem:[%s1 + $0x784] sm:$0xf]
    %v516 = vld [vmem:[%s1 + $0x788] sm:$0xf]
    %v517 = vld [vmem:[%s1 + $0x78c] sm:$0xf]
    %v518 = vld [vmem:[%s1 + $0x790] sm:$0xf]
    %v519 = vld [vmem:[%s1 + $0x794] sm:$0xf]
    %v520 = vld [vmem:[%s1 + $0x798] sm:$0xf]
    %v521 = vld [vmem:[%s1 + $0x79c] sm:$0xf]
    %v522 = vld [vmem:[%s1 + $0x7a0] sm:$0xf]
    %v523 = vld [vmem:[%s1 + $0x7a4] sm:$0xf]
    %v524 = vld [vmem:[%s1 + $0x7a8] sm:$0xf]
    %v525 = vld [vmem:[%s1 + $0x7ac] sm:$0xf]
    %v526 = vld [vmem:[%s1 + $0x7b0] sm:$0xf]
    %v527 = vld [vmem:[%s1 + $0x7b4] sm:$0xf]
    %v528 = vld [vmem:[%s1 + $0x7b8] sm:$0xf]
    %v529 = vld [vmem:[%s1 + $0x7bc] sm:$0xf]
    %v530 = vld [vmem:[%s1 + $0x7c0] sm:$0xf]
    %v531 = vld [vmem:[%s1 + $0x7c4] sm:$0xf]
    %v532 = vld [vmem:[%s1 + $0x7c8] sm:$0xf]
    %v533 = vld [vmem:[%s1 + $0x7cc] sm:$0xf]
    %v534 = vld [vmem:[%s1 + $0x7d0] sm:$0xf]
    %v535 = vld [vmem:[%s1 + $0x7d4] sm:$0xf]
    %v536 = vld [vmem:[%s1 + $0x7d8] sm:$0xf]
    %v537 = vld [vmem:[%s1 + $0x7dc] sm:$0xf]
    %v538 = vld [vmem:[%s1 + $0x7e0] sm:$0xf]
    %v539 = vld [vmem:[%s1 + $0x7e4] sm:$0xf]
    %v540 = vld [vmem:[%s1 + $0x7e8] sm:$0xf]
    %v541 = vld [vmem:[%s1 + $0x7ec] sm:$0xf]
    %v542 = vld [vmem:[%s1 + $0x7f0] sm:$0xf]
    %v543 = vld [vmem:[%s1 + $0x7f4] sm:$0xf]
    %v544 = vld [vmem:[%s1 + $0x7f8] sm:$0xf]
    %v545 = vld [vmem:[%s1 + $0x7fc] sm:$0xf]
    %v546 = vld [vmem:[%s2] sm:$0x1]
    %v548 = vperm.slane %v546, 0
    %551 = vst [vmem:[#allocation1] ss:$9 sm:$0xff] %v30
    %v552 = vld [vmem:[#allocation1] sm:$0xff]
    %v553 = vld [vmem:[#allocation1 + $0x9] sm:$0xff]
    %v554 = vld [vmem:[#allocation1 + $0x12] sm:$0xff]
    %v555 = vld [vmem:[#allocation1 + $0x1b] sm:$0xff]
    %v556 = vld [vmem:[#allocation1 + $0x24] sm:$0xff]
    %v557 = vld [vmem:[#allocation1 + $0x2d] sm:$0xff]
    %v558 = vld [vmem:[#allocation1 + $0x36] sm:$0xff]
    %v559 = vld [vmem:[#allocation1 + $0x3f] sm:$0xff]
    %561 = vst [vmem:[#allocation1] ss:$9 sm:$0xff] %v31
    %v562 = vld [vmem:[#allocation1] sm:$0xff]
    %v563 = vld [vmem:[#allocation1 + $0x9] sm:$0xff]
    %v564 = vld [vmem:[#allocation1 + $0x12] sm:$0xff]
    %v565 = vld [vmem:[#allocation1 + $0x1b] sm:$0xff]
    %v566 = vld [vmem:[#allocation1 + $0x24] sm:$0xff]
    %v567 = vld [vmem:[#allocation1 + $0x2d] sm:$0xff]
    %v568 = vld [vmem:[#allocation1 + $0x36] sm:$0xff]
    %v569 = vld [vmem:[#allocation1 + $0x3f] sm:$0xff]
    %571 = vst [vmem:[#allocation1] ss:$9 sm:$0xff] %v32
    %v572 = vld [vmem:[#allocation1] sm:$0xff]
    %v573 = vld [vmem:[#allocation1 + $0x9] sm:$0xff]
    %v574 = vld [vmem:[#allocation1 + $0x12] sm:$0xff]
    %v575 = vld [vmem:[#allocation1 + $0x1b] sm:$0xff]
    %v576 = vld [vmem:[#allocation1 + $0x24] sm:$0xff]
    %v577 = vld [vmem:[#allocation1 + $0x2d] sm:$0xff]
    %v578 = vld [vmem:[#allocation1 + $0x36] sm:$0xff]
    %v579 = vld [vmem:[#allocation1 + $0x3f] sm:$0xff]
    %581 = vst [vmem:[#allocation1] ss:$9 sm:$0xff] %v33
    %v582 = vld [vmem:[#allocation1] sm:$0xff]
    %v583 = vld [vmem:[#allocation1 + $0x9] sm:$0xff]
    %v584 = vld [vmem:[#allocation1 + $0x12] sm:$0xff]
    %v585 = vld [vmem:[#allocation1 + $0x1b] sm:$0xff]
    %v586 = vld [vmem:[#allocation1 + $0x24] sm:$0xff]
    %v587 = vld [vmem:[#allocation1 + $0x2d] sm:$0xff]
    %v588 = vld [vmem:[#allocation1 + $0x36] sm:$0xff]
    %v589 = vld [vmem:[#allocation1 + $0x3f] sm:$0xff]
    %v1134 = vunpack.c.l.b16 %v34
    %v1135 = vunpack.c.l.b16 %v35
    %v1136 = vunpack.c.l.b16 %v36
    %v1137 = vunpack.c.l.b16 %v37
    %v1138 = vunpack.c.l.b16 %v38
    %v1139 = vunpack.c.l.b16 %v39
    %v1140 = vunpack.c.l.b16 %v40
    %v1141 = vunpack.c.l.b16 %v41
    %v1142 = vunpack.c.l.b16 %v42
    %v1143 = vunpack.c.l.b16 %v43
    %v1144 = vunpack.c.l.b16 %v44
    %v1145 = vunpack.c.l.b16 %v45
    %v1146 = vunpack.c.l.b16 %v46
    %v1147 = vunpack.c.l.b16 %v47
    %v1148 = vunpack.c.l.b16 %v48
    %v1149 = vunpack.c.l.b16 %v49
    %v1150 = vunpack.c.l.b16 %v50
    %v1151 = vunpack.c.l.b16 %v51
    %v1152 = vunpack.c.l.b16 %v52
    %v1153 = vunpack.c.l.b16 %v53
    %v1154 = vunpack.c.l.b16 %v54
    %v1155 = vunpack.c.l.b16 %v55
    %v1156 = vunpack.c.l.b16 %v56
    %v1157 = vunpack.c.l.b16 %v57
    %v1158 = vunpack.c.l.b16 %v58
    %v1159 = vunpack.c.l.b16 %v59
    %v1160 = vunpack.c.l.b16 %v60
    %v1161 = vunpack.c.l.b16 %v61
    %v1162 = vunpack.c.l.b16 %v62
    %v1163 = vunpack.c.l.b16 %v63
    %v1164 = vunpack.c.l.b16 %v64
    %v1165 = vunpack.c.l.b16 %v65
    %v1166 = vunpack.c.l.b16 %v66
    %v1167 = vunpack.c.l.b16 %v67
    %v1168 = vunpack.c.l.b16 %v68
    %v1169 = vunpack.c.l.b16 %v69
    %v1170 = vunpack.c.l.b16 %v70
    %v1171 = vunpack.c.l.b16 %v71
    %v1172 = vunpack.c.l.b16 %v72
    %v1173 = vunpack.c.l.b16 %v73
    %v1174 = vunpack.c.l.b16 %v74
    %v1175 = vunpack.c.l.b16 %v75
    %v1176 = vunpack.c.l.b16 %v76
    %v1177 = vunpack.c.l.b16 %v77
    %v1178 = vunpack.c.l.b16 %v78
    %v1179 = vunpack.c.l.b16 %v79
    %v1180 = vunpack.c.l.b16 %v80
    %v1181 = vunpack.c.l.b16 %v81
    %v1182 = vunpack.c.l.b16 %v82
    %v1183 = vunpack.c.l.b16 %v83
    %v1184 = vunpack.c.l.b16 %v84
    %v1185 = vunpack.c.l.b16 %v85
    %v1186 = vunpack.c.l.b16 %v86
    %v1187 = vunpack.c.l.b16 %v87
    %v1188 = vunpack.c.l.b16 %v88
    %v1189 = vunpack.c.l.b16 %v89
    %v1190 = vunpack.c.l.b16 %v90
    %v1191 = vunpack.c.l.b16 %v91
    %v1192 = vunpack.c.l.b16 %v92
    %v1193 = vunpack.c.l.b16 %v93
    %v1194 = vunpack.c.l.b16 %v94
    %v1195 = vunpack.c.l.b16 %v95
    %v1196 = vunpack.c.l.b16 %v96
    %v1197 = vunpack.c.l.b16 %v97
    %v1198 = vunpack.c.l.b16 %v98
    %v1199 = vunpack.c.l.b16 %v99
    %v1200 = vunpack.c.l.b16 %v100
    %v1201 = vunpack.c.l.b16 %v101
    %v1202 = vunpack.c.l.b16 %v102
    %v1203 = vunpack.c.l.b16 %v103
    %v1204 = vunpack.c.l.b16 %v104
    %v1205 = vunpack.c.l.b16 %v105
    %v1206 = vunpack.c.l.b16 %v106
    %v1207 = vunpack.c.l.b16 %v107
    %v1208 = vunpack.c.l.b16 %v108
    %v1209 = vunpack.c.l.b16 %v109
    %v1210 = vunpack.c.l.b16 %v110
    %v1211 = vunpack.c.l.b16 %v111
    %v1212 = vunpack.c.l.b16 %v112
    %v1213 = vunpack.c.l.b16 %v113
    %v1214 = vunpack.c.l.b16 %v114
    %v1215 = vunpack.c.l.b16 %v115
    %v1216 = vunpack.c.l.b16 %v116
    %v1217 = vunpack.c.l.b16 %v117
    %v1218 = vunpack.c.l.b16 %v118
    %v1219 = vunpack.c.l.b16 %v119
    %v1220 = vunpack.c.l.b16 %v120
    %v1221 = vunpack.c.l.b16 %v121
    %v1222 = vunpack.c.l.b16 %v122
    %v1223 = vunpack.c.l.b16 %v123
    %v1224 = vunpack.c.l.b16 %v124
    %v1225 = vunpack.c.l.b16 %v125
    %v1226 = vunpack.c.l.b16 %v126
    %v1227 = vunpack.c.l.b16 %v127
    %v1228 = vunpack.c.l.b16 %v128
    %v1229 = vunpack.c.l.b16 %v129
    %v1230 = vunpack.c.l.b16 %v130
    %v1231 = vunpack.c.l.b16 %v131
    %v1232 = vunpack.c.l.b16 %v132
    %v1233 = vunpack.c.l.b16 %v133
    %v1234 = vunpack.c.l.b16 %v134
    %v1235 = vunpack.c.l.b16 %v135
    %v1236 = vunpack.c.l.b16 %v136
    %v1237 = vunpack.c.l.b16 %v137
    %v1238 = vunpack.c.l.b16 %v138
    %v1239 = vunpack.c.l.b16 %v139
    %v1240 = vunpack.c.l.b16 %v140
    %v1241 = vunpack.c.l.b16 %v141
    %v1242 = vunpack.c.l.b16 %v142
    %v1243 = vunpack.c.l.b16 %v143
    %v1244 = vunpack.c.l.b16 %v144
    %v1245 = vunpack.c.l.b16 %v145
    %v1246 = vunpack.c.l.b16 %v146
    %v1247 = vunpack.c.l.b16 %v147
    %v1248 = vunpack.c.l.b16 %v148
    %v1249 = vunpack.c.l.b16 %v149
    %v1250 = vunpack.c.l.b16 %v150
    %v1251 = vunpack.c.l.b16 %v151
    %v1252 = vunpack.c.l.b16 %v152
    %v1253 = vunpack.c.l.b16 %v153
    %v1254 = vunpack.c.l.b16 %v154
    %v1255 = vunpack.c.l.b16 %v155
    %v1256 = vunpack.c.l.b16 %v156
    %v1257 = vunpack.c.l.b16 %v157
    %v1258 = vunpack.c.l.b16 %v158
    %v1259 = vunpack.c.l.b16 %v159
    %v1260 = vunpack.c.l.b16 %v160
    %v1261 = vunpack.c.l.b16 %v161
    %v1262 = vunpack.c.l.b16 %v162
    %v1263 = vunpack.c.l.b16 %v163
    %v1264 = vunpack.c.l.b16 %v164
    %v1265 = vunpack.c.l.b16 %v165
    %v1266 = vunpack.c.l.b16 %v166
    %v1267 = vunpack.c.l.b16 %v167
    %v1268 = vunpack.c.l.b16 %v168
    %v1269 = vunpack.c.l.b16 %v169
    %v1270 = vunpack.c.l.b16 %v170
    %v1271 = vunpack.c.l.b16 %v171
    %v1272 = vunpack.c.l.b16 %v172
    %v1273 = vunpack.c.l.b16 %v173
    %v1274 = vunpack.c.l.b16 %v174
    %v1275 = vunpack.c.l.b16 %v175
    %v1276 = vunpack.c.l.b16 %v176
    %v1277 = vunpack.c.l.b16 %v177
    %v1278 = vunpack.c.l.b16 %v178
    %v1279 = vunpack.c.l.b16 %v179
    %v1280 = vunpack.c.l.b16 %v180
    %v1281 = vunpack.c.l.b16 %v181
    %v1282 = vunpack.c.l.b16 %v182
    %v1283 = vunpack.c.l.b16 %v183
    %v1284 = vunpack.c.l.b16 %v184
    %v1285 = vunpack.c.l.b16 %v185
    %v1286 = vunpack.c.l.b16 %v186
    %v1287 = vunpack.c.l.b16 %v187
    %v1288 = vunpack.c.l.b16 %v188
    %v1289 = vunpack.c.l.b16 %v189
    %v1290 = vunpack.c.l.b16 %v190
    %v1291 = vunpack.c.l.b16 %v191
    %v1292 = vunpack.c.l.b16 %v192
    %v1293 = vunpack.c.l.b16 %v193
    %v1294 = vunpack.c.l.b16 %v194
    %v1295 = vunpack.c.l.b16 %v195
    %v1296 = vunpack.c.l.b16 %v196
    %v1297 = vunpack.c.l.b16 %v197
    %v1298 = vunpack.c.l.b16 %v198
    %v1299 = vunpack.c.l.b16 %v199
    %v1300 = vunpack.c.l.b16 %v200
    %v1301 = vunpack.c.l.b16 %v201
    %v1302 = vunpack.c.l.b16 %v202
    %v1303 = vunpack.c.l.b16 %v203
    %v1304 = vunpack.c.l.b16 %v204
    %v1305 = vunpack.c.l.b16 %v205
    %v1306 = vunpack.c.l.b16 %v206
    %v1307 = vunpack.c.l.b16 %v207
    %v1308 = vunpack.c.l.b16 %v208
    %v1309 = vunpack.c.l.b16 %v209
    %v1310 = vunpack.c.l.b16 %v210
    %v1311 = vunpack.c.l.b16 %v211
    %v1312 = vunpack.c.l.b16 %v212
    %v1313 = vunpack.c.l.b16 %v213
    %v1314 = vunpack.c.l.b16 %v214
    %v1315 = vunpack.c.l.b16 %v215
    %v1316 = vunpack.c.l.b16 %v216
    %v1317 = vunpack.c.l.b16 %v217
    %v1318 = vunpack.c.l.b16 %v218
    %v1319 = vunpack.c.l.b16 %v219
    %v1320 = vunpack.c.l.b16 %v220
    %v1321 = vunpack.c.l.b16 %v221
    %v1322 = vunpack.c.l.b16 %v222
    %v1323 = vunpack.c.l.b16 %v223
    %v1324 = vunpack.c.l.b16 %v224
    %v1325 = vunpack.c.l.b16 %v225
    %v1326 = vunpack.c.l.b16 %v226
    %v1327 = vunpack.c.l.b16 %v227
    %v1328 = vunpack.c.l.b16 %v228
    %v1329 = vunpack.c.l.b16 %v229
    %v1330 = vunpack.c.l.b16 %v230
    %v1331 = vunpack.c.l.b16 %v231
    %v1332 = vunpack.c.l.b16 %v232
    %v1333 = vunpack.c.l.b16 %v233
    %v1334 = vunpack.c.l.b16 %v234
    %v1335 = vunpack.c.l.b16 %v235
    %v1336 = vunpack.c.l.b16 %v236
    %v1337 = vunpack.c.l.b16 %v237
    %v1338 = vunpack.c.l.b16 %v238
    %v1339 = vunpack.c.l.b16 %v239
    %v1340 = vunpack.c.l.b16 %v240
    %v1341 = vunpack.c.l.b16 %v241
    %v1342 = vunpack.c.l.b16 %v242
    %v1343 = vunpack.c.l.b16 %v243
    %v1344 = vunpack.c.l.b16 %v244
    %v1345 = vunpack.c.l.b16 %v245
    %v1346 = vunpack.c.l.b16 %v246
    %v1347 = vunpack.c.l.b16 %v247
    %v1348 = vunpack.c.l.b16 %v248
    %v1349 = vunpack.c.l.b16 %v249
    %v1350 = vunpack.c.l.b16 %v250
    %v1351 = vunpack.c.l.b16 %v251
    %v1352 = vunpack.c.l.b16 %v252
    %v1353 = vunpack.c.l.b16 %v253
    %v1354 = vunpack.c.l.b16 %v254
    %v1355 = vunpack.c.l.b16 %v255
    %v1356 = vunpack.c.l.b16 %v256
    %v1357 = vunpack.c.l.b16 %v257
    %v1358 = vunpack.c.l.b16 %v258
    %v1359 = vunpack.c.l.b16 %v259
    %v1360 = vunpack.c.l.b16 %v260
    %v1361 = vunpack.c.l.b16 %v261
    %v1362 = vunpack.c.l.b16 %v262
    %v1363 = vunpack.c.l.b16 %v263
    %v1364 = vunpack.c.l.b16 %v264
    %v1365 = vunpack.c.l.b16 %v265
    %v1366 = vunpack.c.l.b16 %v266
    %v1367 = vunpack.c.l.b16 %v267
    %v1368 = vunpack.c.l.b16 %v268
    %v1369 = vunpack.c.l.b16 %v269
    %v1370 = vunpack.c.l.b16 %v270
    %v1371 = vunpack.c.l.b16 %v271
    %v1372 = vunpack.c.l.b16 %v272
    %v1373 = vunpack.c.l.b16 %v273
    %v1374 = vunpack.c.l.b16 %v274
    %v1375 = vunpack.c.l.b16 %v275
    %v1376 = vunpack.c.l.b16 %v276
    %v1377 = vunpack.c.l.b16 %v277
    %v1378 = vunpack.c.l.b16 %v278
    %v1379 = vunpack.c.l.b16 %v279
    %v1380 = vunpack.c.l.b16 %v280
    %v1381 = vunpack.c.l.b16 %v281
    %v1382 = vunpack.c.l.b16 %v282
    %v1383 = vunpack.c.l.b16 %v283
    %v1384 = vunpack.c.l.b16 %v284
    %v1385 = vunpack.c.l.b16 %v285
    %v1386 = vunpack.c.l.b16 %v286
    %v1387 = vunpack.c.l.b16 %v287
    %v1388 = vunpack.c.l.b16 %v288
    %v1389 = vunpack.c.l.b16 %v289
    %v1390 = vunpack.c.l.b16 %v290
    %v1391 = vunpack.c.l.b16 %v291
    %v1392 = vunpack.c.l.b16 %v292
    %v1393 = vunpack.c.l.b16 %v293
    %v1394 = vunpack.c.l.b16 %v294
    %v1395 = vunpack.c.l.b16 %v295
    %v1396 = vunpack.c.l.b16 %v296
    %v1397 = vunpack.c.l.b16 %v297
    %v1398 = vunpack.c.l.b16 %v298
    %v1399 = vunpack.c.l.b16 %v299
    %v1400 = vunpack.c.l.b16 %v300
    %v1401 = vunpack.c.l.b16 %v301
    %v1402 = vunpack.c.l.b16 %v302
    %v1403 = vunpack.c.l.b16 %v303
    %v1404 = vunpack.c.l.b16 %v304
    %v1405 = vunpack.c.l.b16 %v305
    %v1406 = vunpack.c.l.b16 %v306
    %v1407 = vunpack.c.l.b16 %v307
    %v1408 = vunpack.c.l.b16 %v308
    %v1409 = vunpack.c.l.b16 %v309
    %v1410 = vunpack.c.l.b16 %v310
    %v1411 = vunpack.c.l.b16 %v311
    %v1412 = vunpack.c.l.b16 %v312
    %v1413 = vunpack.c.l.b16 %v313
    %v1414 = vunpack.c.l.b16 %v314
    %v1415 = vunpack.c.l.b16 %v315
    %v1416 = vunpack.c.l.b16 %v316
    %v1417 = vunpack.c.l.b16 %v317
    %v1418 = vunpack.c.l.b16 %v318
    %v1419 = vunpack.c.l.b16 %v319
    %v1420 = vunpack.c.l.b16 %v320
    %v1421 = vunpack.c.l.b16 %v321
    %v1422 = vunpack.c.l.b16 %v322
    %v1423 = vunpack.c.l.b16 %v323
    %v1424 = vunpack.c.l.b16 %v324
    %v1425 = vunpack.c.l.b16 %v325
    %v1426 = vunpack.c.l.b16 %v326
    %v1427 = vunpack.c.l.b16 %v327
    %v1428 = vunpack.c.l.b16 %v328
    %v1429 = vunpack.c.l.b16 %v329
    %v1430 = vunpack.c.l.b16 %v330
    %v1431 = vunpack.c.l.b16 %v331
    %v1432 = vunpack.c.l.b16 %v332
    %v1433 = vunpack.c.l.b16 %v333
    %v1434 = vunpack.c.l.b16 %v334
    %v1435 = vunpack.c.l.b16 %v335
    %v1436 = vunpack.c.l.b16 %v336
    %v1437 = vunpack.c.l.b16 %v337
    %v1438 = vunpack.c.l.b16 %v338
    %v1439 = vunpack.c.l.b16 %v339
    %v1440 = vunpack.c.l.b16 %v340
    %v1441 = vunpack.c.l.b16 %v341
    %v1442 = vunpack.c.l.b16 %v342
    %v1443 = vunpack.c.l.b16 %v343
    %v1444 = vunpack.c.l.b16 %v344
    %v1445 = vunpack.c.l.b16 %v345
    %v1446 = vunpack.c.l.b16 %v346
    %v1447 = vunpack.c.l.b16 %v347
    %v1448 = vunpack.c.l.b16 %v348
    %v1449 = vunpack.c.l.b16 %v349
    %v1450 = vunpack.c.l.b16 %v350
    %v1451 = vunpack.c.l.b16 %v351
    %v1452 = vunpack.c.l.b16 %v352
    %v1453 = vunpack.c.l.b16 %v353
    %v1454 = vunpack.c.l.b16 %v354
    %v1455 = vunpack.c.l.b16 %v355
    %v1456 = vunpack.c.l.b16 %v356
    %v1457 = vunpack.c.l.b16 %v357
    %v1458 = vunpack.c.l.b16 %v358
    %v1459 = vunpack.c.l.b16 %v359
    %v1460 = vunpack.c.l.b16 %v360
    %v1461 = vunpack.c.l.b16 %v361
    %v1462 = vunpack.c.l.b16 %v362
    %v1463 = vunpack.c.l.b16 %v363
    %v1464 = vunpack.c.l.b16 %v364
    %v1465 = vunpack.c.l.b16 %v365
    %v1466 = vunpack.c.l.b16 %v366
    %v1467 = vunpack.c.l.b16 %v367
    %v1468 = vunpack.c.l.b16 %v368
    %v1469 = vunpack.c.l.b16 %v369
    %v1470 = vunpack.c.l.b16 %v370
    %v1471 = vunpack.c.l.b16 %v371
    %v1472 = vunpack.c.l.b16 %v372
    %v1473 = vunpack.c.l.b16 %v373
    %v1474 = vunpack.c.l.b16 %v374
    %v1475 = vunpack.c.l.b16 %v375
    %v1476 = vunpack.c.l.b16 %v376
    %v1477 = vunpack.c.l.b16 %v377
    %v1478 = vunpack.c.l.b16 %v378
    %v1479 = vunpack.c.l.b16 %v379
    %v1480 = vunpack.c.l.b16 %v380
    %v1481 = vunpack.c.l.b16 %v381
    %v1482 = vunpack.c.l.b16 %v382
    %v1483 = vunpack.c.l.b16 %v383
    %v1484 = vunpack.c.l.b16 %v384
    %v1485 = vunpack.c.l.b16 %v385
    %v1486 = vunpack.c.l.b16 %v386
    %v1487 = vunpack.c.l.b16 %v387
    %v1488 = vunpack.c.l.b16 %v388
    %v1489 = vunpack.c.l.b16 %v389
    %v1490 = vunpack.c.l.b16 %v390
    %v1491 = vunpack.c.l.b16 %v391
    %v1492 = vunpack.c.l.b16 %v392
    %v1493 = vunpack.c.l.b16 %v393
    %v1494 = vunpack.c.l.b16 %v394
    %v1495 = vunpack.c.l.b16 %v395
    %v1496 = vunpack.c.l.b16 %v396
    %v1497 = vunpack.c.l.b16 %v397
    %v1498 = vunpack.c.l.b16 %v398
    %v1499 = vunpack.c.l.b16 %v399
    %v1500 = vunpack.c.l.b16 %v400
    %v1501 = vunpack.c.l.b16 %v401
    %v1502 = vunpack.c.l.b16 %v402
    %v1503 = vunpack.c.l.b16 %v403
    %v1504 = vunpack.c.l.b16 %v404
    %v1505 = vunpack.c.l.b16 %v405
    %v1506 = vunpack.c.l.b16 %v406
    %v1507 = vunpack.c.l.b16 %v407
    %v1508 = vunpack.c.l.b16 %v408
    %v1509 = vunpack.c.l.b16 %v409
    %v1510 = vunpack.c.l.b16 %v410
    %v1511 = vunpack.c.l.b16 %v411
    %v1512 = vunpack.c.l.b16 %v412
    %v1513 = vunpack.c.l.b16 %v413
    %v1514 = vunpack.c.l.b16 %v414
    %v1515 = vunpack.c.l.b16 %v415
    %v1516 = vunpack.c.l.b16 %v416
    %v1517 = vunpack.c.l.b16 %v417
    %v1518 = vunpack.c.l.b16 %v418
    %v1519 = vunpack.c.l.b16 %v419
    %v1520 = vunpack.c.l.b16 %v420
    %v1521 = vunpack.c.l.b16 %v421
    %v1522 = vunpack.c.l.b16 %v422
    %v1523 = vunpack.c.l.b16 %v423
    %v1524 = vunpack.c.l.b16 %v424
    %v1525 = vunpack.c.l.b16 %v425
    %v1526 = vunpack.c.l.b16 %v426
    %v1527 = vunpack.c.l.b16 %v427
    %v1528 = vunpack.c.l.b16 %v428
    %v1529 = vunpack.c.l.b16 %v429
    %v1530 = vunpack.c.l.b16 %v430
    %v1531 = vunpack.c.l.b16 %v431
    %v1532 = vunpack.c.l.b16 %v432
    %v1533 = vunpack.c.l.b16 %v433
    %v1534 = vunpack.c.l.b16 %v434
    %v1535 = vunpack.c.l.b16 %v435
    %v1536 = vunpack.c.l.b16 %v436
    %v1537 = vunpack.c.l.b16 %v437
    %v1538 = vunpack.c.l.b16 %v438
    %v1539 = vunpack.c.l.b16 %v439
    %v1540 = vunpack.c.l.b16 %v440
    %v1541 = vunpack.c.l.b16 %v441
    %v1542 = vunpack.c.l.b16 %v442
    %v1543 = vunpack.c.l.b16 %v443
    %v1544 = vunpack.c.l.b16 %v444
    %v1545 = vunpack.c.l.b16 %v445
    %v1546 = vunpack.c.l.b16 %v446
    %v1547 = vunpack.c.l.b16 %v447
    %v1548 = vunpack.c.l.b16 %v448
    %v1549 = vunpack.c.l.b16 %v449
    %v1550 = vunpack.c.l.b16 %v450
    %v1551 = vunpack.c.l.b16 %v451
    %v1552 = vunpack.c.l.b16 %v452
    %v1553 = vunpack.c.l.b16 %v453
    %v1554 = vunpack.c.l.b16 %v454
    %v1555 = vunpack.c.l.b16 %v455
    %v1556 = vunpack.c.l.b16 %v456
    %v1557 = vunpack.c.l.b16 %v457
    %v1558 = vunpack.c.l.b16 %v458
    %v1559 = vunpack.c.l.b16 %v459
    %v1560 = vunpack.c.l.b16 %v460
    %v1561 = vunpack.c.l.b16 %v461
    %v1562 = vunpack.c.l.b16 %v462
    %v1563 = vunpack.c.l.b16 %v463
    %v1564 = vunpack.c.l.b16 %v464
    %v1565 = vunpack.c.l.b16 %v465
    %v1566 = vunpack.c.l.b16 %v466
    %v1567 = vunpack.c.l.b16 %v467
    %v1568 = vunpack.c.l.b16 %v468
    %v1569 = vunpack.c.l.b16 %v469
    %v1570 = vunpack.c.l.b16 %v470
    %v1571 = vunpack.c.l.b16 %v471
    %v1572 = vunpack.c.l.b16 %v472
    %v1573 = vunpack.c.l.b16 %v473
    %v1574 = vunpack.c.l.b16 %v474
    %v1575 = vunpack.c.l.b16 %v475
    %v1576 = vunpack.c.l.b16 %v476
    %v1577 = vunpack.c.l.b16 %v477
    %v1578 = vunpack.c.l.b16 %v478
    %v1579 = vunpack.c.l.b16 %v479
    %v1580 = vunpack.c.l.b16 %v480
    %v1581 = vunpack.c.l.b16 %v481
    %v1582 = vunpack.c.l.b16 %v482
    %v1583 = vunpack.c.l.b16 %v483
    %v1584 = vunpack.c.l.b16 %v484
    %v1585 = vunpack.c.l.b16 %v485
    %v1586 = vunpack.c.l.b16 %v486
    %v1587 = vunpack.c.l.b16 %v487
    %v1588 = vunpack.c.l.b16 %v488
    %v1589 = vunpack.c.l.b16 %v489
    %v1590 = vunpack.c.l.b16 %v490
    %v1591 = vunpack.c.l.b16 %v491
    %v1592 = vunpack.c.l.b16 %v492
    %v1593 = vunpack.c.l.b16 %v493
    %v1594 = vunpack.c.l.b16 %v494
    %v1595 = vunpack.c.l.b16 %v495
    %v1596 = vunpack.c.l.b16 %v496
    %v1597 = vunpack.c.l.b16 %v497
    %v1598 = vunpack.c.l.b16 %v498
    %v1599 = vunpack.c.l.b16 %v499
    %v1600 = vunpack.c.l.b16 %v500
    %v1601 = vunpack.c.l.b16 %v501
    %v1602 = vunpack.c.l.b16 %v502
    %v1603 = vunpack.c.l.b16 %v503
    %v1604 = vunpack.c.l.b16 %v504
    %v1605 = vunpack.c.l.b16 %v505
    %v1606 = vunpack.c.l.b16 %v506
    %v1607 = vunpack.c.l.b16 %v507
    %v1608 = vunpack.c.l.b16 %v508
    %v1609 = vunpack.c.l.b16 %v509
    %v1610 = vunpack.c.l.b16 %v510
    %v1611 = vunpack.c.l.b16 %v511
    %v1612 = vunpack.c.l.b16 %v512
    %v1613 = vunpack.c.l.b16 %v513
    %v1614 = vunpack.c.l.b16 %v514
    %v1615 = vunpack.c.l.b16 %v515
    %v1616 = vunpack.c.l.b16 %v516
    %v1617 = vunpack.c.l.b16 %v517
    %v1618 = vunpack.c.l.b16 %v518
    %v1619 = vunpack.c.l.b16 %v519
    %v1620 = vunpack.c.l.b16 %v520
    %v1621 = vunpack.c.l.b16 %v521
    %v1622 = vunpack.c.l.b16 %v522
    %v1623 = vunpack.c.l.b16 %v523
    %v1624 = vunpack.c.l.b16 %v524
    %v1625 = vunpack.c.l.b16 %v525
    %v1626 = vunpack.c.l.b16 %v526
    %v1627 = vunpack.c.l.b16 %v527
    %v1628 = vunpack.c.l.b16 %v528
    %v1629 = vunpack.c.l.b16 %v529
    %v1630 = vunpack.c.l.b16 %v530
    %v1631 = vunpack.c.l.b16 %v531
    %v1632 = vunpack.c.l.b16 %v532
    %v1633 = vunpack.c.l.b16 %v533
    %v1634 = vunpack.c.l.b16 %v534
    %v1635 = vunpack.c.l.b16 %v535
    %v1636 = vunpack.c.l.b16 %v536
    %v1637 = vunpack.c.l.b16 %v537
    %v1638 = vunpack.c.l.b16 %v538
    %v1639 = vunpack.c.l.b16 %v539
    %v1640 = vunpack.c.l.b16 %v540
    %v1641 = vunpack.c.l.b16 %v541
    %v1642 = vunpack.c.l.b16 %v542
    %v1643 = vunpack.c.l.b16 %v543
    %v1644 = vunpack.c.l.b16 %v544
    %v1645 = vunpack.c.l.b16 %v545
    %v1646 = vpack.c.b16 %v1135, %v1134
    %v1647 = vpack.c.b16 %v1137, %v1136
    %v1648 = vpack.c.b16 %v1139, %v1138
    %v1649 = vpack.c.b16 %v1141, %v1140
    %v1650 = vpack.c.b16 %v1143, %v1142
    %v1651 = vpack.c.b16 %v1145, %v1144
    %v1652 = vpack.c.b16 %v1147, %v1146
    %v1653 = vpack.c.b16 %v1149, %v1148
    %v1654 = vpack.c.b16 %v1151, %v1150
    %v1655 = vpack.c.b16 %v1153, %v1152
    %v1656 = vpack.c.b16 %v1155, %v1154
    %v1657 = vpack.c.b16 %v1157, %v1156
    %v1658 = vpack.c.b16 %v1159, %v1158
    %v1659 = vpack.c.b16 %v1161, %v1160
    %v1660 = vpack.c.b16 %v1163, %v1162
    %v1661 = vpack.c.b16 %v1165, %v1164
    %v1662 = vpack.c.b16 %v1167, %v1166
    %v1663 = vpack.c.b16 %v1169, %v1168
    %v1664 = vpack.c.b16 %v1171, %v1170
    %v1665 = vpack.c.b16 %v1173, %v1172
    %v1666 = vpack.c.b16 %v1175, %v1174
    %v1667 = vpack.c.b16 %v1177, %v1176
    %v1668 = vpack.c.b16 %v1179, %v1178
    %v1669 = vpack.c.b16 %v1181, %v1180
    %v1670 = vpack.c.b16 %v1183, %v1182
    %v1671 = vpack.c.b16 %v1185, %v1184
    %v1672 = vpack.c.b16 %v1187, %v1186
    %v1673 = vpack.c.b16 %v1189, %v1188
    %v1674 = vpack.c.b16 %v1191, %v1190
    %v1675 = vpack.c.b16 %v1193, %v1192
    %v1676 = vpack.c.b16 %v1195, %v1194
    %v1677 = vpack.c.b16 %v1197, %v1196
    %v1678 = vpack.c.b16 %v1199, %v1198
    %v1679 = vpack.c.b16 %v1201, %v1200
    %v1680 = vpack.c.b16 %v1203, %v1202
    %v1681 = vpack.c.b16 %v1205, %v1204
    %v1682 = vpack.c.b16 %v1207, %v1206
    %v1683 = vpack.c.b16 %v1209, %v1208
    %v1684 = vpack.c.b16 %v1211, %v1210
    %v1685 = vpack.c.b16 %v1213, %v1212
    %v1686 = vpack.c.b16 %v1215, %v1214
    %v1687 = vpack.c.b16 %v1217, %v1216
    %v1688 = vpack.c.b16 %v1219, %v1218
    %v1689 = vpack.c.b16 %v1221, %v1220
    %v1690 = vpack.c.b16 %v1223, %v1222
    %v1691 = vpack.c.b16 %v1225, %v1224
    %v1692 = vpack.c.b16 %v1227, %v1226
    %v1693 = vpack.c.b16 %v1229, %v1228
    %v1694 = vpack.c.b16 %v1231, %v1230
    %v1695 = vpack.c.b16 %v1233, %v1232
    %v1696 = vpack.c.b16 %v1235, %v1234
    %v1697 = vpack.c.b16 %v1237, %v1236
    %v1698 = vpack.c.b16 %v1239, %v1238
    %v1699 = vpack.c.b16 %v1241, %v1240
    %v1700 = vpack.c.b16 %v1243, %v1242
    %v1701 = vpack.c.b16 %v1245, %v1244
    %v1702 = vpack.c.b16 %v1247, %v1246
    %v1703 = vpack.c.b16 %v1249, %v1248
    %v1704 = vpack.c.b16 %v1251, %v1250
    %v1705 = vpack.c.b16 %v1253, %v1252
    %v1706 = vpack.c.b16 %v1255, %v1254
    %v1707 = vpack.c.b16 %v1257, %v1256
    %v1708 = vpack.c.b16 %v1259, %v1258
    %v1709 = vpack.c.b16 %v1261, %v1260
    %v1710 = vpack.c.b16 %v1263, %v1262
    %v1711 = vpack.c.b16 %v1265, %v1264
    %v1712 = vpack.c.b16 %v1267, %v1266
    %v1713 = vpack.c.b16 %v1269, %v1268
    %v1714 = vpack.c.b16 %v1271, %v1270
    %v1715 = vpack.c.b16 %v1273, %v1272
    %v1716 = vpack.c.b16 %v1275, %v1274
    %v1717 = vpack.c.b16 %v1277, %v1276
    %v1718 = vpack.c.b16 %v1279, %v1278
    %v1719 = vpack.c.b16 %v1281, %v1280
    %v1720 = vpack.c.b16 %v1283, %v1282
    %v1721 = vpack.c.b16 %v1285, %v1284
    %v1722 = vpack.c.b16 %v1287, %v1286
    %v1723 = vpack.c.b16 %v1289, %v1288
    %v1724 = vpack.c.b16 %v1291, %v1290
    %v1725 = vpack.c.b16 %v1293, %v1292
    %v1726 = vpack.c.b16 %v1295, %v1294
    %v1727 = vpack.c.b16 %v1297, %v1296
    %v1728 = vpack.c.b16 %v1299, %v1298
    %v1729 = vpack.c.b16 %v1301, %v1300
    %v1730 = vpack.c.b16 %v1303, %v1302
    %v1731 = vpack.c.b16 %v1305, %v1304
    %v1732 = vpack.c.b16 %v1307, %v1306
    %v1733 = vpack.c.b16 %v1309, %v1308
    %v1734 = vpack.c.b16 %v1311, %v1310
    %v1735 = vpack.c.b16 %v1313, %v1312
    %v1736 = vpack.c.b16 %v1315, %v1314
    %v1737 = vpack.c.b16 %v1317, %v1316
    %v1738 = vpack.c.b16 %v1319, %v1318
    %v1739 = vpack.c.b16 %v1321, %v1320
    %v1740 = vpack.c.b16 %v1323, %v1322
    %v1741 = vpack.c.b16 %v1325, %v1324
    %v1742 = vpack.c.b16 %v1327, %v1326
    %v1743 = vpack.c.b16 %v1329, %v1328
    %v1744 = vpack.c.b16 %v1331, %v1330
    %v1745 = vpack.c.b16 %v1333, %v1332
    %v1746 = vpack.c.b16 %v1335, %v1334
    %v1747 = vpack.c.b16 %v1337, %v1336
    %v1748 = vpack.c.b16 %v1339, %v1338
    %v1749 = vpack.c.b16 %v1341, %v1340
    %v1750 = vpack.c.b16 %v1343, %v1342
    %v1751 = vpack.c.b16 %v1345, %v1344
    %v1752 = vpack.c.b16 %v1347, %v1346
    %v1753 = vpack.c.b16 %v1349, %v1348
    %v1754 = vpack.c.b16 %v1351, %v1350
    %v1755 = vpack.c.b16 %v1353, %v1352
    %v1756 = vpack.c.b16 %v1355, %v1354
    %v1757 = vpack.c.b16 %v1357, %v1356
    %v1758 = vpack.c.b16 %v1359, %v1358
    %v1759 = vpack.c.b16 %v1361, %v1360
    %v1760 = vpack.c.b16 %v1363, %v1362
    %v1761 = vpack.c.b16 %v1365, %v1364
    %v1762 = vpack.c.b16 %v1367, %v1366
    %v1763 = vpack.c.b16 %v1369, %v1368
    %v1764 = vpack.c.b16 %v1371, %v1370
    %v1765 = vpack.c.b16 %v1373, %v1372
    %v1766 = vpack.c.b16 %v1375, %v1374
    %v1767 = vpack.c.b16 %v1377, %v1376
    %v1768 = vpack.c.b16 %v1379, %v1378
    %v1769 = vpack.c.b16 %v1381, %v1380
    %v1770 = vpack.c.b16 %v1383, %v1382
    %v1771 = vpack.c.b16 %v1385, %v1384
    %v1772 = vpack.c.b16 %v1387, %v1386
    %v1773 = vpack.c.b16 %v1389, %v1388
    %v1774 = vpack.c.b16 %v1391, %v1390
    %v1775 = vpack.c.b16 %v1393, %v1392
    %v1776 = vpack.c.b16 %v1395, %v1394
    %v1777 = vpack.c.b16 %v1397, %v1396
    %v1778 = vpack.c.b16 %v1399, %v1398
    %v1779 = vpack.c.b16 %v1401, %v1400
    %v1780 = vpack.c.b16 %v1403, %v1402
    %v1781 = vpack.c.b16 %v1405, %v1404
    %v1782 = vpack.c.b16 %v1407, %v1406
    %v1783 = vpack.c.b16 %v1409, %v1408
    %v1784 = vpack.c.b16 %v1411, %v1410
    %v1785 = vpack.c.b16 %v1413, %v1412
    %v1786 = vpack.c.b16 %v1415, %v1414
    %v1787 = vpack.c.b16 %v1417, %v1416
    %v1788 = vpack.c.b16 %v1419, %v1418
    %v1789 = vpack.c.b16 %v1421, %v1420
    %v1790 = vpack.c.b16 %v1423, %v1422
    %v1791 = vpack.c.b16 %v1425, %v1424
    %v1792 = vpack.c.b16 %v1427, %v1426
    %v1793 = vpack.c.b16 %v1429, %v1428
    %v1794 = vpack.c.b16 %v1431, %v1430
    %v1795 = vpack.c.b16 %v1433, %v1432
    %v1796 = vpack.c.b16 %v1435, %v1434
    %v1797 = vpack.c.b16 %v1437, %v1436
    %v1798 = vpack.c.b16 %v1439, %v1438
    %v1799 = vpack.c.b16 %v1441, %v1440
    %v1800 = vpack.c.b16 %v1443, %v1442
    %v1801 = vpack.c.b16 %v1445, %v1444
    %v1802 = vpack.c.b16 %v1447, %v1446
    %v1803 = vpack.c.b16 %v1449, %v1448
    %v1804 = vpack.c.b16 %v1451, %v1450
    %v1805 = vpack.c.b16 %v1453, %v1452
    %v1806 = vpack.c.b16 %v1455, %v1454
    %v1807 = vpack.c.b16 %v1457, %v1456
    %v1808 = vpack.c.b16 %v1459, %v1458
    %v1809 = vpack.c.b16 %v1461, %v1460
    %v1810 = vpack.c.b16 %v1463, %v1462
    %v1811 = vpack.c.b16 %v1465, %v1464
    %v1812 = vpack.c.b16 %v1467, %v1466
    %v1813 = vpack.c.b16 %v1469, %v1468
    %v1814 = vpack.c.b16 %v1471, %v1470
    %v1815 = vpack.c.b16 %v1473, %v1472
    %v1816 = vpack.c.b16 %v1475, %v1474
    %v1817 = vpack.c.b16 %v1477, %v1476
    %v1818 = vpack.c.b16 %v1479, %v1478
    %v1819 = vpack.c.b16 %v1481, %v1480
    %v1820 = vpack.c.b16 %v1483, %v1482
    %v1821 = vpack.c.b16 %v1485, %v1484
    %v1822 = vpack.c.b16 %v1487, %v1486
    %v1823 = vpack.c.b16 %v1489, %v1488
    %v1824 = vpack.c.b16 %v1491, %v1490
    %v1825 = vpack.c.b16 %v1493, %v1492
    %v1826 = vpack.c.b16 %v1495, %v1494
    %v1827 = vpack.c.b16 %v1497, %v1496
    %v1828 = vpack.c.b16 %v1499, %v1498
    %v1829 = vpack.c.b16 %v1501, %v1500
    %v1830 = vpack.c.b16 %v1503, %v1502
    %v1831 = vpack.c.b16 %v1505, %v1504
    %v1832 = vpack.c.b16 %v1507, %v1506
    %v1833 = vpack.c.b16 %v1509, %v1508
    %v1834 = vpack.c.b16 %v1511, %v1510
    %v1835 = vpack.c.b16 %v1513, %v1512
    %v1836 = vpack.c.b16 %v1515, %v1514
    %v1837 = vpack.c.b16 %v1517, %v1516
    %v1838 = vpack.c.b16 %v1519, %v1518
    %v1839 = vpack.c.b16 %v1521, %v1520
    %v1840 = vpack.c.b16 %v1523, %v1522
    %v1841 = vpack.c.b16 %v1525, %v1524
    %v1842 = vpack.c.b16 %v1527, %v1526
    %v1843 = vpack.c.b16 %v1529, %v1528
    %v1844 = vpack.c.b16 %v1531, %v1530
    %v1845 = vpack.c.b16 %v1533, %v1532
    %v1846 = vpack.c.b16 %v1535, %v1534
    %v1847 = vpack.c.b16 %v1537, %v1536
    %v1848 = vpack.c.b16 %v1539, %v1538
    %v1849 = vpack.c.b16 %v1541, %v1540
    %v1850 = vpack.c.b16 %v1543, %v1542
    %v1851 = vpack.c.b16 %v1545, %v1544
    %v1852 = vpack.c.b16 %v1547, %v1546
    %v1853 = vpack.c.b16 %v1549, %v1548
    %v1854 = vpack.c.b16 %v1551, %v1550
    %v1855 = vpack.c.b16 %v1553, %v1552
    %v1856 = vpack.c.b16 %v1555, %v1554
    %v1857 = vpack.c.b16 %v1557, %v1556
    %v1858 = vpack.c.b16 %v1559, %v1558
    %v1859 = vpack.c.b16 %v1561, %v1560
    %v1860 = vpack.c.b16 %v1563, %v1562
    %v1861 = vpack.c.b16 %v1565, %v1564
    %v1862 = vpack.c.b16 %v1567, %v1566
    %v1863 = vpack.c.b16 %v1569, %v1568
    %v1864 = vpack.c.b16 %v1571, %v1570
    %v1865 = vpack.c.b16 %v1573, %v1572
    %v1866 = vpack.c.b16 %v1575, %v1574
    %v1867 = vpack.c.b16 %v1577, %v1576
    %v1868 = vpack.c.b16 %v1579, %v1578
    %v1869 = vpack.c.b16 %v1581, %v1580
    %v1870 = vpack.c.b16 %v1583, %v1582
    %v1871 = vpack.c.b16 %v1585, %v1584
    %v1872 = vpack.c.b16 %v1587, %v1586
    %v1873 = vpack.c.b16 %v1589, %v1588
    %v1874 = vpack.c.b16 %v1591, %v1590
    %v1875 = vpack.c.b16 %v1593, %v1592
    %v1876 = vpack.c.b16 %v1595, %v1594
    %v1877 = vpack.c.b16 %v1597, %v1596
    %v1878 = vpack.c.b16 %v1599, %v1598
    %v1879 = vpack.c.b16 %v1601, %v1600
    %v1880 = vpack.c.b16 %v1603, %v1602
    %v1881 = vpack.c.b16 %v1605, %v1604
    %v1882 = vpack.c.b16 %v1607, %v1606
    %v1883 = vpack.c.b16 %v1609, %v1608
    %v1884 = vpack.c.b16 %v1611, %v1610
    %v1885 = vpack.c.b16 %v1613, %v1612
    %v1886 = vpack.c.b16 %v1615, %v1614
    %v1887 = vpack.c.b16 %v1617, %v1616
    %v1888 = vpack.c.b16 %v1619, %v1618
    %v1889 = vpack.c.b16 %v1621, %v1620
    %v1890 = vpack.c.b16 %v1623, %v1622
    %v1891 = vpack.c.b16 %v1625, %v1624
    %v1892 = vpack.c.b16 %v1627, %v1626
    %v1893 = vpack.c.b16 %v1629, %v1628
    %v1894 = vpack.c.b16 %v1631, %v1630
    %v1895 = vpack.c.b16 %v1633, %v1632
    %v1896 = vpack.c.b16 %v1635, %v1634
    %v1897 = vpack.c.b16 %v1637, %v1636
    %v1898 = vpack.c.b16 %v1639, %v1638
    %v1899 = vpack.c.b16 %v1641, %v1640
    %v1900 = vpack.c.b16 %v1643, %v1642
    %v1901 = vpack.c.b16 %v1645, %v1644
    %2158 = vmatpush.bf16.msra.mxu0 %v1653
    %2159 = vmatpush.bf16.msra.mxu0 %v1652
    %2160 = vmatpush.bf16.msra.mxu0 %v1651
    %2161 = vmatpush.bf16.msra.mxu0 %v1650
    %2162 = vmatpush.bf16.msra.mxu0 %v1649
    %2163 = vmatpush.bf16.msra.mxu0 %v1648
    %2164 = vmatpush.bf16.msra.mxu0 %v1647
    %2165 = vmatpush.bf16.msra.mxu0 %v1646
    %2166 = vmatmul.bf16.gmra.mxu0 %v552
    %v2167 = vpop.f32.mrf.mxu0
    %v2168 = vadd.f32 %v548, %v2167
    %v2169 = vpop.f32.mrf.mxu0
    %2170 = vdwg.mxu0
    %2171 = vmatpush.bf16.msra.mxu0 %v1661
    %2172 = vmatpush.bf16.msra.mxu0 %v1660
    %2173 = vmatpush.bf16.msra.mxu0 %v1659
    %2174 = vmatpush.bf16.msra.mxu0 %v1658
    %2175 = vmatpush.bf16.msra.mxu0 %v1657
    %2176 = vmatpush.bf16.msra.mxu0 %v1656
    %2177 = vmatpush.bf16.msra.mxu0 %v1655
    %2178 = vmatpush.bf16.msra.mxu0 %v1654
    %2179 = vmatmul.bf16.gmra.mxu0 %v553
    %v2180 = vpop.f32.mrf.mxu0
    %v2181 = vadd.f32 %v2168, %v2180
    %v2182 = vpop.f32.mrf.mxu0
    %2183 = vdwg.mxu0
    %2184 = vmatpush.bf16.msra.mxu0 %v1669
    %2185 = vmatpush.bf16.msra.mxu0 %v1668
    %2186 = vmatpush.bf16.msra.mxu0 %v1667
    %2187 = vmatpush.bf16.msra.mxu0 %v1666
    %2188 = vmatpush.bf16.msra.mxu0 %v1665
    %2189 = vmatpush.bf16.msra.mxu0 %v1664
    %2190 = vmatpush.bf16.msra.mxu0 %v1663
    %2191 = vmatpush.bf16.msra.mxu0 %v1662
    %2192 = vmatmul.bf16.gmra.mxu0 %v554
    %v2193 = vpop.f32.mrf.mxu0
    %v2194 = vadd.f32 %v2181, %v2193
    %v2195 = vpop.f32.mrf.mxu0
    %2196 = vdwg.mxu0
    %2197 = vmatpush.bf16.msra.mxu0 %v1677
    %2198 = vmatpush.bf16.msra.mxu0 %v1676
    %2199 = vmatpush.bf16.msra.mxu0 %v1675
    %2200 = vmatpush.bf16.msra.mxu0 %v1674
    %2201 = vmatpush.bf16.msra.mxu0 %v1673
    %2202 = vmatpush.bf16.msra.mxu0 %v1672
    %2203 = vmatpush.bf16.msra.mxu0 %v1671
    %2204 = vmatpush.bf16.msra.mxu0 %v1670
    %2205 = vmatmul.bf16.gmra.mxu0 %v555
    %v2206 = vpop.f32.mrf.mxu0
    %v2207 = vadd.f32 %v2194, %v2206
    %v2208 = vpop.f32.mrf.mxu0
    %2209 = vdwg.mxu0
    %2210 = vmatpush.bf16.msra.mxu0 %v1685
    %2211 = vmatpush.bf16.msra.mxu0 %v1684
    %2212 = vmatpush.bf16.msra.mxu0 %v1683
    %2213 = vmatpush.bf16.msra.mxu0 %v1682
    %2214 = vmatpush.bf16.msra.mxu0 %v1681
    %2215 = vmatpush.bf16.msra.mxu0 %v1680
    %2216 = vmatpush.bf16.msra.mxu0 %v1679
    %2217 = vmatpush.bf16.msra.mxu0 %v1678
    %2218 = vmatmul.bf16.gmra.mxu0 %v556
    %v2219 = vpop.f32.mrf.mxu0
    %v2220 = vadd.f32 %v2207, %v2219
    %v2221 = vpop.f32.mrf.mxu0
    %2222 = vdwg.mxu0
    %2223 = vmatpush.bf16.msra.mxu0 %v1693
    %2224 = vmatpush.bf16.msra.mxu0 %v1692
    %2225 = vmatpush.bf16.msra.mxu0 %v1691
    %2226 = vmatpush.bf16.msra.mxu0 %v1690
    %2227 = vmatpush.bf16.msra.mxu0 %v1689
    %2228 = vmatpush.bf16.msra.mxu0 %v1688
    %2229 = vmatpush.bf16.msra.mxu0 %v1687
    %2230 = vmatpush.bf16.msra.mxu0 %v1686
    %2231 = vmatmul.bf16.gmra.mxu0 %v557
    %v2232 = vpop.f32.mrf.mxu0
    %v2233 = vadd.f32 %v2220, %v2232
    %v2234 = vpop.f32.mrf.mxu0
    %2235 = vdwg.mxu0
    %2236 = vmatpush.bf16.msra.mxu0 %v1701
    %2237 = vmatpush.bf16.msra.mxu0 %v1700
    %2238 = vmatpush.bf16.msra.mxu0 %v1699
    %2239 = vmatpush.bf16.msra.mxu0 %v1698
    %2240 = vmatpush.bf16.msra.mxu0 %v1697
    %2241 = vmatpush.bf16.msra.mxu0 %v1696
    %2242 = vmatpush.bf16.msra.mxu0 %v1695
    %2243 = vmatpush.bf16.msra.mxu0 %v1694
    %2244 = vmatmul.bf16.gmra.mxu0 %v558
    %v2245 = vpop.f32.mrf.mxu0
    %v2246 = vadd.f32 %v2233, %v2245
    %v2247 = vpop.f32.mrf.mxu0
    %2248 = vdwg.mxu0
    %2249 = vmatpush.bf16.msra.mxu0 %v1709
    %2250 = vmatpush.bf16.msra.mxu0 %v1708
    %2251 = vmatpush.bf16.msra.mxu0 %v1707
    %2252 = vmatpush.bf16.msra.mxu0 %v1706
    %2253 = vmatpush.bf16.msra.mxu0 %v1705
    %2254 = vmatpush.bf16.msra.mxu0 %v1704
    %2255 = vmatpush.bf16.msra.mxu0 %v1703
    %2256 = vmatpush.bf16.msra.mxu0 %v1702
    %2257 = vmatmul.bf16.gmra.mxu0 %v559
    %v2258 = vpop.f32.mrf.mxu0
    %v2259 = vadd.f32 %v2246, %v2258
    %v2260 = vpop.f32.mrf.mxu0
    %2261 = vdwg.mxu0
    %2262 = vmatpush.bf16.msra.mxu0 %v1717
    %2263 = vmatpush.bf16.msra.mxu0 %v1716
    %2264 = vmatpush.bf16.msra.mxu0 %v1715
    %2265 = vmatpush.bf16.msra.mxu0 %v1714
    %2266 = vmatpush.bf16.msra.mxu0 %v1713
    %2267 = vmatpush.bf16.msra.mxu0 %v1712
    %2268 = vmatpush.bf16.msra.mxu0 %v1711
    %2269 = vmatpush.bf16.msra.mxu0 %v1710
    %2270 = vmatmul.bf16.gmra.mxu0 %v562
    %v2271 = vpop.f32.mrf.mxu0
    %v2272 = vadd.f32 %v2259, %v2271
    %v2273 = vpop.f32.mrf.mxu0
    %2274 = vdwg.mxu0
    %2275 = vmatpush.bf16.msra.mxu0 %v1725
    %2276 = vmatpush.bf16.msra.mxu0 %v1724
    %2277 = vmatpush.bf16.msra.mxu0 %v1723
    %2278 = vmatpush.bf16.msra.mxu0 %v1722
    %2279 = vmatpush.bf16.msra.mxu0 %v1721
    %2280 = vmatpush.bf16.msra.mxu0 %v1720
    %2281 = vmatpush.bf16.msra.mxu0 %v1719
    %2282 = vmatpush.bf16.msra.mxu0 %v1718
    %2283 = vmatmul.bf16.gmra.mxu0 %v563
    %v2284 = vpop.f32.mrf.mxu0
    %v2285 = vadd.f32 %v2272, %v2284
    %v2286 = vpop.f32.mrf.mxu0
    %2287 = vdwg.mxu0
    %2288 = vmatpush.bf16.msra.mxu0 %v1733
    %2289 = vmatpush.bf16.msra.mxu0 %v1732
    %2290 = vmatpush.bf16.msra.mxu0 %v1731
    %2291 = vmatpush.bf16.msra.mxu0 %v1730
    %2292 = vmatpush.bf16.msra.mxu0 %v1729
    %2293 = vmatpush.bf16.msra.mxu0 %v1728
    %2294 = vmatpush.bf16.msra.mxu0 %v1727
    %2295 = vmatpush.bf16.msra.mxu0 %v1726
    %2296 = vmatmul.bf16.gmra.mxu0 %v564
    %v2297 = vpop.f32.mrf.mxu0
    %v2298 = vadd.f32 %v2285, %v2297
    %v2299 = vpop.f32.mrf.mxu0
    %2300 = vdwg.mxu0
    %2301 = vmatpush.bf16.msra.mxu0 %v1741
    %2302 = vmatpush.bf16.msra.mxu0 %v1740
    %2303 = vmatpush.bf16.msra.mxu0 %v1739
    %2304 = vmatpush.bf16.msra.mxu0 %v1738
    %2305 = vmatpush.bf16.msra.mxu0 %v1737
    %2306 = vmatpush.bf16.msra.mxu0 %v1736
    %2307 = vmatpush.bf16.msra.mxu0 %v1735
    %2308 = vmatpush.bf16.msra.mxu0 %v1734
    %2309 = vmatmul.bf16.gmra.mxu0 %v565
    %v2310 = vpop.f32.mrf.mxu0
    %v2311 = vadd.f32 %v2298, %v2310
    %v2312 = vpop.f32.mrf.mxu0
    %2313 = vdwg.mxu0
    %2314 = vmatpush.bf16.msra.mxu0 %v1749
    %2315 = vmatpush.bf16.msra.mxu0 %v1748
    %2316 = vmatpush.bf16.msra.mxu0 %v1747
    %2317 = vmatpush.bf16.msra.mxu0 %v1746
    %2318 = vmatpush.bf16.msra.mxu0 %v1745
    %2319 = vmatpush.bf16.msra.mxu0 %v1744
    %2320 = vmatpush.bf16.msra.mxu0 %v1743
    %2321 = vmatpush.bf16.msra.mxu0 %v1742
    %2322 = vmatmul.bf16.gmra.mxu0 %v566
    %v2323 = vpop.f32.mrf.mxu0
    %v2324 = vadd.f32 %v2311, %v2323
    %v2325 = vpop.f32.mrf.mxu0
    %2326 = vdwg.mxu0
    %2327 = vmatpush.bf16.msra.mxu0 %v1757
    %2328 = vmatpush.bf16.msra.mxu0 %v1756
    %2329 = vmatpush.bf16.msra.mxu0 %v1755
    %2330 = vmatpush.bf16.msra.mxu0 %v1754
    %2331 = vmatpush.bf16.msra.mxu0 %v1753
    %2332 = vmatpush.bf16.msra.mxu0 %v1752
    %2333 = vmatpush.bf16.msra.mxu0 %v1751
    %2334 = vmatpush.bf16.msra.mxu0 %v1750
    %2335 = vmatmul.bf16.gmra.mxu0 %v567
    %v2336 = vpop.f32.mrf.mxu0
    %v2337 = vadd.f32 %v2324, %v2336
    %v2338 = vpop.f32.mrf.mxu0
    %2339 = vdwg.mxu0
    %2340 = vmatpush.bf16.msra.mxu0 %v1765
    %2341 = vmatpush.bf16.msra.mxu0 %v1764
    %2342 = vmatpush.bf16.msra.mxu0 %v1763
    %2343 = vmatpush.bf16.msra.mxu0 %v1762
    %2344 = vmatpush.bf16.msra.mxu0 %v1761
    %2345 = vmatpush.bf16.msra.mxu0 %v1760
    %2346 = vmatpush.bf16.msra.mxu0 %v1759
    %2347 = vmatpush.bf16.msra.mxu0 %v1758
    %2348 = vmatmul.bf16.gmra.mxu0 %v568
    %v2349 = vpop.f32.mrf.mxu0
    %v2350 = vadd.f32 %v2337, %v2349
    %v2351 = vpop.f32.mrf.mxu0
    %2352 = vdwg.mxu0
    %2353 = vmatpush.bf16.msra.mxu0 %v1773
    %2354 = vmatpush.bf16.msra.mxu0 %v1772
    %2355 = vmatpush.bf16.msra.mxu0 %v1771
    %2356 = vmatpush.bf16.msra.mxu0 %v1770
    %2357 = vmatpush.bf16.msra.mxu0 %v1769
    %2358 = vmatpush.bf16.msra.mxu0 %v1768
    %2359 = vmatpush.bf16.msra.mxu0 %v1767
    %2360 = vmatpush.bf16.msra.mxu0 %v1766
    %2361 = vmatmul.bf16.gmra.mxu0 %v569
    %v2362 = vpop.f32.mrf.mxu0
    %v2363 = vadd.f32 %v2350, %v2362
    %v2364 = vpop.f32.mrf.mxu0
    %2365 = vdwg.mxu0
    %2366 = vmatpush.bf16.msra.mxu0 %v1781
    %2367 = vmatpush.bf16.msra.mxu0 %v1780
    %2368 = vmatpush.bf16.msra.mxu0 %v1779
    %2369 = vmatpush.bf16.msra.mxu0 %v1778
    %2370 = vmatpush.bf16.msra.mxu0 %v1777
    %2371 = vmatpush.bf16.msra.mxu0 %v1776
    %2372 = vmatpush.bf16.msra.mxu0 %v1775
    %2373 = vmatpush.bf16.msra.mxu0 %v1774
    %2374 = vmatmul.bf16.gmra.mxu0 %v572
    %v2375 = vpop.f32.mrf.mxu0
    %v2376 = vadd.f32 %v2363, %v2375
    %v2377 = vpop.f32.mrf.mxu0
    %2378 = vdwg.mxu0
    %2379 = vmatpush.bf16.msra.mxu0 %v1789
    %2380 = vmatpush.bf16.msra.mxu0 %v1788
    %2381 = vmatpush.bf16.msra.mxu0 %v1787
    %2382 = vmatpush.bf16.msra.mxu0 %v1786
    %2383 = vmatpush.bf16.msra.mxu0 %v1785
    %2384 = vmatpush.bf16.msra.mxu0 %v1784
    %2385 = vmatpush.bf16.msra.mxu0 %v1783
    %2386 = vmatpush.bf16.msra.mxu0 %v1782
    %2387 = vmatmul.bf16.gmra.mxu0 %v573
    %v2388 = vpop.f32.mrf.mxu0
    %v2389 = vadd.f32 %v2376, %v2388
    %v2390 = vpop.f32.mrf.mxu0
    %2391 = vdwg.mxu0
    %2392 = vmatpush.bf16.msra.mxu0 %v1797
    %2393 = vmatpush.bf16.msra.mxu0 %v1796
    %2394 = vmatpush.bf16.msra.mxu0 %v1795
    %2395 = vmatpush.bf16.msra.mxu0 %v1794
    %2396 = vmatpush.bf16.msra.mxu0 %v1793
    %2397 = vmatpush.bf16.msra.mxu0 %v1792
    %2398 = vmatpush.bf16.msra.mxu0 %v1791
    %2399 = vmatpush.bf16.msra.mxu0 %v1790
    %2400 = vmatmul.bf16.gmra.mxu0 %v574
    %v2401 = vpop.f32.mrf.mxu0
    %v2402 = vadd.f32 %v2389, %v2401
    %v2403 = vpop.f32.mrf.mxu0
    %2404 = vdwg.mxu0
    %2405 = vmatpush.bf16.msra.mxu0 %v1805
    %2406 = vmatpush.bf16.msra.mxu0 %v1804
    %2407 = vmatpush.bf16.msra.mxu0 %v1803
    %2408 = vmatpush.bf16.msra.mxu0 %v1802
    %2409 = vmatpush.bf16.msra.mxu0 %v1801
    %2410 = vmatpush.bf16.msra.mxu0 %v1800
    %2411 = vmatpush.bf16.msra.mxu0 %v1799
    %2412 = vmatpush.bf16.msra.mxu0 %v1798
    %2413 = vmatmul.bf16.gmra.mxu0 %v575
    %v2414 = vpop.f32.mrf.mxu0
    %v2415 = vadd.f32 %v2402, %v2414
    %v2416 = vpop.f32.mrf.mxu0
    %2417 = vdwg.mxu0
    %2418 = vmatpush.bf16.msra.mxu0 %v1813
    %2419 = vmatpush.bf16.msra.mxu0 %v1812
    %2420 = vmatpush.bf16.msra.mxu0 %v1811
    %2421 = vmatpush.bf16.msra.mxu0 %v1810
    %2422 = vmatpush.bf16.msra.mxu0 %v1809
    %2423 = vmatpush.bf16.msra.mxu0 %v1808
    %2424 = vmatpush.bf16.msra.mxu0 %v1807
    %2425 = vmatpush.bf16.msra.mxu0 %v1806
    %2426 = vmatmul.bf16.gmra.mxu0 %v576
    %v2427 = vpop.f32.mrf.mxu0
    %v2428 = vadd.f32 %v2415, %v2427
    %v2429 = vpop.f32.mrf.mxu0
    %2430 = vdwg.mxu0
    %2431 = vmatpush.bf16.msra.mxu0 %v1821
    %2432 = vmatpush.bf16.msra.mxu0 %v1820
    %2433 = vmatpush.bf16.msra.mxu0 %v1819
    %2434 = vmatpush.bf16.msra.mxu0 %v1818
    %2435 = vmatpush.bf16.msra.mxu0 %v1817
    %2436 = vmatpush.bf16.msra.mxu0 %v1816
    %2437 = vmatpush.bf16.msra.mxu0 %v1815
    %2438 = vmatpush.bf16.msra.mxu0 %v1814
    %2439 = vmatmul.bf16.gmra.mxu0 %v577
    %v2440 = vpop.f32.mrf.mxu0
    %v2441 = vadd.f32 %v2428, %v2440
    %v2442 = vpop.f32.mrf.mxu0
    %2443 = vdwg.mxu0
    %2444 = vmatpush.bf16.msra.mxu0 %v1829
    %2445 = vmatpush.bf16.msra.mxu0 %v1828
    %2446 = vmatpush.bf16.msra.mxu0 %v1827
    %2447 = vmatpush.bf16.msra.mxu0 %v1826
    %2448 = vmatpush.bf16.msra.mxu0 %v1825
    %2449 = vmatpush.bf16.msra.mxu0 %v1824
    %2450 = vmatpush.bf16.msra.mxu0 %v1823
    %2451 = vmatpush.bf16.msra.mxu0 %v1822
    %2452 = vmatmul.bf16.gmra.mxu0 %v578
    %v2453 = vpop.f32.mrf.mxu0
    %v2454 = vadd.f32 %v2441, %v2453
    %v2455 = vpop.f32.mrf.mxu0
    %2456 = vdwg.mxu0
    %2457 = vmatpush.bf16.msra.mxu0 %v1837
    %2458 = vmatpush.bf16.msra.mxu0 %v1836
    %2459 = vmatpush.bf16.msra.mxu0 %v1835
    %2460 = vmatpush.bf16.msra.mxu0 %v1834
    %2461 = vmatpush.bf16.msra.mxu0 %v1833
    %2462 = vmatpush.bf16.msra.mxu0 %v1832
    %2463 = vmatpush.bf16.msra.mxu0 %v1831
    %2464 = vmatpush.bf16.msra.mxu0 %v1830
    %2465 = vmatmul.bf16.gmra.mxu0 %v579
    %v2466 = vpop.f32.mrf.mxu0
    %v2467 = vadd.f32 %v2454, %v2466
    %v2468 = vpop.f32.mrf.mxu0
    %2469 = vdwg.mxu0
    %2470 = vmatpush.bf16.msra.mxu0 %v1845
    %2471 = vmatpush.bf16.msra.mxu0 %v1844
    %2472 = vmatpush.bf16.msra.mxu0 %v1843
    %2473 = vmatpush.bf16.msra.mxu0 %v1842
    %2474 = vmatpush.bf16.msra.mxu0 %v1841
    %2475 = vmatpush.bf16.msra.mxu0 %v1840
    %2476 = vmatpush.bf16.msra.mxu0 %v1839
    %2477 = vmatpush.bf16.msra.mxu0 %v1838
    %2478 = vmatmul.bf16.gmra.mxu0 %v582
    %v2479 = vpop.f32.mrf.mxu0
    %v2480 = vadd.f32 %v2467, %v2479
    %v2481 = vpop.f32.mrf.mxu0
    %2482 = vdwg.mxu0
    %2483 = vmatpush.bf16.msra.mxu0 %v1853
    %2484 = vmatpush.bf16.msra.mxu0 %v1852
    %2485 = vmatpush.bf16.msra.mxu0 %v1851
    %2486 = vmatpush.bf16.msra.mxu0 %v1850
    %2487 = vmatpush.bf16.msra.mxu0 %v1849
    %2488 = vmatpush.bf16.msra.mxu0 %v1848
    %2489 = vmatpush.bf16.msra.mxu0 %v1847
    %2490 = vmatpush.bf16.msra.mxu0 %v1846
    %2491 = vmatmul.bf16.gmra.mxu0 %v583
    %v2492 = vpop.f32.mrf.mxu0
    %v2493 = vadd.f32 %v2480, %v2492
    %v2494 = vpop.f32.mrf.mxu0
    %2495 = vdwg.mxu0
    %2496 = vmatpush.bf16.msra.mxu0 %v1861
    %2497 = vmatpush.bf16.msra.mxu0 %v1860
    %2498 = vmatpush.bf16.msra.mxu0 %v1859
    %2499 = vmatpush.bf16.msra.mxu0 %v1858
    %2500 = vmatpush.bf16.msra.mxu0 %v1857
    %2501 = vmatpush.bf16.msra.mxu0 %v1856
    %2502 = vmatpush.bf16.msra.mxu0 %v1855
    %2503 = vmatpush.bf16.msra.mxu0 %v1854
    %2504 = vmatmul.bf16.gmra.mxu0 %v584
    %v2505 = vpop.f32.mrf.mxu0
    %v2506 = vadd.f32 %v2493, %v2505
    %v2507 = vpop.f32.mrf.mxu0
    %2508 = vdwg.mxu0
    %2509 = vmatpush.bf16.msra.mxu0 %v1869
    %2510 = vmatpush.bf16.msra.mxu0 %v1868
    %2511 = vmatpush.bf16.msra.mxu0 %v1867
    %2512 = vmatpush.bf16.msra.mxu0 %v1866
    %2513 = vmatpush.bf16.msra.mxu0 %v1865
    %2514 = vmatpush.bf16.msra.mxu0 %v1864
    %2515 = vmatpush.bf16.msra.mxu0 %v1863
    %2516 = vmatpush.bf16.msra.mxu0 %v1862
    %2517 = vmatmul.bf16.gmra.mxu0 %v585
    %v2518 = vpop.f32.mrf.mxu0
    %v2519 = vadd.f32 %v2506, %v2518
    %v2520 = vpop.f32.mrf.mxu0
    %2521 = vdwg.mxu0
    %2522 = vmatpush.bf16.msra.mxu0 %v1877
    %2523 = vmatpush.bf16.msra.mxu0 %v1876
    %2524 = vmatpush.bf16.msra.mxu0 %v1875
    %2525 = vmatpush.bf16.msra.mxu0 %v1874
    %2526 = vmatpush.bf16.msra.mxu0 %v1873
    %2527 = vmatpush.bf16.msra.mxu0 %v1872
    %2528 = vmatpush.bf16.msra.mxu0 %v1871
    %2529 = vmatpush.bf16.msra.mxu0 %v1870
    %2530 = vmatmul.bf16.gmra.mxu0 %v586
    %v2531 = vpop.f32.mrf.mxu0
    %v2532 = vadd.f32 %v2519, %v2531
    %v2533 = vpop.f32.mrf.mxu0
    %2534 = vdwg.mxu0
    %2535 = vmatpush.bf16.msra.mxu0 %v1885
    %2536 = vmatpush.bf16.msra.mxu0 %v1884
    %2537 = vmatpush.bf16.msra.mxu0 %v1883
    %2538 = vmatpush.bf16.msra.mxu0 %v1882
    %2539 = vmatpush.bf16.msra.mxu0 %v1881
    %2540 = vmatpush.bf16.msra.mxu0 %v1880
    %2541 = vmatpush.bf16.msra.mxu0 %v1879
    %2542 = vmatpush.bf16.msra.mxu0 %v1878
    %2543 = vmatmul.bf16.gmra.mxu0 %v587
    %v2544 = vpop.f32.mrf.mxu0
    %v2545 = vadd.f32 %v2532, %v2544
    %v2546 = vpop.f32.mrf.mxu0
    %2547 = vdwg.mxu0
    %2548 = vmatpush.bf16.msra.mxu0 %v1893
    %2549 = vmatpush.bf16.msra.mxu0 %v1892
    %2550 = vmatpush.bf16.msra.mxu0 %v1891
    %2551 = vmatpush.bf16.msra.mxu0 %v1890
    %2552 = vmatpush.bf16.msra.mxu0 %v1889
    %2553 = vmatpush.bf16.msra.mxu0 %v1888
    %2554 = vmatpush.bf16.msra.mxu0 %v1887
    %2555 = vmatpush.bf16.msra.mxu0 %v1886
    %2556 = vmatmul.bf16.gmra.mxu0 %v588
    %v2557 = vpop.f32.mrf.mxu0
    %v2558 = vadd.f32 %v2545, %v2557
    %v2559 = vpop.f32.mrf.mxu0
    %2560 = vdwg.mxu0
    %2561 = vmatpush.bf16.msra.mxu0 %v1901
    %2562 = vmatpush.bf16.msra.mxu0 %v1900
    %2563 = vmatpush.bf16.msra.mxu0 %v1899
    %2564 = vmatpush.bf16.msra.mxu0 %v1898
    %2565 = vmatpush.bf16.msra.mxu0 %v1897
    %2566 = vmatpush.bf16.msra.mxu0 %v1896
    %2567 = vmatpush.bf16.msra.mxu0 %v1895
    %2568 = vmatpush.bf16.msra.mxu0 %v1894
    %2569 = vmatmul.bf16.gmra.mxu0 %v589
    %v2570 = vpop.f32.mrf.mxu0
    %v2571 = vadd.f32 %v2558, %v2570
    %v2572 = vpop.f32.mrf.mxu0
    %2573 = vdwg.mxu0
    %v2574 = vmax.f32 %v2571, 0.0
    %s2575 = scalar_lea.vmem %s0, 32
    %v2576 = vld [vmem:[%s2575] sm:$0xff]
    %v2577 = vld [vmem:[%s2575 + $0x8] sm:$0xff]
    %v2578 = vld [vmem:[%s2575 + $0x10] sm:$0xff]
    %v2579 = vld [vmem:[%s2575 + $0x18] sm:$0xff]
    %s2580 = scalar_lea.vmem %s1, 2048
    %v2581 = vld [vmem:[%s2580] sm:$0xf]
    %v2582 = vld [vmem:[%s2580 + $0x4] sm:$0xf]
    %v2583 = vld [vmem:[%s2580 + $0x8] sm:$0xf]
    %v2584 = vld [vmem:[%s2580 + $0xc] sm:$0xf]
    %v2585 = vld [vmem:[%s2580 + $0x10] sm:$0xf]
    %v2586 = vld [vmem:[%s2580 + $0x14] sm:$0xf]
    %v2587 = vld [vmem:[%s2580 + $0x18] sm:$0xf]
    %v2588 = vld [vmem:[%s2580 + $0x1c] sm:$0xf]
    %v2589 = vld [vmem:[%s2580 + $0x20] sm:$0xf]
    %v2590 = vld [vmem:[%s2580 + $0x24] sm:$0xf]
    %v2591 = vld [vmem:[%s2580 + $0x28] sm:$0xf]
    %v2592 = vld [vmem:[%s2580 + $0x2c] sm:$0xf]
    %v2593 = vld [vmem:[%s2580 + $0x30] sm:$0xf]
    %v2594 = vld [vmem:[%s2580 + $0x34] sm:$0xf]
    %v2595 = vld [vmem:[%s2580 + $0x38] sm:$0xf]
    %v2596 = vld [vmem:[%s2580 + $0x3c] sm:$0xf]
    %v2597 = vld [vmem:[%s2580 + $0x40] sm:$0xf]
    %v2598 = vld [vmem:[%s2580 + $0x44] sm:$0xf]
    %v2599 = vld [vmem:[%s2580 + $0x48] sm:$0xf]
    %v2600 = vld [vmem:[%s2580 + $0x4c] sm:$0xf]
    %v2601 = vld [vmem:[%s2580 + $0x50] sm:$0xf]
    %v2602 = vld [vmem:[%s2580 + $0x54] sm:$0xf]
    %v2603 = vld [vmem:[%s2580 + $0x58] sm:$0xf]
    %v2604 = vld [vmem:[%s2580 + $0x5c] sm:$0xf]
    %v2605 = vld [vmem:[%s2580 + $0x60] sm:$0xf]
    %v2606 = vld [vmem:[%s2580 + $0x64] sm:$0xf]
    %v2607 = vld [vmem:[%s2580 + $0x68] sm:$0xf]
    %v2608 = vld [vmem:[%s2580 + $0x6c] sm:$0xf]
    %v2609 = vld [vmem:[%s2580 + $0x70] sm:$0xf]
    %v2610 = vld [vmem:[%s2580 + $0x74] sm:$0xf]
    %v2611 = vld [vmem:[%s2580 + $0x78] sm:$0xf]
    %v2612 = vld [vmem:[%s2580 + $0x7c] sm:$0xf]
    %v2613 = vld [vmem:[%s2580 + $0x80] sm:$0xf]
    %v2614 = vld [vmem:[%s2580 + $0x84] sm:$0xf]
    %v2615 = vld [vmem:[%s2580 + $0x88] sm:$0xf]
    %v2616 = vld [vmem:[%s2580 + $0x8c] sm:$0xf]
    %v2617 = vld [vmem:[%s2580 + $0x90] sm:$0xf]
    %v2618 = vld [vmem:[%s2580 + $0x94] sm:$0xf]
    %v2619 = vld [vmem:[%s2580 + $0x98] sm:$0xf]
    %v2620 = vld [vmem:[%s2580 + $0x9c] sm:$0xf]
    %v2621 = vld [vmem:[%s2580 + $0xa0] sm:$0xf]
    %v2622 = vld [vmem:[%s2580 + $0xa4] sm:$0xf]
    %v2623 = vld [vmem:[%s2580 + $0xa8] sm:$0xf]
    %v2624 = vld [vmem:[%s2580 + $0xac] sm:$0xf]
    %v2625 = vld [vmem:[%s2580 + $0xb0] sm:$0xf]
    %v2626 = vld [vmem:[%s2580 + $0xb4] sm:$0xf]
    %v2627 = vld [vmem:[%s2580 + $0xb8] sm:$0xf]
    %v2628 = vld [vmem:[%s2580 + $0xbc] sm:$0xf]
    %v2629 = vld [vmem:[%s2580 + $0xc0] sm:$0xf]
    %v2630 = vld [vmem:[%s2580 + $0xc4] sm:$0xf]
    %v2631 = vld [vmem:[%s2580 + $0xc8] sm:$0xf]
    %v2632 = vld [vmem:[%s2580 + $0xcc] sm:$0xf]
    %v2633 = vld [vmem:[%s2580 + $0xd0] sm:$0xf]
    %v2634 = vld [vmem:[%s2580 + $0xd4] sm:$0xf]
    %v2635 = vld [vmem:[%s2580 + $0xd8] sm:$0xf]
    %v2636 = vld [vmem:[%s2580 + $0xdc] sm:$0xf]
    %v2637 = vld [vmem:[%s2580 + $0xe0] sm:$0xf]
    %v2638 = vld [vmem:[%s2580 + $0xe4] sm:$0xf]
    %v2639 = vld [vmem:[%s2580 + $0xe8] sm:$0xf]
    %v2640 = vld [vmem:[%s2580 + $0xec] sm:$0xf]
    %v2641 = vld [vmem:[%s2580 + $0xf0] sm:$0xf]
    %v2642 = vld [vmem:[%s2580 + $0xf4] sm:$0xf]
    %v2643 = vld [vmem:[%s2580 + $0xf8] sm:$0xf]
    %v2644 = vld [vmem:[%s2580 + $0xfc] sm:$0xf]
    %v2645 = vld [vmem:[%s2580 + $0x100] sm:$0xf]
    %v2646 = vld [vmem:[%s2580 + $0x104] sm:$0xf]
    %v2647 = vld [vmem:[%s2580 + $0x108] sm:$0xf]
    %v2648 = vld [vmem:[%s2580 + $0x10c] sm:$0xf]
    %v2649 = vld [vmem:[%s2580 + $0x110] sm:$0xf]
    %v2650 = vld [vmem:[%s2580 + $0x114] sm:$0xf]
    %v2651 = vld [vmem:[%s2580 + $0x118] sm:$0xf]
    %v2652 = vld [vmem:[%s2580 + $0x11c] sm:$0xf]
    %v2653 = vld [vmem:[%s2580 + $0x120] sm:$0xf]
    %v2654 = vld [vmem:[%s2580 + $0x124] sm:$0xf]
    %v2655 = vld [vmem:[%s2580 + $0x128] sm:$0xf]
    %v2656 = vld [vmem:[%s2580 + $0x12c] sm:$0xf]
    %v2657 = vld [vmem:[%s2580 + $0x130] sm:$0xf]
    %v2658 = vld [vmem:[%s2580 + $0x134] sm:$0xf]
    %v2659 = vld [vmem:[%s2580 + $0x138] sm:$0xf]
    %v2660 = vld [vmem:[%s2580 + $0x13c] sm:$0xf]
    %v2661 = vld [vmem:[%s2580 + $0x140] sm:$0xf]
    %v2662 = vld [vmem:[%s2580 + $0x144] sm:$0xf]
    %v2663 = vld [vmem:[%s2580 + $0x148] sm:$0xf]
    %v2664 = vld [vmem:[%s2580 + $0x14c] sm:$0xf]
    %v2665 = vld [vmem:[%s2580 + $0x150] sm:$0xf]
    %v2666 = vld [vmem:[%s2580 + $0x154] sm:$0xf]
    %v2667 = vld [vmem:[%s2580 + $0x158] sm:$0xf]
    %v2668 = vld [vmem:[%s2580 + $0x15c] sm:$0xf]
    %v2669 = vld [vmem:[%s2580 + $0x160] sm:$0xf]
    %v2670 = vld [vmem:[%s2580 + $0x164] sm:$0xf]
    %v2671 = vld [vmem:[%s2580 + $0x168] sm:$0xf]
    %v2672 = vld [vmem:[%s2580 + $0x16c] sm:$0xf]
    %v2673 = vld [vmem:[%s2580 + $0x170] sm:$0xf]
    %v2674 = vld [vmem:[%s2580 + $0x174] sm:$0xf]
    %v2675 = vld [vmem:[%s2580 + $0x178] sm:$0xf]
    %v2676 = vld [vmem:[%s2580 + $0x17c] sm:$0xf]
    %v2677 = vld [vmem:[%s2580 + $0x180] sm:$0xf]
    %v2678 = vld [vmem:[%s2580 + $0x184] sm:$0xf]
    %v2679 = vld [vmem:[%s2580 + $0x188] sm:$0xf]
    %v2680 = vld [vmem:[%s2580 + $0x18c] sm:$0xf]
    %v2681 = vld [vmem:[%s2580 + $0x190] sm:$0xf]
    %v2682 = vld [vmem:[%s2580 + $0x194] sm:$0xf]
    %v2683 = vld [vmem:[%s2580 + $0x198] sm:$0xf]
    %v2684 = vld [vmem:[%s2580 + $0x19c] sm:$0xf]
    %v2685 = vld [vmem:[%s2580 + $0x1a0] sm:$0xf]
    %v2686 = vld [vmem:[%s2580 + $0x1a4] sm:$0xf]
    %v2687 = vld [vmem:[%s2580 + $0x1a8] sm:$0xf]
    %v2688 = vld [vmem:[%s2580 + $0x1ac] sm:$0xf]
    %v2689 = vld [vmem:[%s2580 + $0x1b0] sm:$0xf]
    %v2690 = vld [vmem:[%s2580 + $0x1b4] sm:$0xf]
    %v2691 = vld [vmem:[%s2580 + $0x1b8] sm:$0xf]
    %v2692 = vld [vmem:[%s2580 + $0x1bc] sm:$0xf]
    %v2693 = vld [vmem:[%s2580 + $0x1c0] sm:$0xf]
    %v2694 = vld [vmem:[%s2580 + $0x1c4] sm:$0xf]
    %v2695 = vld [vmem:[%s2580 + $0x1c8] sm:$0xf]
    %v2696 = vld [vmem:[%s2580 + $0x1cc] sm:$0xf]
    %v2697 = vld [vmem:[%s2580 + $0x1d0] sm:$0xf]
    %v2698 = vld [vmem:[%s2580 + $0x1d4] sm:$0xf]
    %v2699 = vld [vmem:[%s2580 + $0x1d8] sm:$0xf]
    %v2700 = vld [vmem:[%s2580 + $0x1dc] sm:$0xf]
    %v2701 = vld [vmem:[%s2580 + $0x1e0] sm:$0xf]
    %v2702 = vld [vmem:[%s2580 + $0x1e4] sm:$0xf]
    %v2703 = vld [vmem:[%s2580 + $0x1e8] sm:$0xf]
    %v2704 = vld [vmem:[%s2580 + $0x1ec] sm:$0xf]
    %v2705 = vld [vmem:[%s2580 + $0x1f0] sm:$0xf]
    %v2706 = vld [vmem:[%s2580 + $0x1f4] sm:$0xf]
    %v2707 = vld [vmem:[%s2580 + $0x1f8] sm:$0xf]
    %v2708 = vld [vmem:[%s2580 + $0x1fc] sm:$0xf]
    %v2709 = vld [vmem:[%s2580 + $0x200] sm:$0xf]
    %v2710 = vld [vmem:[%s2580 + $0x204] sm:$0xf]
    %v2711 = vld [vmem:[%s2580 + $0x208] sm:$0xf]
    %v2712 = vld [vmem:[%s2580 + $0x20c] sm:$0xf]
    %v2713 = vld [vmem:[%s2580 + $0x210] sm:$0xf]
    %v2714 = vld [vmem:[%s2580 + $0x214] sm:$0xf]
    %v2715 = vld [vmem:[%s2580 + $0x218] sm:$0xf]
    %v2716 = vld [vmem:[%s2580 + $0x21c] sm:$0xf]
    %v2717 = vld [vmem:[%s2580 + $0x220] sm:$0xf]
    %v2718 = vld [vmem:[%s2580 + $0x224] sm:$0xf]
    %v2719 = vld [vmem:[%s2580 + $0x228] sm:$0xf]
    %v2720 = vld [vmem:[%s2580 + $0x22c] sm:$0xf]
    %v2721 = vld [vmem:[%s2580 + $0x230] sm:$0xf]
    %v2722 = vld [vmem:[%s2580 + $0x234] sm:$0xf]
    %v2723 = vld [vmem:[%s2580 + $0x238] sm:$0xf]
    %v2724 = vld [vmem:[%s2580 + $0x23c] sm:$0xf]
    %v2725 = vld [vmem:[%s2580 + $0x240] sm:$0xf]
    %v2726 = vld [vmem:[%s2580 + $0x244] sm:$0xf]
    %v2727 = vld [vmem:[%s2580 + $0x248] sm:$0xf]
    %v2728 = vld [vmem:[%s2580 + $0x24c] sm:$0xf]
    %v2729 = vld [vmem:[%s2580 + $0x250] sm:$0xf]
    %v2730 = vld [vmem:[%s2580 + $0x254] sm:$0xf]
    %v2731 = vld [vmem:[%s2580 + $0x258] sm:$0xf]
    %v2732 = vld [vmem:[%s2580 + $0x25c] sm:$0xf]
    %v2733 = vld [vmem:[%s2580 + $0x260] sm:$0xf]
    %v2734 = vld [vmem:[%s2580 + $0x264] sm:$0xf]
    %v2735 = vld [vmem:[%s2580 + $0x268] sm:$0xf]
    %v2736 = vld [vmem:[%s2580 + $0x26c] sm:$0xf]
    %v2737 = vld [vmem:[%s2580 + $0x270] sm:$0xf]
    %v2738 = vld [vmem:[%s2580 + $0x274] sm:$0xf]
    %v2739 = vld [vmem:[%s2580 + $0x278] sm:$0xf]
    %v2740 = vld [vmem:[%s2580 + $0x27c] sm:$0xf]
    %v2741 = vld [vmem:[%s2580 + $0x280] sm:$0xf]
    %v2742 = vld [vmem:[%s2580 + $0x284] sm:$0xf]
    %v2743 = vld [vmem:[%s2580 + $0x288] sm:$0xf]
    %v2744 = vld [vmem:[%s2580 + $0x28c] sm:$0xf]
    %v2745 = vld [vmem:[%s2580 + $0x290] sm:$0xf]
    %v2746 = vld [vmem:[%s2580 + $0x294] sm:$0xf]
    %v2747 = vld [vmem:[%s2580 + $0x298] sm:$0xf]
    %v2748 = vld [vmem:[%s2580 + $0x29c] sm:$0xf]
    %v2749 = vld [vmem:[%s2580 + $0x2a0] sm:$0xf]
    %v2750 = vld [vmem:[%s2580 + $0x2a4] sm:$0xf]
    %v2751 = vld [vmem:[%s2580 + $0x2a8] sm:$0xf]
    %v2752 = vld [vmem:[%s2580 + $0x2ac] sm:$0xf]
    %v2753 = vld [vmem:[%s2580 + $0x2b0] sm:$0xf]
    %v2754 = vld [vmem:[%s2580 + $0x2b4] sm:$0xf]
    %v2755 = vld [vmem:[%s2580 + $0x2b8] sm:$0xf]
    %v2756 = vld [vmem:[%s2580 + $0x2bc] sm:$0xf]
    %v2757 = vld [vmem:[%s2580 + $0x2c0] sm:$0xf]
    %v2758 = vld [vmem:[%s2580 + $0x2c4] sm:$0xf]
    %v2759 = vld [vmem:[%s2580 + $0x2c8] sm:$0xf]
    %v2760 = vld [vmem:[%s2580 + $0x2cc] sm:$0xf]
    %v2761 = vld [vmem:[%s2580 + $0x2d0] sm:$0xf]
    %v2762 = vld [vmem:[%s2580 + $0x2d4] sm:$0xf]
    %v2763 = vld [vmem:[%s2580 + $0x2d8] sm:$0xf]
    %v2764 = vld [vmem:[%s2580 + $0x2dc] sm:$0xf]
    %v2765 = vld [vmem:[%s2580 + $0x2e0] sm:$0xf]
    %v2766 = vld [vmem:[%s2580 + $0x2e4] sm:$0xf]
    %v2767 = vld [vmem:[%s2580 + $0x2e8] sm:$0xf]
    %v2768 = vld [vmem:[%s2580 + $0x2ec] sm:$0xf]
    %v2769 = vld [vmem:[%s2580 + $0x2f0] sm:$0xf]
    %v2770 = vld [vmem:[%s2580 + $0x2f4] sm:$0xf]
    %v2771 = vld [vmem:[%s2580 + $0x2f8] sm:$0xf]
    %v2772 = vld [vmem:[%s2580 + $0x2fc] sm:$0xf]
    %v2773 = vld [vmem:[%s2580 + $0x300] sm:$0xf]
    %v2774 = vld [vmem:[%s2580 + $0x304] sm:$0xf]
    %v2775 = vld [vmem:[%s2580 + $0x308] sm:$0xf]
    %v2776 = vld [vmem:[%s2580 + $0x30c] sm:$0xf]
    %v2777 = vld [vmem:[%s2580 + $0x310] sm:$0xf]
    %v2778 = vld [vmem:[%s2580 + $0x314] sm:$0xf]
    %v2779 = vld [vmem:[%s2580 + $0x318] sm:$0xf]
    %v2780 = vld [vmem:[%s2580 + $0x31c] sm:$0xf]
    %v2781 = vld [vmem:[%s2580 + $0x320] sm:$0xf]
    %v2782 = vld [vmem:[%s2580 + $0x324] sm:$0xf]
    %v2783 = vld [vmem:[%s2580 + $0x328] sm:$0xf]
    %v2784 = vld [vmem:[%s2580 + $0x32c] sm:$0xf]
    %v2785 = vld [vmem:[%s2580 + $0x330] sm:$0xf]
    %v2786 = vld [vmem:[%s2580 + $0x334] sm:$0xf]
    %v2787 = vld [vmem:[%s2580 + $0x338] sm:$0xf]
    %v2788 = vld [vmem:[%s2580 + $0x33c] sm:$0xf]
    %v2789 = vld [vmem:[%s2580 + $0x340] sm:$0xf]
    %v2790 = vld [vmem:[%s2580 + $0x344] sm:$0xf]
    %v2791 = vld [vmem:[%s2580 + $0x348] sm:$0xf]
    %v2792 = vld [vmem:[%s2580 + $0x34c] sm:$0xf]
    %v2793 = vld [vmem:[%s2580 + $0x350] sm:$0xf]
    %v2794 = vld [vmem:[%s2580 + $0x354] sm:$0xf]
    %v2795 = vld [vmem:[%s2580 + $0x358] sm:$0xf]
    %v2796 = vld [vmem:[%s2580 + $0x35c] sm:$0xf]
    %v2797 = vld [vmem:[%s2580 + $0x360] sm:$0xf]
    %v2798 = vld [vmem:[%s2580 + $0x364] sm:$0xf]
    %v2799 = vld [vmem:[%s2580 + $0x368] sm:$0xf]
    %v2800 = vld [vmem:[%s2580 + $0x36c] sm:$0xf]
    %v2801 = vld [vmem:[%s2580 + $0x370] sm:$0xf]
    %v2802 = vld [vmem:[%s2580 + $0x374] sm:$0xf]
    %v2803 = vld [vmem:[%s2580 + $0x378] sm:$0xf]
    %v2804 = vld [vmem:[%s2580 + $0x37c] sm:$0xf]
    %v2805 = vld [vmem:[%s2580 + $0x380] sm:$0xf]
    %v2806 = vld [vmem:[%s2580 + $0x384] sm:$0xf]
    %v2807 = vld [vmem:[%s2580 + $0x388] sm:$0xf]
    %v2808 = vld [vmem:[%s2580 + $0x38c] sm:$0xf]
    %v2809 = vld [vmem:[%s2580 + $0x390] sm:$0xf]
    %v2810 = vld [vmem:[%s2580 + $0x394] sm:$0xf]
    %v2811 = vld [vmem:[%s2580 + $0x398] sm:$0xf]
    %v2812 = vld [vmem:[%s2580 + $0x39c] sm:$0xf]
    %v2813 = vld [vmem:[%s2580 + $0x3a0] sm:$0xf]
    %v2814 = vld [vmem:[%s2580 + $0x3a4] sm:$0xf]
    %v2815 = vld [vmem:[%s2580 + $0x3a8] sm:$0xf]
    %v2816 = vld [vmem:[%s2580 + $0x3ac] sm:$0xf]
    %v2817 = vld [vmem:[%s2580 + $0x3b0] sm:$0xf]
    %v2818 = vld [vmem:[%s2580 + $0x3b4] sm:$0xf]
    %v2819 = vld [vmem:[%s2580 + $0x3b8] sm:$0xf]
    %v2820 = vld [vmem:[%s2580 + $0x3bc] sm:$0xf]
    %v2821 = vld [vmem:[%s2580 + $0x3c0] sm:$0xf]
    %v2822 = vld [vmem:[%s2580 + $0x3c4] sm:$0xf]
    %v2823 = vld [vmem:[%s2580 + $0x3c8] sm:$0xf]
    %v2824 = vld [vmem:[%s2580 + $0x3cc] sm:$0xf]
    %v2825 = vld [vmem:[%s2580 + $0x3d0] sm:$0xf]
    %v2826 = vld [vmem:[%s2580 + $0x3d4] sm:$0xf]
    %v2827 = vld [vmem:[%s2580 + $0x3d8] sm:$0xf]
    %v2828 = vld [vmem:[%s2580 + $0x3dc] sm:$0xf]
    %v2829 = vld [vmem:[%s2580 + $0x3e0] sm:$0xf]
    %v2830 = vld [vmem:[%s2580 + $0x3e4] sm:$0xf]
    %v2831 = vld [vmem:[%s2580 + $0x3e8] sm:$0xf]
    %v2832 = vld [vmem:[%s2580 + $0x3ec] sm:$0xf]
    %v2833 = vld [vmem:[%s2580 + $0x3f0] sm:$0xf]
    %v2834 = vld [vmem:[%s2580 + $0x3f4] sm:$0xf]
    %v2835 = vld [vmem:[%s2580 + $0x3f8] sm:$0xf]
    %v2836 = vld [vmem:[%s2580 + $0x3fc] sm:$0xf]
    %v2837 = vld [vmem:[%s2580 + $0x400] sm:$0xf]
    %v2838 = vld [vmem:[%s2580 + $0x404] sm:$0xf]
    %v2839 = vld [vmem:[%s2580 + $0x408] sm:$0xf]
    %v2840 = vld [vmem:[%s2580 + $0x40c] sm:$0xf]
    %v2841 = vld [vmem:[%s2580 + $0x410] sm:$0xf]
    %v2842 = vld [vmem:[%s2580 + $0x414] sm:$0xf]
    %v2843 = vld [vmem:[%s2580 + $0x418] sm:$0xf]
    %v2844 = vld [vmem:[%s2580 + $0x41c] sm:$0xf]
    %v2845 = vld [vmem:[%s2580 + $0x420] sm:$0xf]
    %v2846 = vld [vmem:[%s2580 + $0x424] sm:$0xf]
    %v2847 = vld [vmem:[%s2580 + $0x428] sm:$0xf]
    %v2848 = vld [vmem:[%s2580 + $0x42c] sm:$0xf]
    %v2849 = vld [vmem:[%s2580 + $0x430] sm:$0xf]
    %v2850 = vld [vmem:[%s2580 + $0x434] sm:$0xf]
    %v2851 = vld [vmem:[%s2580 + $0x438] sm:$0xf]
    %v2852 = vld [vmem:[%s2580 + $0x43c] sm:$0xf]
    %v2853 = vld [vmem:[%s2580 + $0x440] sm:$0xf]
    %v2854 = vld [vmem:[%s2580 + $0x444] sm:$0xf]
    %v2855 = vld [vmem:[%s2580 + $0x448] sm:$0xf]
    %v2856 = vld [vmem:[%s2580 + $0x44c] sm:$0xf]
    %v2857 = vld [vmem:[%s2580 + $0x450] sm:$0xf]
    %v2858 = vld [vmem:[%s2580 + $0x454] sm:$0xf]
    %v2859 = vld [vmem:[%s2580 + $0x458] sm:$0xf]
    %v2860 = vld [vmem:[%s2580 + $0x45c] sm:$0xf]
    %v2861 = vld [vmem:[%s2580 + $0x460] sm:$0xf]
    %v2862 = vld [vmem:[%s2580 + $0x464] sm:$0xf]
    %v2863 = vld [vmem:[%s2580 + $0x468] sm:$0xf]
    %v2864 = vld [vmem:[%s2580 + $0x46c] sm:$0xf]
    %v2865 = vld [vmem:[%s2580 + $0x470] sm:$0xf]
    %v2866 = vld [vmem:[%s2580 + $0x474] sm:$0xf]
    %v2867 = vld [vmem:[%s2580 + $0x478] sm:$0xf]
    %v2868 = vld [vmem:[%s2580 + $0x47c] sm:$0xf]
    %v2869 = vld [vmem:[%s2580 + $0x480] sm:$0xf]
    %v2870 = vld [vmem:[%s2580 + $0x484] sm:$0xf]
    %v2871 = vld [vmem:[%s2580 + $0x488] sm:$0xf]
    %v2872 = vld [vmem:[%s2580 + $0x48c] sm:$0xf]
    %v2873 = vld [vmem:[%s2580 + $0x490] sm:$0xf]
    %v2874 = vld [vmem:[%s2580 + $0x494] sm:$0xf]
    %v2875 = vld [vmem:[%s2580 + $0x498] sm:$0xf]
    %v2876 = vld [vmem:[%s2580 + $0x49c] sm:$0xf]
    %v2877 = vld [vmem:[%s2580 + $0x4a0] sm:$0xf]
    %v2878 = vld [vmem:[%s2580 + $0x4a4] sm:$0xf]
    %v2879 = vld [vmem:[%s2580 + $0x4a8] sm:$0xf]
    %v2880 = vld [vmem:[%s2580 + $0x4ac] sm:$0xf]
    %v2881 = vld [vmem:[%s2580 + $0x4b0] sm:$0xf]
    %v2882 = vld [vmem:[%s2580 + $0x4b4] sm:$0xf]
    %v2883 = vld [vmem:[%s2580 + $0x4b8] sm:$0xf]
    %v2884 = vld [vmem:[%s2580 + $0x4bc] sm:$0xf]
    %v2885 = vld [vmem:[%s2580 + $0x4c0] sm:$0xf]
    %v2886 = vld [vmem:[%s2580 + $0x4c4] sm:$0xf]
    %v2887 = vld [vmem:[%s2580 + $0x4c8] sm:$0xf]
    %v2888 = vld [vmem:[%s2580 + $0x4cc] sm:$0xf]
    %v2889 = vld [vmem:[%s2580 + $0x4d0] sm:$0xf]
    %v2890 = vld [vmem:[%s2580 + $0x4d4] sm:$0xf]
    %v2891 = vld [vmem:[%s2580 + $0x4d8] sm:$0xf]
    %v2892 = vld [vmem:[%s2580 + $0x4dc] sm:$0xf]
    %v2893 = vld [vmem:[%s2580 + $0x4e0] sm:$0xf]
    %v2894 = vld [vmem:[%s2580 + $0x4e4] sm:$0xf]
    %v2895 = vld [vmem:[%s2580 + $0x4e8] sm:$0xf]
    %v2896 = vld [vmem:[%s2580 + $0x4ec] sm:$0xf]
    %v2897 = vld [vmem:[%s2580 + $0x4f0] sm:$0xf]
    %v2898 = vld [vmem:[%s2580 + $0x4f4] sm:$0xf]
    %v2899 = vld [vmem:[%s2580 + $0x4f8] sm:$0xf]
    %v2900 = vld [vmem:[%s2580 + $0x4fc] sm:$0xf]
    %v2901 = vld [vmem:[%s2580 + $0x500] sm:$0xf]
    %v2902 = vld [vmem:[%s2580 + $0x504] sm:$0xf]
    %v2903 = vld [vmem:[%s2580 + $0x508] sm:$0xf]
    %v2904 = vld [vmem:[%s2580 + $0x50c] sm:$0xf]
    %v2905 = vld [vmem:[%s2580 + $0x510] sm:$0xf]
    %v2906 = vld [vmem:[%s2580 + $0x514] sm:$0xf]
    %v2907 = vld [vmem:[%s2580 + $0x518] sm:$0xf]
    %v2908 = vld [vmem:[%s2580 + $0x51c] sm:$0xf]
    %v2909 = vld [vmem:[%s2580 + $0x520] sm:$0xf]
    %v2910 = vld [vmem:[%s2580 + $0x524] sm:$0xf]
    %v2911 = vld [vmem:[%s2580 + $0x528] sm:$0xf]
    %v2912 = vld [vmem:[%s2580 + $0x52c] sm:$0xf]
    %v2913 = vld [vmem:[%s2580 + $0x530] sm:$0xf]
    %v2914 = vld [vmem:[%s2580 + $0x534] sm:$0xf]
    %v2915 = vld [vmem:[%s2580 + $0x538] sm:$0xf]
    %v2916 = vld [vmem:[%s2580 + $0x53c] sm:$0xf]
    %v2917 = vld [vmem:[%s2580 + $0x540] sm:$0xf]
    %v2918 = vld [vmem:[%s2580 + $0x544] sm:$0xf]
    %v2919 = vld [vmem:[%s2580 + $0x548] sm:$0xf]
    %v2920 = vld [vmem:[%s2580 + $0x54c] sm:$0xf]
    %v2921 = vld [vmem:[%s2580 + $0x550] sm:$0xf]
    %v2922 = vld [vmem:[%s2580 + $0x554] sm:$0xf]
    %v2923 = vld [vmem:[%s2580 + $0x558] sm:$0xf]
    %v2924 = vld [vmem:[%s2580 + $0x55c] sm:$0xf]
    %v2925 = vld [vmem:[%s2580 + $0x560] sm:$0xf]
    %v2926 = vld [vmem:[%s2580 + $0x564] sm:$0xf]
    %v2927 = vld [vmem:[%s2580 + $0x568] sm:$0xf]
    %v2928 = vld [vmem:[%s2580 + $0x56c] sm:$0xf]
    %v2929 = vld [vmem:[%s2580 + $0x570] sm:$0xf]
    %v2930 = vld [vmem:[%s2580 + $0x574] sm:$0xf]
    %v2931 = vld [vmem:[%s2580 + $0x578] sm:$0xf]
    %v2932 = vld [vmem:[%s2580 + $0x57c] sm:$0xf]
    %v2933 = vld [vmem:[%s2580 + $0x580] sm:$0xf]
    %v2934 = vld [vmem:[%s2580 + $0x584] sm:$0xf]
    %v2935 = vld [vmem:[%s2580 + $0x588] sm:$0xf]
    %v2936 = vld [vmem:[%s2580 + $0x58c] sm:$0xf]
    %v2937 = vld [vmem:[%s2580 + $0x590] sm:$0xf]
    %v2938 = vld [vmem:[%s2580 + $0x594] sm:$0xf]
    %v2939 = vld [vmem:[%s2580 + $0x598] sm:$0xf]
    %v2940 = vld [vmem:[%s2580 + $0x59c] sm:$0xf]
    %v2941 = vld [vmem:[%s2580 + $0x5a0] sm:$0xf]
    %v2942 = vld [vmem:[%s2580 + $0x5a4] sm:$0xf]
    %v2943 = vld [vmem:[%s2580 + $0x5a8] sm:$0xf]
    %v2944 = vld [vmem:[%s2580 + $0x5ac] sm:$0xf]
    %v2945 = vld [vmem:[%s2580 + $0x5b0] sm:$0xf]
    %v2946 = vld [vmem:[%s2580 + $0x5b4] sm:$0xf]
    %v2947 = vld [vmem:[%s2580 + $0x5b8] sm:$0xf]
    %v2948 = vld [vmem:[%s2580 + $0x5bc] sm:$0xf]
    %v2949 = vld [vmem:[%s2580 + $0x5c0] sm:$0xf]
    %v2950 = vld [vmem:[%s2580 + $0x5c4] sm:$0xf]
    %v2951 = vld [vmem:[%s2580 + $0x5c8] sm:$0xf]
    %v2952 = vld [vmem:[%s2580 + $0x5cc] sm:$0xf]
    %v2953 = vld [vmem:[%s2580 + $0x5d0] sm:$0xf]
    %v2954 = vld [vmem:[%s2580 + $0x5d4] sm:$0xf]
    %v2955 = vld [vmem:[%s2580 + $0x5d8] sm:$0xf]
    %v2956 = vld [vmem:[%s2580 + $0x5dc] sm:$0xf]
    %v2957 = vld [vmem:[%s2580 + $0x5e0] sm:$0xf]
    %v2958 = vld [vmem:[%s2580 + $0x5e4] sm:$0xf]
    %v2959 = vld [vmem:[%s2580 + $0x5e8] sm:$0xf]
    %v2960 = vld [vmem:[%s2580 + $0x5ec] sm:$0xf]
    %v2961 = vld [vmem:[%s2580 + $0x5f0] sm:$0xf]
    %v2962 = vld [vmem:[%s2580 + $0x5f4] sm:$0xf]
    %v2963 = vld [vmem:[%s2580 + $0x5f8] sm:$0xf]
    %v2964 = vld [vmem:[%s2580 + $0x5fc] sm:$0xf]
    %v2965 = vld [vmem:[%s2580 + $0x600] sm:$0xf]
    %v2966 = vld [vmem:[%s2580 + $0x604] sm:$0xf]
    %v2967 = vld [vmem:[%s2580 + $0x608] sm:$0xf]
    %v2968 = vld [vmem:[%s2580 + $0x60c] sm:$0xf]
    %v2969 = vld [vmem:[%s2580 + $0x610] sm:$0xf]
    %v2970 = vld [vmem:[%s2580 + $0x614] sm:$0xf]
    %v2971 = vld [vmem:[%s2580 + $0x618] sm:$0xf]
    %v2972 = vld [vmem:[%s2580 + $0x61c] sm:$0xf]
    %v2973 = vld [vmem:[%s2580 + $0x620] sm:$0xf]
    %v2974 = vld [vmem:[%s2580 + $0x624] sm:$0xf]
    %v2975 = vld [vmem:[%s2580 + $0x628] sm:$0xf]
    %v2976 = vld [vmem:[%s2580 + $0x62c] sm:$0xf]
    %v2977 = vld [vmem:[%s2580 + $0x630] sm:$0xf]
    %v2978 = vld [vmem:[%s2580 + $0x634] sm:$0xf]
    %v2979 = vld [vmem:[%s2580 + $0x638] sm:$0xf]
    %v2980 = vld [vmem:[%s2580 + $0x63c] sm:$0xf]
    %v2981 = vld [vmem:[%s2580 + $0x640] sm:$0xf]
    %v2982 = vld [vmem:[%s2580 + $0x644] sm:$0xf]
    %v2983 = vld [vmem:[%s2580 + $0x648] sm:$0xf]
    %v2984 = vld [vmem:[%s2580 + $0x64c] sm:$0xf]
    %v2985 = vld [vmem:[%s2580 + $0x650] sm:$0xf]
    %v2986 = vld [vmem:[%s2580 + $0x654] sm:$0xf]
    %v2987 = vld [vmem:[%s2580 + $0x658] sm:$0xf]
    %v2988 = vld [vmem:[%s2580 + $0x65c] sm:$0xf]
    %v2989 = vld [vmem:[%s2580 + $0x660] sm:$0xf]
    %v2990 = vld [vmem:[%s2580 + $0x664] sm:$0xf]
    %v2991 = vld [vmem:[%s2580 + $0x668] sm:$0xf]
    %v2992 = vld [vmem:[%s2580 + $0x66c] sm:$0xf]
    %v2993 = vld [vmem:[%s2580 + $0x670] sm:$0xf]
    %v2994 = vld [vmem:[%s2580 + $0x674] sm:$0xf]
    %v2995 = vld [vmem:[%s2580 + $0x678] sm:$0xf]
    %v2996 = vld [vmem:[%s2580 + $0x67c] sm:$0xf]
    %v2997 = vld [vmem:[%s2580 + $0x680] sm:$0xf]
    %v2998 = vld [vmem:[%s2580 + $0x684] sm:$0xf]
    %v2999 = vld [vmem:[%s2580 + $0x688] sm:$0xf]
    %v3000 = vld [vmem:[%s2580 + $0x68c] sm:$0xf]
    %v3001 = vld [vmem:[%s2580 + $0x690] sm:$0xf]
    %v3002 = vld [vmem:[%s2580 + $0x694] sm:$0xf]
    %v3003 = vld [vmem:[%s2580 + $0x698] sm:$0xf]
    %v3004 = vld [vmem:[%s2580 + $0x69c] sm:$0xf]
    %v3005 = vld [vmem:[%s2580 + $0x6a0] sm:$0xf]
    %v3006 = vld [vmem:[%s2580 + $0x6a4] sm:$0xf]
    %v3007 = vld [vmem:[%s2580 + $0x6a8] sm:$0xf]
    %v3008 = vld [vmem:[%s2580 + $0x6ac] sm:$0xf]
    %v3009 = vld [vmem:[%s2580 + $0x6b0] sm:$0xf]
    %v3010 = vld [vmem:[%s2580 + $0x6b4] sm:$0xf]
    %v3011 = vld [vmem:[%s2580 + $0x6b8] sm:$0xf]
    %v3012 = vld [vmem:[%s2580 + $0x6bc] sm:$0xf]
    %v3013 = vld [vmem:[%s2580 + $0x6c0] sm:$0xf]
    %v3014 = vld [vmem:[%s2580 + $0x6c4] sm:$0xf]
    %v3015 = vld [vmem:[%s2580 + $0x6c8] sm:$0xf]
    %v3016 = vld [vmem:[%s2580 + $0x6cc] sm:$0xf]
    %v3017 = vld [vmem:[%s2580 + $0x6d0] sm:$0xf]
    %v3018 = vld [vmem:[%s2580 + $0x6d4] sm:$0xf]
    %v3019 = vld [vmem:[%s2580 + $0x6d8] sm:$0xf]
    %v3020 = vld [vmem:[%s2580 + $0x6dc] sm:$0xf]
    %v3021 = vld [vmem:[%s2580 + $0x6e0] sm:$0xf]
    %v3022 = vld [vmem:[%s2580 + $0x6e4] sm:$0xf]
    %v3023 = vld [vmem:[%s2580 + $0x6e8] sm:$0xf]
    %v3024 = vld [vmem:[%s2580 + $0x6ec] sm:$0xf]
    %v3025 = vld [vmem:[%s2580 + $0x6f0] sm:$0xf]
    %v3026 = vld [vmem:[%s2580 + $0x6f4] sm:$0xf]
    %v3027 = vld [vmem:[%s2580 + $0x6f8] sm:$0xf]
    %v3028 = vld [vmem:[%s2580 + $0x6fc] sm:$0xf]
    %v3029 = vld [vmem:[%s2580 + $0x700] sm:$0xf]
    %v3030 = vld [vmem:[%s2580 + $0x704] sm:$0xf]
    %v3031 = vld [vmem:[%s2580 + $0x708] sm:$0xf]
    %v3032 = vld [vmem:[%s2580 + $0x70c] sm:$0xf]
    %v3033 = vld [vmem:[%s2580 + $0x710] sm:$0xf]
    %v3034 = vld [vmem:[%s2580 + $0x714] sm:$0xf]
    %v3035 = vld [vmem:[%s2580 + $0x718] sm:$0xf]
    %v3036 = vld [vmem:[%s2580 + $0x71c] sm:$0xf]
    %v3037 = vld [vmem:[%s2580 + $0x720] sm:$0xf]
    %v3038 = vld [vmem:[%s2580 + $0x724] sm:$0xf]
    %v3039 = vld [vmem:[%s2580 + $0x728] sm:$0xf]
    %v3040 = vld [vmem:[%s2580 + $0x72c] sm:$0xf]
    %v3041 = vld [vmem:[%s2580 + $0x730] sm:$0xf]
    %v3042 = vld [vmem:[%s2580 + $0x734] sm:$0xf]
    %v3043 = vld [vmem:[%s2580 + $0x738] sm:$0xf]
    %v3044 = vld [vmem:[%s2580 + $0x73c] sm:$0xf]
    %v3045 = vld [vmem:[%s2580 + $0x740] sm:$0xf]
    %v3046 = vld [vmem:[%s2580 + $0x744] sm:$0xf]
    %v3047 = vld [vmem:[%s2580 + $0x748] sm:$0xf]
    %v3048 = vld [vmem:[%s2580 + $0x74c] sm:$0xf]
    %v3049 = vld [vmem:[%s2580 + $0x750] sm:$0xf]
    %v3050 = vld [vmem:[%s2580 + $0x754] sm:$0xf]
    %v3051 = vld [vmem:[%s2580 + $0x758] sm:$0xf]
    %v3052 = vld [vmem:[%s2580 + $0x75c] sm:$0xf]
    %v3053 = vld [vmem:[%s2580 + $0x760] sm:$0xf]
    %v3054 = vld [vmem:[%s2580 + $0x764] sm:$0xf]
    %v3055 = vld [vmem:[%s2580 + $0x768] sm:$0xf]
    %v3056 = vld [vmem:[%s2580 + $0x76c] sm:$0xf]
    %v3057 = vld [vmem:[%s2580 + $0x770] sm:$0xf]
    %v3058 = vld [vmem:[%s2580 + $0x774] sm:$0xf]
    %v3059 = vld [vmem:[%s2580 + $0x778] sm:$0xf]
    %v3060 = vld [vmem:[%s2580 + $0x77c] sm:$0xf]
    %v3061 = vld [vmem:[%s2580 + $0x780] sm:$0xf]
    %v3062 = vld [vmem:[%s2580 + $0x784] sm:$0xf]
    %v3063 = vld [vmem:[%s2580 + $0x788] sm:$0xf]
    %v3064 = vld [vmem:[%s2580 + $0x78c] sm:$0xf]
    %v3065 = vld [vmem:[%s2580 + $0x790] sm:$0xf]
    %v3066 = vld [vmem:[%s2580 + $0x794] sm:$0xf]
    %v3067 = vld [vmem:[%s2580 + $0x798] sm:$0xf]
    %v3068 = vld [vmem:[%s2580 + $0x79c] sm:$0xf]
    %v3069 = vld [vmem:[%s2580 + $0x7a0] sm:$0xf]
    %v3070 = vld [vmem:[%s2580 + $0x7a4] sm:$0xf]
    %v3071 = vld [vmem:[%s2580 + $0x7a8] sm:$0xf]
    %v3072 = vld [vmem:[%s2580 + $0x7ac] sm:$0xf]
    %v3073 = vld [vmem:[%s2580 + $0x7b0] sm:$0xf]
    %v3074 = vld [vmem:[%s2580 + $0x7b4] sm:$0xf]
    %v3075 = vld [vmem:[%s2580 + $0x7b8] sm:$0xf]
    %v3076 = vld [vmem:[%s2580 + $0x7bc] sm:$0xf]
    %v3077 = vld [vmem:[%s2580 + $0x7c0] sm:$0xf]
    %v3078 = vld [vmem:[%s2580 + $0x7c4] sm:$0xf]
    %v3079 = vld [vmem:[%s2580 + $0x7c8] sm:$0xf]
    %v3080 = vld [vmem:[%s2580 + $0x7cc] sm:$0xf]
    %v3081 = vld [vmem:[%s2580 + $0x7d0] sm:$0xf]
    %v3082 = vld [vmem:[%s2580 + $0x7d4] sm:$0xf]
    %v3083 = vld [vmem:[%s2580 + $0x7d8] sm:$0xf]
    %v3084 = vld [vmem:[%s2580 + $0x7dc] sm:$0xf]
    %v3085 = vld [vmem:[%s2580 + $0x7e0] sm:$0xf]
    %v3086 = vld [vmem:[%s2580 + $0x7e4] sm:$0xf]
    %v3087 = vld [vmem:[%s2580 + $0x7e8] sm:$0xf]
    %v3088 = vld [vmem:[%s2580 + $0x7ec] sm:$0xf]
    %v3089 = vld [vmem:[%s2580 + $0x7f0] sm:$0xf]
    %v3090 = vld [vmem:[%s2580 + $0x7f4] sm:$0xf]
    %v3091 = vld [vmem:[%s2580 + $0x7f8] sm:$0xf]
    %v3092 = vld [vmem:[%s2580 + $0x7fc] sm:$0xf]
    %s3093 = scalar_lea.vmem %s2, 1
    %v3094 = vld [vmem:[%s3093] sm:$0x1]
    %v3096 = vperm.slane %v3094, 0
    %3099 = vst [vmem:[#allocation1] ss:$9 sm:$0xff] %v2576
    %v3100 = vld [vmem:[#allocation1] sm:$0xff]
    %v3101 = vld [vmem:[#allocation1 + $0x9] sm:$0xff]
    %v3102 = vld [vmem:[#allocation1 + $0x12] sm:$0xff]
    %v3103 = vld [vmem:[#allocation1 + $0x1b] sm:$0xff]
    %v3104 = vld [vmem:[#allocation1 + $0x24] sm:$0xff]
    %v3105 = vld [vmem:[#allocation1 + $0x2d] sm:$0xff]
    %v3106 = vld [vmem:[#allocation1 + $0x36] sm:$0xff]
    %v3107 = vld [vmem:[#allocation1 + $0x3f] sm:$0xff]
    %3109 = vst [vmem:[#allocation1] ss:$9 sm:$0xff] %v2577
    %v3110 = vld [vmem:[#allocation1] sm:$0xff]
    %v3111 = vld [vmem:[#allocation1 + $0x9] sm:$0xff]
    %v3112 = vld [vmem:[#allocation1 + $0x12] sm:$0xff]
    %v3113 = vld [vmem:[#allocation1 + $0x1b] sm:$0xff]
    %v3114 = vld [vmem:[#allocation1 + $0x24] sm:$0xff]
    %v3115 = vld [vmem:[#allocation1 + $0x2d] sm:$0xff]
    %v3116 = vld [vmem:[#allocation1 + $0x36] sm:$0xff]
    %v3117 = vld [vmem:[#allocation1 + $0x3f] sm:$0xff]
    %3119 = vst [vmem:[#allocation1] ss:$9 sm:$0xff] %v2578
    %v3120 = vld [vmem:[#allocation1] sm:$0xff]
    %v3121 = vld [vmem:[#allocation1 + $0x9] sm:$0xff]
    %v3122 = vld [vmem:[#allocation1 + $0x12] sm:$0xff]
    %v3123 = vld [vmem:[#allocation1 + $0x1b] sm:$0xff]
    %v3124 = vld [vmem:[#allocation1 + $0x24] sm:$0xff]
    %v3125 = vld [vmem:[#allocation1 + $0x2d] sm:$0xff]
    %v3126 = vld [vmem:[#allocation1 + $0x36] sm:$0xff]
    %v3127 = vld [vmem:[#allocation1 + $0x3f] sm:$0xff]
    %3129 = vst [vmem:[#allocation1] ss:$9 sm:$0xff] %v2579
    %v3130 = vld [vmem:[#allocation1] sm:$0xff]
    %v3131 = vld [vmem:[#allocation1 + $0x9] sm:$0xff]
    %v3132 = vld [vmem:[#allocation1 + $0x12] sm:$0xff]
    %v3133 = vld [vmem:[#allocation1 + $0x1b] sm:$0xff]
    %v3134 = vld [vmem:[#allocation1 + $0x24] sm:$0xff]
    %v3135 = vld [vmem:[#allocation1 + $0x2d] sm:$0xff]
    %v3136 = vld [vmem:[#allocation1 + $0x36] sm:$0xff]
    %v3137 = vld [vmem:[#allocation1 + $0x3f] sm:$0xff]
    %v3682 = vunpack.c.l.b16 %v2581
    %v3683 = vunpack.c.l.b16 %v2582
    %v3684 = vunpack.c.l.b16 %v2583
    %v3685 = vunpack.c.l.b16 %v2584
    %v3686 = vunpack.c.l.b16 %v2585
    %v3687 = vunpack.c.l.b16 %v2586
    %v3688 = vunpack.c.l.b16 %v2587
    %v3689 = vunpack.c.l.b16 %v2588
    %v3690 = vunpack.c.l.b16 %v2589
    %v3691 = vunpack.c.l.b16 %v2590
    %v3692 = vunpack.c.l.b16 %v2591
    %v3693 = vunpack.c.l.b16 %v2592
    %v3694 = vunpack.c.l.b16 %v2593
    %v3695 = vunpack.c.l.b16 %v2594
    %v3696 = vunpack.c.l.b16 %v2595
    %v3697 = vunpack.c.l.b16 %v2596
    %v3698 = vunpack.c.l.b16 %v2597
    %v3699 = vunpack.c.l.b16 %v2598
    %v3700 = vunpack.c.l.b16 %v2599
    %v3701 = vunpack.c.l.b16 %v2600
    %v3702 = vunpack.c.l.b16 %v2601
    %v3703 = vunpack.c.l.b16 %v2602
    %v3704 = vunpack.c.l.b16 %v2603
    %v3705 = vunpack.c.l.b16 %v2604
    %v3706 = vunpack.c.l.b16 %v2605
    %v3707 = vunpack.c.l.b16 %v2606
    %v3708 = vunpack.c.l.b16 %v2607
    %v3709 = vunpack.c.l.b16 %v2608
    %v3710 = vunpack.c.l.b16 %v2609
    %v3711 = vunpack.c.l.b16 %v2610
    %v3712 = vunpack.c.l.b16 %v2611
    %v3713 = vunpack.c.l.b16 %v2612
    %v3714 = vunpack.c.l.b16 %v2613
    %v3715 = vunpack.c.l.b16 %v2614
    %v3716 = vunpack.c.l.b16 %v2615
    %v3717 = vunpack.c.l.b16 %v2616
    %v3718 = vunpack.c.l.b16 %v2617
    %v3719 = vunpack.c.l.b16 %v2618
    %v3720 = vunpack.c.l.b16 %v2619
    %v3721 = vunpack.c.l.b16 %v2620
    %v3722 = vunpack.c.l.b16 %v2621
    %v3723 = vunpack.c.l.b16 %v2622
    %v3724 = vunpack.c.l.b16 %v2623
    %v3725 = vunpack.c.l.b16 %v2624
    %v3726 = vunpack.c.l.b16 %v2625
    %v3727 = vunpack.c.l.b16 %v2626
    %v3728 = vunpack.c.l.b16 %v2627
    %v3729 = vunpack.c.l.b16 %v2628
    %v3730 = vunpack.c.l.b16 %v2629
    %v3731 = vunpack.c.l.b16 %v2630
    %v3732 = vunpack.c.l.b16 %v2631
    %v3733 = vunpack.c.l.b16 %v2632
    %v3734 = vunpack.c.l.b16 %v2633
    %v3735 = vunpack.c.l.b16 %v2634
    %v3736 = vunpack.c.l.b16 %v2635
    %v3737 = vunpack.c.l.b16 %v2636
    %v3738 = vunpack.c.l.b16 %v2637
    %v3739 = vunpack.c.l.b16 %v2638
    %v3740 = vunpack.c.l.b16 %v2639
    %v3741 = vunpack.c.l.b16 %v2640
    %v3742 = vunpack.c.l.b16 %v2641
    %v3743 = vunpack.c.l.b16 %v2642
    %v3744 = vunpack.c.l.b16 %v2643
    %v3745 = vunpack.c.l.b16 %v2644
    %v3746 = vunpack.c.l.b16 %v2645
    %v3747 = vunpack.c.l.b16 %v2646
    %v3748 = vunpack.c.l.b16 %v2647
    %v3749 = vunpack.c.l.b16 %v2648
    %v3750 = vunpack.c.l.b16 %v2649
    %v3751 = vunpack.c.l.b16 %v2650
    %v3752 = vunpack.c.l.b16 %v2651
    %v3753 = vunpack.c.l.b16 %v2652
    %v3754 = vunpack.c.l.b16 %v2653
    %v3755 = vunpack.c.l.b16 %v2654
    %v3756 = vunpack.c.l.b16 %v2655
    %v3757 = vunpack.c.l.b16 %v2656
    %v3758 = vunpack.c.l.b16 %v2657
    %v3759 = vunpack.c.l.b16 %v2658
    %v3760 = vunpack.c.l.b16 %v2659
    %v3761 = vunpack.c.l.b16 %v2660
    %v3762 = vunpack.c.l.b16 %v2661
    %v3763 = vunpack.c.l.b16 %v2662
    %v3764 = vunpack.c.l.b16 %v2663
    %v3765 = vunpack.c.l.b16 %v2664
    %v3766 = vunpack.c.l.b16 %v2665
    %v3767 = vunpack.c.l.b16 %v2666
    %v3768 = vunpack.c.l.b16 %v2667
    %v3769 = vunpack.c.l.b16 %v2668
    %v3770 = vunpack.c.l.b16 %v2669
    %v3771 = vunpack.c.l.b16 %v2670
    %v3772 = vunpack.c.l.b16 %v2671
    %v3773 = vunpack.c.l.b16 %v2672
    %v3774 = vunpack.c.l.b16 %v2673
    %v3775 = vunpack.c.l.b16 %v2674
    %v3776 = vunpack.c.l.b16 %v2675
    %v3777 = vunpack.c.l.b16 %v2676
    %v3778 = vunpack.c.l.b16 %v2677
    %v3779 = vunpack.c.l.b16 %v2678
    %v3780 = vunpack.c.l.b16 %v2679
    %v3781 = vunpack.c.l.b16 %v2680
    %v3782 = vunpack.c.l.b16 %v2681
    %v3783 = vunpack.c.l.b16 %v2682
    %v3784 = vunpack.c.l.b16 %v2683
    %v3785 = vunpack.c.l.b16 %v2684
    %v3786 = vunpack.c.l.b16 %v2685
    %v3787 = vunpack.c.l.b16 %v2686
    %v3788 = vunpack.c.l.b16 %v2687
    %v3789 = vunpack.c.l.b16 %v2688
    %v3790 = vunpack.c.l.b16 %v2689
    %v3791 = vunpack.c.l.b16 %v2690
    %v3792 = vunpack.c.l.b16 %v2691
    %v3793 = vunpack.c.l.b16 %v2692
    %v3794 = vunpack.c.l.b16 %v2693
    %v3795 = vunpack.c.l.b16 %v2694
    %v3796 = vunpack.c.l.b16 %v2695
    %v3797 = vunpack.c.l.b16 %v2696
    %v3798 = vunpack.c.l.b16 %v2697
    %v3799 = vunpack.c.l.b16 %v2698
    %v3800 = vunpack.c.l.b16 %v2699
    %v3801 = vunpack.c.l.b16 %v2700
    %v3802 = vunpack.c.l.b16 %v2701
    %v3803 = vunpack.c.l.b16 %v2702
    %v3804 = vunpack.c.l.b16 %v2703
    %v3805 = vunpack.c.l.b16 %v2704
    %v3806 = vunpack.c.l.b16 %v2705
    %v3807 = vunpack.c.l.b16 %v2706
    %v3808 = vunpack.c.l.b16 %v2707
    %v3809 = vunpack.c.l.b16 %v2708
    %v3810 = vunpack.c.l.b16 %v2709
    %v3811 = vunpack.c.l.b16 %v2710
    %v3812 = vunpack.c.l.b16 %v2711
    %v3813 = vunpack.c.l.b16 %v2712
    %v3814 = vunpack.c.l.b16 %v2713
    %v3815 = vunpack.c.l.b16 %v2714
    %v3816 = vunpack.c.l.b16 %v2715
    %v3817 = vunpack.c.l.b16 %v2716
    %v3818 = vunpack.c.l.b16 %v2717
    %v3819 = vunpack.c.l.b16 %v2718
    %v3820 = vunpack.c.l.b16 %v2719
    %v3821 = vunpack.c.l.b16 %v2720
    %v3822 = vunpack.c.l.b16 %v2721
    %v3823 = vunpack.c.l.b16 %v2722
    %v3824 = vunpack.c.l.b16 %v2723
    %v3825 = vunpack.c.l.b16 %v2724
    %v3826 = vunpack.c.l.b16 %v2725
    %v3827 = vunpack.c.l.b16 %v2726
    %v3828 = vunpack.c.l.b16 %v2727
    %v3829 = vunpack.c.l.b16 %v2728
    %v3830 = vunpack.c.l.b16 %v2729
    %v3831 = vunpack.c.l.b16 %v2730
    %v3832 = vunpack.c.l.b16 %v2731
    %v3833 = vunpack.c.l.b16 %v2732
    %v3834 = vunpack.c.l.b16 %v2733
    %v3835 = vunpack.c.l.b16 %v2734
    %v3836 = vunpack.c.l.b16 %v2735
    %v3837 = vunpack.c.l.b16 %v2736
    %v3838 = vunpack.c.l.b16 %v2737
    %v3839 = vunpack.c.l.b16 %v2738
    %v3840 = vunpack.c.l.b16 %v2739
    %v3841 = vunpack.c.l.b16 %v2740
    %v3842 = vunpack.c.l.b16 %v2741
    %v3843 = vunpack.c.l.b16 %v2742
    %v3844 = vunpack.c.l.b16 %v2743
    %v3845 = vunpack.c.l.b16 %v2744
    %v3846 = vunpack.c.l.b16 %v2745
    %v3847 = vunpack.c.l.b16 %v2746
    %v3848 = vunpack.c.l.b16 %v2747
    %v3849 = vunpack.c.l.b16 %v2748
    %v3850 = vunpack.c.l.b16 %v2749
    %v3851 = vunpack.c.l.b16 %v2750
    %v3852 = vunpack.c.l.b16 %v2751
    %v3853 = vunpack.c.l.b16 %v2752
    %v3854 = vunpack.c.l.b16 %v2753
    %v3855 = vunpack.c.l.b16 %v2754
    %v3856 = vunpack.c.l.b16 %v2755
    %v3857 = vunpack.c.l.b16 %v2756
    %v3858 = vunpack.c.l.b16 %v2757
    %v3859 = vunpack.c.l.b16 %v2758
    %v3860 = vunpack.c.l.b16 %v2759
    %v3861 = vunpack.c.l.b16 %v2760
    %v3862 = vunpack.c.l.b16 %v2761
    %v3863 = vunpack.c.l.b16 %v2762
    %v3864 = vunpack.c.l.b16 %v2763
    %v3865 = vunpack.c.l.b16 %v2764
    %v3866 = vunpack.c.l.b16 %v2765
    %v3867 = vunpack.c.l.b16 %v2766
    %v3868 = vunpack.c.l.b16 %v2767
    %v3869 = vunpack.c.l.b16 %v2768
    %v3870 = vunpack.c.l.b16 %v2769
    %v3871 = vunpack.c.l.b16 %v2770
    %v3872 = vunpack.c.l.b16 %v2771
    %v3873 = vunpack.c.l.b16 %v2772
    %v3874 = vunpack.c.l.b16 %v2773
    %v3875 = vunpack.c.l.b16 %v2774
    %v3876 = vunpack.c.l.b16 %v2775
    %v3877 = vunpack.c.l.b16 %v2776
    %v3878 = vunpack.c.l.b16 %v2777
    %v3879 = vunpack.c.l.b16 %v2778
    %v3880 = vunpack.c.l.b16 %v2779
    %v3881 = vunpack.c.l.b16 %v2780
    %v3882 = vunpack.c.l.b16 %v2781
    %v3883 = vunpack.c.l.b16 %v2782
    %v3884 = vunpack.c.l.b16 %v2783
    %v3885 = vunpack.c.l.b16 %v2784
    %v3886 = vunpack.c.l.b16 %v2785
    %v3887 = vunpack.c.l.b16 %v2786
    %v3888 = vunpack.c.l.b16 %v2787
    %v3889 = vunpack.c.l.b16 %v2788
    %v3890 = vunpack.c.l.b16 %v2789
    %v3891 = vunpack.c.l.b16 %v2790
    %v3892 = vunpack.c.l.b16 %v2791
    %v3893 = vunpack.c.l.b16 %v2792
    %v3894 = vunpack.c.l.b16 %v2793
    %v3895 = vunpack.c.l.b16 %v2794
    %v3896 = vunpack.c.l.b16 %v2795
    %v3897 = vunpack.c.l.b16 %v2796
    %v3898 = vunpack.c.l.b16 %v2797
    %v3899 = vunpack.c.l.b16 %v2798
    %v3900 = vunpack.c.l.b16 %v2799
    %v3901 = vunpack.c.l.b16 %v2800
    %v3902 = vunpack.c.l.b16 %v2801
    %v3903 = vunpack.c.l.b16 %v2802
    %v3904 = vunpack.c.l.b16 %v2803
    %v3905 = vunpack.c.l.b16 %v2804
    %v3906 = vunpack.c.l.b16 %v2805
    %v3907 = vunpack.c.l.b16 %v2806
    %v3908 = vunpack.c.l.b16 %v2807
    %v3909 = vunpack.c.l.b16 %v2808
    %v3910 = vunpack.c.l.b16 %v2809
    %v3911 = vunpack.c.l.b16 %v2810
    %v3912 = vunpack.c.l.b16 %v2811
    %v3913 = vunpack.c.l.b16 %v2812
    %v3914 = vunpack.c.l.b16 %v2813
    %v3915 = vunpack.c.l.b16 %v2814
    %v3916 = vunpack.c.l.b16 %v2815
    %v3917 = vunpack.c.l.b16 %v2816
    %v3918 = vunpack.c.l.b16 %v2817
    %v3919 = vunpack.c.l.b16 %v2818
    %v3920 = vunpack.c.l.b16 %v2819
    %v3921 = vunpack.c.l.b16 %v2820
    %v3922 = vunpack.c.l.b16 %v2821
    %v3923 = vunpack.c.l.b16 %v2822
    %v3924 = vunpack.c.l.b16 %v2823
    %v3925 = vunpack.c.l.b16 %v2824
    %v3926 = vunpack.c.l.b16 %v2825
    %v3927 = vunpack.c.l.b16 %v2826
    %v3928 = vunpack.c.l.b16 %v2827
    %v3929 = vunpack.c.l.b16 %v2828
    %v3930 = vunpack.c.l.b16 %v2829
    %v3931 = vunpack.c.l.b16 %v2830
    %v3932 = vunpack.c.l.b16 %v2831
    %v3933 = vunpack.c.l.b16 %v2832
    %v3934 = vunpack.c.l.b16 %v2833
    %v3935 = vunpack.c.l.b16 %v2834
    %v3936 = vunpack.c.l.b16 %v2835
    %v3937 = vunpack.c.l.b16 %v2836
    %v3938 = vunpack.c.l.b16 %v2837
    %v3939 = vunpack.c.l.b16 %v2838
    %v3940 = vunpack.c.l.b16 %v2839
    %v3941 = vunpack.c.l.b16 %v2840
    %v3942 = vunpack.c.l.b16 %v2841
    %v3943 = vunpack.c.l.b16 %v2842
    %v3944 = vunpack.c.l.b16 %v2843
    %v3945 = vunpack.c.l.b16 %v2844
    %v3946 = vunpack.c.l.b16 %v2845
    %v3947 = vunpack.c.l.b16 %v2846
    %v3948 = vunpack.c.l.b16 %v2847
    %v3949 = vunpack.c.l.b16 %v2848
    %v3950 = vunpack.c.l.b16 %v2849
    %v3951 = vunpack.c.l.b16 %v2850
    %v3952 = vunpack.c.l.b16 %v2851
    %v3953 = vunpack.c.l.b16 %v2852
    %v3954 = vunpack.c.l.b16 %v2853
    %v3955 = vunpack.c.l.b16 %v2854
    %v3956 = vunpack.c.l.b16 %v2855
    %v3957 = vunpack.c.l.b16 %v2856
    %v3958 = vunpack.c.l.b16 %v2857
    %v3959 = vunpack.c.l.b16 %v2858
    %v3960 = vunpack.c.l.b16 %v2859
    %v3961 = vunpack.c.l.b16 %v2860
    %v3962 = vunpack.c.l.b16 %v2861
    %v3963 = vunpack.c.l.b16 %v2862
    %v3964 = vunpack.c.l.b16 %v2863
    %v3965 = vunpack.c.l.b16 %v2864
    %v3966 = vunpack.c.l.b16 %v2865
    %v3967 = vunpack.c.l.b16 %v2866
    %v3968 = vunpack.c.l.b16 %v2867
    %v3969 = vunpack.c.l.b16 %v2868
    %v3970 = vunpack.c.l.b16 %v2869
    %v3971 = vunpack.c.l.b16 %v2870
    %v3972 = vunpack.c.l.b16 %v2871
    %v3973 = vunpack.c.l.b16 %v2872
    %v3974 = vunpack.c.l.b16 %v2873
    %v3975 = vunpack.c.l.b16 %v2874
    %v3976 = vunpack.c.l.b16 %v2875
    %v3977 = vunpack.c.l.b16 %v2876
    %v3978 = vunpack.c.l.b16 %v2877
    %v3979 = vunpack.c.l.b16 %v2878
    %v3980 = vunpack.c.l.b16 %v2879
    %v3981 = vunpack.c.l.b16 %v2880
    %v3982 = vunpack.c.l.b16 %v2881
    %v3983 = vunpack.c.l.b16 %v2882
    %v3984 = vunpack.c.l.b16 %v2883
    %v3985 = vunpack.c.l.b16 %v2884
    %v3986 = vunpack.c.l.b16 %v2885
    %v3987 = vunpack.c.l.b16 %v2886
    %v3988 = vunpack.c.l.b16 %v2887
    %v3989 = vunpack.c.l.b16 %v2888
    %v3990 = vunpack.c.l.b16 %v2889
    %v3991 = vunpack.c.l.b16 %v2890
    %v3992 = vunpack.c.l.b16 %v2891
    %v3993 = vunpack.c.l.b16 %v2892
    %v3994 = vunpack.c.l.b16 %v2893
    %v3995 = vunpack.c.l.b16 %v2894
    %v3996 = vunpack.c.l.b16 %v2895
    %v3997 = vunpack.c.l.b16 %v2896
    %v3998 = vunpack.c.l.b16 %v2897
    %v3999 = vunpack.c.l.b16 %v2898
    %v4000 = vunpack.c.l.b16 %v2899
    %v4001 = vunpack.c.l.b16 %v2900
    %v4002 = vunpack.c.l.b16 %v2901
    %v4003 = vunpack.c.l.b16 %v2902
    %v4004 = vunpack.c.l.b16 %v2903
    %v4005 = vunpack.c.l.b16 %v2904
    %v4006 = vunpack.c.l.b16 %v2905
    %v4007 = vunpack.c.l.b16 %v2906
    %v4008 = vunpack.c.l.b16 %v2907
    %v4009 = vunpack.c.l.b16 %v2908
    %v4010 = vunpack.c.l.b16 %v2909
    %v4011 = vunpack.c.l.b16 %v2910
    %v4012 = vunpack.c.l.b16 %v2911
    %v4013 = vunpack.c.l.b16 %v2912
    %v4014 = vunpack.c.l.b16 %v2913
    %v4015 = vunpack.c.l.b16 %v2914
    %v4016 = vunpack.c.l.b16 %v2915
    %v4017 = vunpack.c.l.b16 %v2916
    %v4018 = vunpack.c.l.b16 %v2917
    %v4019 = vunpack.c.l.b16 %v2918
    %v4020 = vunpack.c.l.b16 %v2919
    %v4021 = vunpack.c.l.b16 %v2920
    %v4022 = vunpack.c.l.b16 %v2921
    %v4023 = vunpack.c.l.b16 %v2922
    %v4024 = vunpack.c.l.b16 %v2923
    %v4025 = vunpack.c.l.b16 %v2924
    %v4026 = vunpack.c.l.b16 %v2925
    %v4027 = vunpack.c.l.b16 %v2926
    %v4028 = vunpack.c.l.b16 %v2927
    %v4029 = vunpack.c.l.b16 %v2928
    %v4030 = vunpack.c.l.b16 %v2929
    %v4031 = vunpack.c.l.b16 %v2930
    %v4032 = vunpack.c.l.b16 %v2931
    %v4033 = vunpack.c.l.b16 %v2932
    %v4034 = vunpack.c.l.b16 %v2933
    %v4035 = vunpack.c.l.b16 %v2934
    %v4036 = vunpack.c.l.b16 %v2935
    %v4037 = vunpack.c.l.b16 %v2936
    %v4038 = vunpack.c.l.b16 %v2937
    %v4039 = vunpack.c.l.b16 %v2938
    %v4040 = vunpack.c.l.b16 %v2939
    %v4041 = vunpack.c.l.b16 %v2940
    %v4042 = vunpack.c.l.b16 %v2941
    %v4043 = vunpack.c.l.b16 %v2942
    %v4044 = vunpack.c.l.b16 %v2943
    %v4045 = vunpack.c.l.b16 %v2944
    %v4046 = vunpack.c.l.b16 %v2945
    %v4047 = vunpack.c.l.b16 %v2946
    %v4048 = vunpack.c.l.b16 %v2947
    %v4049 = vunpack.c.l.b16 %v2948
    %v4050 = vunpack.c.l.b16 %v2949
    %v4051 = vunpack.c.l.b16 %v2950
    %v4052 = vunpack.c.l.b16 %v2951
    %v4053 = vunpack.c.l.b16 %v2952
    %v4054 = vunpack.c.l.b16 %v2953
    %v4055 = vunpack.c.l.b16 %v2954
    %v4056 = vunpack.c.l.b16 %v2955
    %v4057 = vunpack.c.l.b16 %v2956
    %v4058 = vunpack.c.l.b16 %v2957
    %v4059 = vunpack.c.l.b16 %v2958
    %v4060 = vunpack.c.l.b16 %v2959
    %v4061 = vunpack.c.l.b16 %v2960
    %v4062 = vunpack.c.l.b16 %v2961
    %v4063 = vunpack.c.l.b16 %v2962
    %v4064 = vunpack.c.l.b16 %v2963
    %v4065 = vunpack.c.l.b16 %v2964
    %v4066 = vunpack.c.l.b16 %v2965
    %v4067 = vunpack.c.l.b16 %v2966
    %v4068 = vunpack.c.l.b16 %v2967
    %v4069 = vunpack.c.l.b16 %v2968
    %v4070 = vunpack.c.l.b16 %v2969
    %v4071 = vunpack.c.l.b16 %v2970
    %v4072 = vunpack.c.l.b16 %v2971
    %v4073 = vunpack.c.l.b16 %v2972
    %v4074 = vunpack.c.l.b16 %v2973
    %v4075 = vunpack.c.l.b16 %v2974
    %v4076 = vunpack.c.l.b16 %v2975
    %v4077 = vunpack.c.l.b16 %v2976
    %v4078 = vunpack.c.l.b16 %v2977
    %v4079 = vunpack.c.l.b16 %v2978
    %v4080 = vunpack.c.l.b16 %v2979
    %v4081 = vunpack.c.l.b16 %v2980
    %v4082 = vunpack.c.l.b16 %v2981
    %v4083 = vunpack.c.l.b16 %v2982
    %v4084 = vunpack.c.l.b16 %v2983
    %v4085 = vunpack.c.l.b16 %v2984
    %v4086 = vunpack.c.l.b16 %v2985
    %v4087 = vunpack.c.l.b16 %v2986
    %v4088 = vunpack.c.l.b16 %v2987
    %v4089 = vunpack.c.l.b16 %v2988
    %v4090 = vunpack.c.l.b16 %v2989
    %v4091 = vunpack.c.l.b16 %v2990
    %v4092 = vunpack.c.l.b16 %v2991
    %v4093 = vunpack.c.l.b16 %v2992
    %v4094 = vunpack.c.l.b16 %v2993
    %v4095 = vunpack.c.l.b16 %v2994
    %v4096 = vunpack.c.l.b16 %v2995
    %v4097 = vunpack.c.l.b16 %v2996
    %v4098 = vunpack.c.l.b16 %v2997
    %v4099 = vunpack.c.l.b16 %v2998
    %v4100 = vunpack.c.l.b16 %v2999
    %v4101 = vunpack.c.l.b16 %v3000
    %v4102 = vunpack.c.l.b16 %v3001
    %v4103 = vunpack.c.l.b16 %v3002
    %v4104 = vunpack.c.l.b16 %v3003
    %v4105 = vunpack.c.l.b16 %v3004
    %v4106 = vunpack.c.l.b16 %v3005
    %v4107 = vunpack.c.l.b16 %v3006
    %v4108 = vunpack.c.l.b16 %v3007
    %v4109 = vunpack.c.l.b16 %v3008
    %v4110 = vunpack.c.l.b16 %v3009
    %v4111 = vunpack.c.l.b16 %v3010
    %v4112 = vunpack.c.l.b16 %v3011
    %v4113 = vunpack.c.l.b16 %v3012
    %v4114 = vunpack.c.l.b16 %v3013
    %v4115 = vunpack.c.l.b16 %v3014
    %v4116 = vunpack.c.l.b16 %v3015
    %v4117 = vunpack.c.l.b16 %v3016
    %v4118 = vunpack.c.l.b16 %v3017
    %v4119 = vunpack.c.l.b16 %v3018
    %v4120 = vunpack.c.l.b16 %v3019
    %v4121 = vunpack.c.l.b16 %v3020
    %v4122 = vunpack.c.l.b16 %v3021
    %v4123 = vunpack.c.l.b16 %v3022
    %v4124 = vunpack.c.l.b16 %v3023
    %v4125 = vunpack.c.l.b16 %v3024
    %v4126 = vunpack.c.l.b16 %v3025
    %v4127 = vunpack.c.l.b16 %v3026
    %v4128 = vunpack.c.l.b16 %v3027
    %v4129 = vunpack.c.l.b16 %v3028
    %v4130 = vunpack.c.l.b16 %v3029
    %v4131 = vunpack.c.l.b16 %v3030
    %v4132 = vunpack.c.l.b16 %v3031
    %v4133 = vunpack.c.l.b16 %v3032
    %v4134 = vunpack.c.l.b16 %v3033
    %v4135 = vunpack.c.l.b16 %v3034
    %v4136 = vunpack.c.l.b16 %v3035
    %v4137 = vunpack.c.l.b16 %v3036
    %v4138 = vunpack.c.l.b16 %v3037
    %v4139 = vunpack.c.l.b16 %v3038
    %v4140 = vunpack.c.l.b16 %v3039
    %v4141 = vunpack.c.l.b16 %v3040
    %v4142 = vunpack.c.l.b16 %v3041
    %v4143 = vunpack.c.l.b16 %v3042
    %v4144 = vunpack.c.l.b16 %v3043
    %v4145 = vunpack.c.l.b16 %v3044
    %v4146 = vunpack.c.l.b16 %v3045
    %v4147 = vunpack.c.l.b16 %v3046
    %v4148 = vunpack.c.l.b16 %v3047
    %v4149 = vunpack.c.l.b16 %v3048
    %v4150 = vunpack.c.l.b16 %v3049
    %v4151 = vunpack.c.l.b16 %v3050
    %v4152 = vunpack.c.l.b16 %v3051
    %v4153 = vunpack.c.l.b16 %v3052
    %v4154 = vunpack.c.l.b16 %v3053
    %v4155 = vunpack.c.l.b16 %v3054
    %v4156 = vunpack.c.l.b16 %v3055
    %v4157 = vunpack.c.l.b16 %v3056
    %v4158 = vunpack.c.l.b16 %v3057
    %v4159 = vunpack.c.l.b16 %v3058
    %v4160 = vunpack.c.l.b16 %v3059
    %v4161 = vunpack.c.l.b16 %v3060
    %v4162 = vunpack.c.l.b16 %v3061
    %v4163 = vunpack.c.l.b16 %v3062
    %v4164 = vunpack.c.l.b16 %v3063
    %v4165 = vunpack.c.l.b16 %v3064
    %v4166 = vunpack.c.l.b16 %v3065
    %v4167 = vunpack.c.l.b16 %v3066
    %v4168 = vunpack.c.l.b16 %v3067
    %v4169 = vunpack.c.l.b16 %v3068
    %v4170 = vunpack.c.l.b16 %v3069
    %v4171 = vunpack.c.l.b16 %v3070
    %v4172 = vunpack.c.l.b16 %v3071
    %v4173 = vunpack.c.l.b16 %v3072
    %v4174 = vunpack.c.l.b16 %v3073
    %v4175 = vunpack.c.l.b16 %v3074
    %v4176 = vunpack.c.l.b16 %v3075
    %v4177 = vunpack.c.l.b16 %v3076
    %v4178 = vunpack.c.l.b16 %v3077
    %v4179 = vunpack.c.l.b16 %v3078
    %v4180 = vunpack.c.l.b16 %v3079
    %v4181 = vunpack.c.l.b16 %v3080
    %v4182 = vunpack.c.l.b16 %v3081
    %v4183 = vunpack.c.l.b16 %v3082
    %v4184 = vunpack.c.l.b16 %v3083
    %v4185 = vunpack.c.l.b16 %v3084
    %v4186 = vunpack.c.l.b16 %v3085
    %v4187 = vunpack.c.l.b16 %v3086
    %v4188 = vunpack.c.l.b16 %v3087
    %v4189 = vunpack.c.l.b16 %v3088
    %v4190 = vunpack.c.l.b16 %v3089
    %v4191 = vunpack.c.l.b16 %v3090
    %v4192 = vunpack.c.l.b16 %v3091
    %v4193 = vunpack.c.l.b16 %v3092
    %v4194 = vpack.c.b16 %v3683, %v3682
    %v4195 = vpack.c.b16 %v3685, %v3684
    %v4196 = vpack.c.b16 %v3687, %v3686
    %v4197 = vpack.c.b16 %v3689, %v3688
    %v4198 = vpack.c.b16 %v3691, %v3690
    %v4199 = vpack.c.b16 %v3693, %v3692
    %v4200 = vpack.c.b16 %v3695, %v3694
    %v4201 = vpack.c.b16 %v3697, %v3696
    %v4202 = vpack.c.b16 %v3699, %v3698
    %v4203 = vpack.c.b16 %v3701, %v3700
    %v4204 = vpack.c.b16 %v3703, %v3702
    %v4205 = vpack.c.b16 %v3705, %v3704
    %v4206 = vpack.c.b16 %v3707, %v3706
    %v4207 = vpack.c.b16 %v3709, %v3708
    %v4208 = vpack.c.b16 %v3711, %v3710
    %v4209 = vpack.c.b16 %v3713, %v3712
    %v4210 = vpack.c.b16 %v3715, %v3714
    %v4211 = vpack.c.b16 %v3717, %v3716
    %v4212 = vpack.c.b16 %v3719, %v3718
    %v4213 = vpack.c.b16 %v3721, %v3720
    %v4214 = vpack.c.b16 %v3723, %v3722
    %v4215 = vpack.c.b16 %v3725, %v3724
    %v4216 = vpack.c.b16 %v3727, %v3726
    %v4217 = vpack.c.b16 %v3729, %v3728
    %v4218 = vpack.c.b16 %v3731, %v3730
    %v4219 = vpack.c.b16 %v3733, %v3732
    %v4220 = vpack.c.b16 %v3735, %v3734
    %v4221 = vpack.c.b16 %v3737, %v3736
    %v4222 = vpack.c.b16 %v3739, %v3738
    %v4223 = vpack.c.b16 %v3741, %v3740
    %v4224 = vpack.c.b16 %v3743, %v3742
    %v4225 = vpack.c.b16 %v3745, %v3744
    %v4226 = vpack.c.b16 %v3747, %v3746
    %v4227 = vpack.c.b16 %v3749, %v3748
    %v4228 = vpack.c.b16 %v3751, %v3750
    %v4229 = vpack.c.b16 %v3753, %v3752
    %v4230 = vpack.c.b16 %v3755, %v3754
    %v4231 = vpack.c.b16 %v3757, %v3756
    %v4232 = vpack.c.b16 %v3759, %v3758
    %v4233 = vpack.c.b16 %v3761, %v3760
    %v4234 = vpack.c.b16 %v3763, %v3762
    %v4235 = vpack.c.b16 %v3765, %v3764
    %v4236 = vpack.c.b16 %v3767, %v3766
    %v4237 = vpack.c.b16 %v3769, %v3768
    %v4238 = vpack.c.b16 %v3771, %v3770
    %v4239 = vpack.c.b16 %v3773, %v3772
    %v4240 = vpack.c.b16 %v3775, %v3774
    %v4241 = vpack.c.b16 %v3777, %v3776
    %v4242 = vpack.c.b16 %v3779, %v3778
    %v4243 = vpack.c.b16 %v3781, %v3780
    %v4244 = vpack.c.b16 %v3783, %v3782
    %v4245 = vpack.c.b16 %v3785, %v3784
    %v4246 = vpack.c.b16 %v3787, %v3786
    %v4247 = vpack.c.b16 %v3789, %v3788
    %v4248 = vpack.c.b16 %v3791, %v3790
    %v4249 = vpack.c.b16 %v3793, %v3792
    %v4250 = vpack.c.b16 %v3795, %v3794
    %v4251 = vpack.c.b16 %v3797, %v3796
    %v4252 = vpack.c.b16 %v3799, %v3798
    %v4253 = vpack.c.b16 %v3801, %v3800
    %v4254 = vpack.c.b16 %v3803, %v3802
    %v4255 = vpack.c.b16 %v3805, %v3804
    %v4256 = vpack.c.b16 %v3807, %v3806
    %v4257 = vpack.c.b16 %v3809, %v3808
    %v4258 = vpack.c.b16 %v3811, %v3810
    %v4259 = vpack.c.b16 %v3813, %v3812
    %v4260 = vpack.c.b16 %v3815, %v3814
    %v4261 = vpack.c.b16 %v3817, %v3816
    %v4262 = vpack.c.b16 %v3819, %v3818
    %v4263 = vpack.c.b16 %v3821, %v3820
    %v4264 = vpack.c.b16 %v3823, %v3822
    %v4265 = vpack.c.b16 %v3825, %v3824
    %v4266 = vpack.c.b16 %v3827, %v3826
    %v4267 = vpack.c.b16 %v3829, %v3828
    %v4268 = vpack.c.b16 %v3831, %v3830
    %v4269 = vpack.c.b16 %v3833, %v3832
    %v4270 = vpack.c.b16 %v3835, %v3834
    %v4271 = vpack.c.b16 %v3837, %v3836
    %v4272 = vpack.c.b16 %v3839, %v3838
    %v4273 = vpack.c.b16 %v3841, %v3840
    %v4274 = vpack.c.b16 %v3843, %v3842
    %v4275 = vpack.c.b16 %v3845, %v3844
    %v4276 = vpack.c.b16 %v3847, %v3846
    %v4277 = vpack.c.b16 %v3849, %v3848
    %v4278 = vpack.c.b16 %v3851, %v3850
    %v4279 = vpack.c.b16 %v3853, %v3852
    %v4280 = vpack.c.b16 %v3855, %v3854
    %v4281 = vpack.c.b16 %v3857, %v3856
    %v4282 = vpack.c.b16 %v3859, %v3858
    %v4283 = vpack.c.b16 %v3861, %v3860
    %v4284 = vpack.c.b16 %v3863, %v3862
    %v4285 = vpack.c.b16 %v3865, %v3864
    %v4286 = vpack.c.b16 %v3867, %v3866
    %v4287 = vpack.c.b16 %v3869, %v3868
    %v4288 = vpack.c.b16 %v3871, %v3870
    %v4289 = vpack.c.b16 %v3873, %v3872
    %v4290 = vpack.c.b16 %v3875, %v3874
    %v4291 = vpack.c.b16 %v3877, %v3876
    %v4292 = vpack.c.b16 %v3879, %v3878
    %v4293 = vpack.c.b16 %v3881, %v3880
    %v4294 = vpack.c.b16 %v3883, %v3882
    %v4295 = vpack.c.b16 %v3885, %v3884
    %v4296 = vpack.c.b16 %v3887, %v3886
    %v4297 = vpack.c.b16 %v3889, %v3888
    %v4298 = vpack.c.b16 %v3891, %v3890
    %v4299 = vpack.c.b16 %v3893, %v3892
    %v4300 = vpack.c.b16 %v3895, %v3894
    %v4301 = vpack.c.b16 %v3897, %v3896
    %v4302 = vpack.c.b16 %v3899, %v3898
    %v4303 = vpack.c.b16 %v3901, %v3900
    %v4304 = vpack.c.b16 %v3903, %v3902
    %v4305 = vpack.c.b16 %v3905, %v3904
    %v4306 = vpack.c.b16 %v3907, %v3906
    %v4307 = vpack.c.b16 %v3909, %v3908
    %v4308 = vpack.c.b16 %v3911, %v3910
    %v4309 = vpack.c.b16 %v3913, %v3912
    %v4310 = vpack.c.b16 %v3915, %v3914
    %v4311 = vpack.c.b16 %v3917, %v3916
    %v4312 = vpack.c.b16 %v3919, %v3918
    %v4313 = vpack.c.b16 %v3921, %v3920
    %v4314 = vpack.c.b16 %v3923, %v3922
    %v4315 = vpack.c.b16 %v3925, %v3924
    %v4316 = vpack.c.b16 %v3927, %v3926
    %v4317 = vpack.c.b16 %v3929, %v3928
    %v4318 = vpack.c.b16 %v3931, %v3930
    %v4319 = vpack.c.b16 %v3933, %v3932
    %v4320 = vpack.c.b16 %v3935, %v3934
    %v4321 = vpack.c.b16 %v3937, %v3936
    %v4322 = vpack.c.b16 %v3939, %v3938
    %v4323 = vpack.c.b16 %v3941, %v3940
    %v4324 = vpack.c.b16 %v3943, %v3942
    %v4325 = vpack.c.b16 %v3945, %v3944
    %v4326 = vpack.c.b16 %v3947, %v3946
    %v4327 = vpack.c.b16 %v3949, %v3948
    %v4328 = vpack.c.b16 %v3951, %v3950
    %v4329 = vpack.c.b16 %v3953, %v3952
    %v4330 = vpack.c.b16 %v3955, %v3954
    %v4331 = vpack.c.b16 %v3957, %v3956
    %v4332 = vpack.c.b16 %v3959, %v3958
    %v4333 = vpack.c.b16 %v3961, %v3960
    %v4334 = vpack.c.b16 %v3963, %v3962
    %v4335 = vpack.c.b16 %v3965, %v3964
    %v4336 = vpack.c.b16 %v3967, %v3966
    %v4337 = vpack.c.b16 %v3969, %v3968
    %v4338 = vpack.c.b16 %v3971, %v3970
    %v4339 = vpack.c.b16 %v3973, %v3972
    %v4340 = vpack.c.b16 %v3975, %v3974
    %v4341 = vpack.c.b16 %v3977, %v3976
    %v4342 = vpack.c.b16 %v3979, %v3978
    %v4343 = vpack.c.b16 %v3981, %v3980
    %v4344 = vpack.c.b16 %v3983, %v3982
    %v4345 = vpack.c.b16 %v3985, %v3984
    %v4346 = vpack.c.b16 %v3987, %v3986
    %v4347 = vpack.c.b16 %v3989, %v3988
    %v4348 = vpack.c.b16 %v3991, %v3990
    %v4349 = vpack.c.b16 %v3993, %v3992
    %v4350 = vpack.c.b16 %v3995, %v3994
    %v4351 = vpack.c.b16 %v3997, %v3996
    %v4352 = vpack.c.b16 %v3999, %v3998
    %v4353 = vpack.c.b16 %v4001, %v4000
    %v4354 = vpack.c.b16 %v4003, %v4002
    %v4355 = vpack.c.b16 %v4005, %v4004
    %v4356 = vpack.c.b16 %v4007, %v4006
    %v4357 = vpack.c.b16 %v4009, %v4008
    %v4358 = vpack.c.b16 %v4011, %v4010
    %v4359 = vpack.c.b16 %v4013, %v4012
    %v4360 = vpack.c.b16 %v4015, %v4014
    %v4361 = vpack.c.b16 %v4017, %v4016
    %v4362 = vpack.c.b16 %v4019, %v4018
    %v4363 = vpack.c.b16 %v4021, %v4020
    %v4364 = vpack.c.b16 %v4023, %v4022
    %v4365 = vpack.c.b16 %v4025, %v4024
    %v4366 = vpack.c.b16 %v4027, %v4026
    %v4367 = vpack.c.b16 %v4029, %v4028
    %v4368 = vpack.c.b16 %v4031, %v4030
    %v4369 = vpack.c.b16 %v4033, %v4032
    %v4370 = vpack.c.b16 %v4035, %v4034
    %v4371 = vpack.c.b16 %v4037, %v4036
    %v4372 = vpack.c.b16 %v4039, %v4038
    %v4373 = vpack.c.b16 %v4041, %v4040
    %v4374 = vpack.c.b16 %v4043, %v4042
    %v4375 = vpack.c.b16 %v4045, %v4044
    %v4376 = vpack.c.b16 %v4047, %v4046
    %v4377 = vpack.c.b16 %v4049, %v4048
    %v4378 = vpack.c.b16 %v4051, %v4050
    %v4379 = vpack.c.b16 %v4053, %v4052
    %v4380 = vpack.c.b16 %v4055, %v4054
    %v4381 = vpack.c.b16 %v4057, %v4056
    %v4382 = vpack.c.b16 %v4059, %v4058
    %v4383 = vpack.c.b16 %v4061, %v4060
    %v4384 = vpack.c.b16 %v4063, %v4062
    %v4385 = vpack.c.b16 %v4065, %v4064
    %v4386 = vpack.c.b16 %v4067, %v4066
    %v4387 = vpack.c.b16 %v4069, %v4068
    %v4388 = vpack.c.b16 %v4071, %v4070
    %v4389 = vpack.c.b16 %v4073, %v4072
    %v4390 = vpack.c.b16 %v4075, %v4074
    %v4391 = vpack.c.b16 %v4077, %v4076
    %v4392 = vpack.c.b16 %v4079, %v4078
    %v4393 = vpack.c.b16 %v4081, %v4080
    %v4394 = vpack.c.b16 %v4083, %v4082
    %v4395 = vpack.c.b16 %v4085, %v4084
    %v4396 = vpack.c.b16 %v4087, %v4086
    %v4397 = vpack.c.b16 %v4089, %v4088
    %v4398 = vpack.c.b16 %v4091, %v4090
    %v4399 = vpack.c.b16 %v4093, %v4092
    %v4400 = vpack.c.b16 %v4095, %v4094
    %v4401 = vpack.c.b16 %v4097, %v4096
    %v4402 = vpack.c.b16 %v4099, %v4098
    %v4403 = vpack.c.b16 %v4101, %v4100
    %v4404 = vpack.c.b16 %v4103, %v4102
    %v4405 = vpack.c.b16 %v4105, %v4104
    %v4406 = vpack.c.b16 %v4107, %v4106
    %v4407 = vpack.c.b16 %v4109, %v4108
    %v4408 = vpack.c.b16 %v4111, %v4110
    %v4409 = vpack.c.b16 %v4113, %v4112
    %v4410 = vpack.c.b16 %v4115, %v4114
    %v4411 = vpack.c.b16 %v4117, %v4116
    %v4412 = vpack.c.b16 %v4119, %v4118
    %v4413 = vpack.c.b16 %v4121, %v4120
    %v4414 = vpack.c.b16 %v4123, %v4122
    %v4415 = vpack.c.b16 %v4125, %v4124
    %v4416 = vpack.c.b16 %v4127, %v4126
    %v4417 = vpack.c.b16 %v4129, %v4128
    %v4418 = vpack.c.b16 %v4131, %v4130
    %v4419 = vpack.c.b16 %v4133, %v4132
    %v4420 = vpack.c.b16 %v4135, %v4134
    %v4421 = vpack.c.b16 %v4137, %v4136
    %v4422 = vpack.c.b16 %v4139, %v4138
    %v4423 = vpack.c.b16 %v4141, %v4140
    %v4424 = vpack.c.b16 %v4143, %v4142
    %v4425 = vpack.c.b16 %v4145, %v4144
    %v4426 = vpack.c.b16 %v4147, %v4146
    %v4427 = vpack.c.b16 %v4149, %v4148
    %v4428 = vpack.c.b16 %v4151, %v4150
    %v4429 = vpack.c.b16 %v4153, %v4152
    %v4430 = vpack.c.b16 %v4155, %v4154
    %v4431 = vpack.c.b16 %v4157, %v4156
    %v4432 = vpack.c.b16 %v4159, %v4158
    %v4433 = vpack.c.b16 %v4161, %v4160
    %v4434 = vpack.c.b16 %v4163, %v4162
    %v4435 = vpack.c.b16 %v4165, %v4164
    %v4436 = vpack.c.b16 %v4167, %v4166
    %v4437 = vpack.c.b16 %v4169, %v4168
    %v4438 = vpack.c.b16 %v4171, %v4170
    %v4439 = vpack.c.b16 %v4173, %v4172
    %v4440 = vpack.c.b16 %v4175, %v4174
    %v4441 = vpack.c.b16 %v4177, %v4176
    %v4442 = vpack.c.b16 %v4179, %v4178
    %v4443 = vpack.c.b16 %v4181, %v4180
    %v4444 = vpack.c.b16 %v4183, %v4182
    %v4445 = vpack.c.b16 %v4185, %v4184
    %v4446 = vpack.c.b16 %v4187, %v4186
    %v4447 = vpack.c.b16 %v4189, %v4188
    %v4448 = vpack.c.b16 %v4191, %v4190
    %v4449 = vpack.c.b16 %v4193, %v4192
    %4706 = vmatpush.bf16.msra.mxu0 %v4201
    %4707 = vmatpush.bf16.msra.mxu0 %v4200
    %4708 = vmatpush.bf16.msra.mxu0 %v4199
    %4709 = vmatpush.bf16.msra.mxu0 %v4198
    %4710 = vmatpush.bf16.msra.mxu0 %v4197
    %4711 = vmatpush.bf16.msra.mxu0 %v4196
    %4712 = vmatpush.bf16.msra.mxu0 %v4195
    %4713 = vmatpush.bf16.msra.mxu0 %v4194
    %4714 = vmatmul.bf16.gmra.mxu0 %v3100
    %v4715 = vpop.f32.mrf.mxu0
    %v4716 = vadd.f32 %v3096, %v4715
    %v4717 = vpop.f32.mrf.mxu0
    %4718 = vdwg.mxu0
    %4719 = vmatpush.bf16.msra.mxu0 %v4209
    %4720 = vmatpush.bf16.msra.mxu0 %v4208
    %4721 = vmatpush.bf16.msra.mxu0 %v4207
    %4722 = vmatpush.bf16.msra.mxu0 %v4206
    %4723 = vmatpush.bf16.msra.mxu0 %v4205
    %4724 = vmatpush.bf16.msra.mxu0 %v4204
    %4725 = vmatpush.bf16.msra.mxu0 %v4203
    %4726 = vmatpush.bf16.msra.mxu0 %v4202
    %4727 = vmatmul.bf16.gmra.mxu0 %v3101
    %v4728 = vpop.f32.mrf.mxu0
    %v4729 = vadd.f32 %v4716, %v4728
    %v4730 = vpop.f32.mrf.mxu0
    %4731 = vdwg.mxu0
    %4732 = vmatpush.bf16.msra.mxu0 %v4217
    %4733 = vmatpush.bf16.msra.mxu0 %v4216
    %4734 = vmatpush.bf16.msra.mxu0 %v4215
    %4735 = vmatpush.bf16.msra.mxu0 %v4214
    %4736 = vmatpush.bf16.msra.mxu0 %v4213
    %4737 = vmatpush.bf16.msra.mxu0 %v4212
    %4738 = vmatpush.bf16.msra.mxu0 %v4211
    %4739 = vmatpush.bf16.msra.mxu0 %v4210
    %4740 = vmatmul.bf16.gmra.mxu0 %v3102
    %v4741 = vpop.f32.mrf.mxu0
    %v4742 = vadd.f32 %v4729, %v4741
    %v4743 = vpop.f32.mrf.mxu0
    %4744 = vdwg.mxu0
    %4745 = vmatpush.bf16.msra.mxu0 %v4225
    %4746 = vmatpush.bf16.msra.mxu0 %v4224
    %4747 = vmatpush.bf16.msra.mxu0 %v4223
    %4748 = vmatpush.bf16.msra.mxu0 %v4222
    %4749 = vmatpush.bf16.msra.mxu0 %v4221
    %4750 = vmatpush.bf16.msra.mxu0 %v4220
    %4751 = vmatpush.bf16.msra.mxu0 %v4219
    %4752 = vmatpush.bf16.msra.mxu0 %v4218
    %4753 = vmatmul.bf16.gmra.mxu0 %v3103
    %v4754 = vpop.f32.mrf.mxu0
    %v4755 = vadd.f32 %v4742, %v4754
    %v4756 = vpop.f32.mrf.mxu0
    %4757 = vdwg.mxu0
    %4758 = vmatpush.bf16.msra.mxu0 %v4233
    %4759 = vmatpush.bf16.msra.mxu0 %v4232
    %4760 = vmatpush.bf16.msra.mxu0 %v4231
    %4761 = vmatpush.bf16.msra.mxu0 %v4230
    %4762 = vmatpush.bf16.msra.mxu0 %v4229
    %4763 = vmatpush.bf16.msra.mxu0 %v4228
    %4764 = vmatpush.bf16.msra.mxu0 %v4227
    %4765 = vmatpush.bf16.msra.mxu0 %v4226
    %4766 = vmatmul.bf16.gmra.mxu0 %v3104
    %v4767 = vpop.f32.mrf.mxu0
    %v4768 = vadd.f32 %v4755, %v4767
    %v4769 = vpop.f32.mrf.mxu0
    %4770 = vdwg.mxu0
    %4771 = vmatpush.bf16.msra.mxu0 %v4241
    %4772 = vmatpush.bf16.msra.mxu0 %v4240
    %4773 = vmatpush.bf16.msra.mxu0 %v4239
    %4774 = vmatpush.bf16.msra.mxu0 %v4238
    %4775 = vmatpush.bf16.msra.mxu0 %v4237
    %4776 = vmatpush.bf16.msra.mxu0 %v4236
    %4777 = vmatpush.bf16.msra.mxu0 %v4235
    %4778 = vmatpush.bf16.msra.mxu0 %v4234
    %4779 = vmatmul.bf16.gmra.mxu0 %v3105
    %v4780 = vpop.f32.mrf.mxu0
    %v4781 = vadd.f32 %v4768, %v4780
    %v4782 = vpop.f32.mrf.mxu0
    %4783 = vdwg.mxu0
    %4784 = vmatpush.bf16.msra.mxu0 %v4249
    %4785 = vmatpush.bf16.msra.mxu0 %v4248
    %4786 = vmatpush.bf16.msra.mxu0 %v4247
    %4787 = vmatpush.bf16.msra.mxu0 %v4246
    %4788 = vmatpush.bf16.msra.mxu0 %v4245
    %4789 = vmatpush.bf16.msra.mxu0 %v4244
    %4790 = vmatpush.bf16.msra.mxu0 %v4243
    %4791 = vmatpush.bf16.msra.mxu0 %v4242
    %4792 = vmatmul.bf16.gmra.mxu0 %v3106
    %v4793 = vpop.f32.mrf.mxu0
    %v4794 = vadd.f32 %v4781, %v4793
    %v4795 = vpop.f32.mrf.mxu0
    %4796 = vdwg.mxu0
    %4797 = vmatpush.bf16.msra.mxu0 %v4257
    %4798 = vmatpush.bf16.msra.mxu0 %v4256
    %4799 = vmatpush.bf16.msra.mxu0 %v4255
    %4800 = vmatpush.bf16.msra.mxu0 %v4254
    %4801 = vmatpush.bf16.msra.mxu0 %v4253
    %4802 = vmatpush.bf16.msra.mxu0 %v4252
    %4803 = vmatpush.bf16.msra.mxu0 %v4251
    %4804 = vmatpush.bf16.msra.mxu0 %v4250
    %4805 = vmatmul.bf16.gmra.mxu0 %v3107
    %v4806 = vpop.f32.mrf.mxu0
    %v4807 = vadd.f32 %v4794, %v4806
    %v4808 = vpop.f32.mrf.mxu0
    %4809 = vdwg.mxu0
    %4810 = vmatpush.bf16.msra.mxu0 %v4265
    %4811 = vmatpush.bf16.msra.mxu0 %v4264
    %4812 = vmatpush.bf16.msra.mxu0 %v4263
    %4813 = vmatpush.bf16.msra.mxu0 %v4262
    %4814 = vmatpush.bf16.msra.mxu0 %v4261
    %4815 = vmatpush.bf16.msra.mxu0 %v4260
    %4816 = vmatpush.bf16.msra.mxu0 %v4259
    %4817 = vmatpush.bf16.msra.mxu0 %v4258
    %4818 = vmatmul.bf16.gmra.mxu0 %v3110
    %v4819 = vpop.f32.mrf.mxu0
    %v4820 = vadd.f32 %v4807, %v4819
    %v4821 = vpop.f32.mrf.mxu0
    %4822 = vdwg.mxu0
    %4823 = vmatpush.bf16.msra.mxu0 %v4273
    %4824 = vmatpush.bf16.msra.mxu0 %v4272
    %4825 = vmatpush.bf16.msra.mxu0 %v4271
    %4826 = vmatpush.bf16.msra.mxu0 %v4270
    %4827 = vmatpush.bf16.msra.mxu0 %v4269
    %4828 = vmatpush.bf16.msra.mxu0 %v4268
    %4829 = vmatpush.bf16.msra.mxu0 %v4267
    %4830 = vmatpush.bf16.msra.mxu0 %v4266
    %4831 = vmatmul.bf16.gmra.mxu0 %v3111
    %v4832 = vpop.f32.mrf.mxu0
    %v4833 = vadd.f32 %v4820, %v4832
    %v4834 = vpop.f32.mrf.mxu0
    %4835 = vdwg.mxu0
    %4836 = vmatpush.bf16.msra.mxu0 %v4281
    %4837 = vmatpush.bf16.msra.mxu0 %v4280
    %4838 = vmatpush.bf16.msra.mxu0 %v4279
    %4839 = vmatpush.bf16.msra.mxu0 %v4278
    %4840 = vmatpush.bf16.msra.mxu0 %v4277
    %4841 = vmatpush.bf16.msra.mxu0 %v4276
    %4842 = vmatpush.bf16.msra.mxu0 %v4275
    %4843 = vmatpush.bf16.msra.mxu0 %v4274
    %4844 = vmatmul.bf16.gmra.mxu0 %v3112
    %v4845 = vpop.f32.mrf.mxu0
    %v4846 = vadd.f32 %v4833, %v4845
    %v4847 = vpop.f32.mrf.mxu0
    %4848 = vdwg.mxu0
    %4849 = vmatpush.bf16.msra.mxu0 %v4289
    %4850 = vmatpush.bf16.msra.mxu0 %v4288
    %4851 = vmatpush.bf16.msra.mxu0 %v4287
    %4852 = vmatpush.bf16.msra.mxu0 %v4286
    %4853 = vmatpush.bf16.msra.mxu0 %v4285
    %4854 = vmatpush.bf16.msra.mxu0 %v4284
    %4855 = vmatpush.bf16.msra.mxu0 %v4283
    %4856 = vmatpush.bf16.msra.mxu0 %v4282
    %4857 = vmatmul.bf16.gmra.mxu0 %v3113
    %v4858 = vpop.f32.mrf.mxu0
    %v4859 = vadd.f32 %v4846, %v4858
    %v4860 = vpop.f32.mrf.mxu0
    %4861 = vdwg.mxu0
    %4862 = vmatpush.bf16.msra.mxu0 %v4297
    %4863 = vmatpush.bf16.msra.mxu0 %v4296
    %4864 = vmatpush.bf16.msra.mxu0 %v4295
    %4865 = vmatpush.bf16.msra.mxu0 %v4294
    %4866 = vmatpush.bf16.msra.mxu0 %v4293
    %4867 = vmatpush.bf16.msra.mxu0 %v4292
    %4868 = vmatpush.bf16.msra.mxu0 %v4291
    %4869 = vmatpush.bf16.msra.mxu0 %v4290
    %4870 = vmatmul.bf16.gmra.mxu0 %v3114
    %v4871 = vpop.f32.mrf.mxu0
    %v4872 = vadd.f32 %v4859, %v4871
    %v4873 = vpop.f32.mrf.mxu0
    %4874 = vdwg.mxu0
    %4875 = vmatpush.bf16.msra.mxu0 %v4305
    %4876 = vmatpush.bf16.msra.mxu0 %v4304
    %4877 = vmatpush.bf16.msra.mxu0 %v4303
    %4878 = vmatpush.bf16.msra.mxu0 %v4302
    %4879 = vmatpush.bf16.msra.mxu0 %v4301
    %4880 = vmatpush.bf16.msra.mxu0 %v4300
    %4881 = vmatpush.bf16.msra.mxu0 %v4299
    %4882 = vmatpush.bf16.msra.mxu0 %v4298
    %4883 = vmatmul.bf16.gmra.mxu0 %v3115
    %v4884 = vpop.f32.mrf.mxu0
    %v4885 = vadd.f32 %v4872, %v4884
    %v4886 = vpop.f32.mrf.mxu0
    %4887 = vdwg.mxu0
    %4888 = vmatpush.bf16.msra.mxu0 %v4313
    %4889 = vmatpush.bf16.msra.mxu0 %v4312
    %4890 = vmatpush.bf16.msra.mxu0 %v4311
    %4891 = vmatpush.bf16.msra.mxu0 %v4310
    %4892 = vmatpush.bf16.msra.mxu0 %v4309
    %4893 = vmatpush.bf16.msra.mxu0 %v4308
    %4894 = vmatpush.bf16.msra.mxu0 %v4307
    %4895 = vmatpush.bf16.msra.mxu0 %v4306
    %4896 = vmatmul.bf16.gmra.mxu0 %v3116
    %v4897 = vpop.f32.mrf.mxu0
    %v4898 = vadd.f32 %v4885, %v4897
    %v4899 = vpop.f32.mrf.mxu0
    %4900 = vdwg.mxu0
    %4901 = vmatpush.bf16.msra.mxu0 %v4321
    %4902 = vmatpush.bf16.msra.mxu0 %v4320
    %4903 = vmatpush.bf16.msra.mxu0 %v4319
    %4904 = vmatpush.bf16.msra.mxu0 %v4318
    %4905 = vmatpush.bf16.msra.mxu0 %v4317
    %4906 = vmatpush.bf16.msra.mxu0 %v4316
    %4907 = vmatpush.bf16.msra.mxu0 %v4315
    %4908 = vmatpush.bf16.msra.mxu0 %v4314
    %4909 = vmatmul.bf16.gmra.mxu0 %v3117
    %v4910 = vpop.f32.mrf.mxu0
    %v4911 = vadd.f32 %v4898, %v4910
    %v4912 = vpop.f32.mrf.mxu0
    %4913 = vdwg.mxu0
    %4914 = vmatpush.bf16.msra.mxu0 %v4329
    %4915 = vmatpush.bf16.msra.mxu0 %v4328
    %4916 = vmatpush.bf16.msra.mxu0 %v4327
    %4917 = vmatpush.bf16.msra.mxu0 %v4326
    %4918 = vmatpush.bf16.msra.mxu0 %v4325
    %4919 = vmatpush.bf16.msra.mxu0 %v4324
    %4920 = vmatpush.bf16.msra.mxu0 %v4323
    %4921 = vmatpush.bf16.msra.mxu0 %v4322
    %4922 = vmatmul.bf16.gmra.mxu0 %v3120
    %v4923 = vpop.f32.mrf.mxu0
    %v4924 = vadd.f32 %v4911, %v4923
    %v4925 = vpop.f32.mrf.mxu0
    %4926 = vdwg.mxu0
    %4927 = vmatpush.bf16.msra.mxu0 %v4337
    %4928 = vmatpush.bf16.msra.mxu0 %v4336
    %4929 = vmatpush.bf16.msra.mxu0 %v4335
    %4930 = vmatpush.bf16.msra.mxu0 %v4334
    %4931 = vmatpush.bf16.msra.mxu0 %v4333
    %4932 = vmatpush.bf16.msra.mxu0 %v4332
    %4933 = vmatpush.bf16.msra.mxu0 %v4331
    %4934 = vmatpush.bf16.msra.mxu0 %v4330
    %4935 = vmatmul.bf16.gmra.mxu0 %v3121
    %v4936 = vpop.f32.mrf.mxu0
    %v4937 = vadd.f32 %v4924, %v4936
    %v4938 = vpop.f32.mrf.mxu0
    %4939 = vdwg.mxu0
    %4940 = vmatpush.bf16.msra.mxu0 %v4345
    %4941 = vmatpush.bf16.msra.mxu0 %v4344
    %4942 = vmatpush.bf16.msra.mxu0 %v4343
    %4943 = vmatpush.bf16.msra.mxu0 %v4342
    %4944 = vmatpush.bf16.msra.mxu0 %v4341
    %4945 = vmatpush.bf16.msra.mxu0 %v4340
    %4946 = vmatpush.bf16.msra.mxu0 %v4339
    %4947 = vmatpush.bf16.msra.mxu0 %v4338
    %4948 = vmatmul.bf16.gmra.mxu0 %v3122
    %v4949 = vpop.f32.mrf.mxu0
    %v4950 = vadd.f32 %v4937, %v4949
    %v4951 = vpop.f32.mrf.mxu0
    %4952 = vdwg.mxu0
    %4953 = vmatpush.bf16.msra.mxu0 %v4353
    %4954 = vmatpush.bf16.msra.mxu0 %v4352
    %4955 = vmatpush.bf16.msra.mxu0 %v4351
    %4956 = vmatpush.bf16.msra.mxu0 %v4350
    %4957 = vmatpush.bf16.msra.mxu0 %v4349
    %4958 = vmatpush.bf16.msra.mxu0 %v4348
    %4959 = vmatpush.bf16.msra.mxu0 %v4347
    %4960 = vmatpush.bf16.msra.mxu0 %v4346
    %4961 = vmatmul.bf16.gmra.mxu0 %v3123
    %v4962 = vpop.f32.mrf.mxu0
    %v4963 = vadd.f32 %v4950, %v4962
    %v4964 = vpop.f32.mrf.mxu0
    %4965 = vdwg.mxu0
    %4966 = vmatpush.bf16.msra.mxu0 %v4361
    %4967 = vmatpush.bf16.msra.mxu0 %v4360
    %4968 = vmatpush.bf16.msra.mxu0 %v4359
    %4969 = vmatpush.bf16.msra.mxu0 %v4358
    %4970 = vmatpush.bf16.msra.mxu0 %v4357
    %4971 = vmatpush.bf16.msra.mxu0 %v4356
    %4972 = vmatpush.bf16.msra.mxu0 %v4355
    %4973 = vmatpush.bf16.msra.mxu0 %v4354
    %4974 = vmatmul.bf16.gmra.mxu0 %v3124
    %v4975 = vpop.f32.mrf.mxu0
    %v4976 = vadd.f32 %v4963, %v4975
    %v4977 = vpop.f32.mrf.mxu0
    %4978 = vdwg.mxu0
    %4979 = vmatpush.bf16.msra.mxu0 %v4369
    %4980 = vmatpush.bf16.msra.mxu0 %v4368
    %4981 = vmatpush.bf16.msra.mxu0 %v4367
    %4982 = vmatpush.bf16.msra.mxu0 %v4366
    %4983 = vmatpush.bf16.msra.mxu0 %v4365
    %4984 = vmatpush.bf16.msra.mxu0 %v4364
    %4985 = vmatpush.bf16.msra.mxu0 %v4363
    %4986 = vmatpush.bf16.msra.mxu0 %v4362
    %4987 = vmatmul.bf16.gmra.mxu0 %v3125
    %v4988 = vpop.f32.mrf.mxu0
    %v4989 = vadd.f32 %v4976, %v4988
    %v4990 = vpop.f32.mrf.mxu0
    %4991 = vdwg.mxu0
    %4992 = vmatpush.bf16.msra.mxu0 %v4377
    %4993 = vmatpush.bf16.msra.mxu0 %v4376
    %4994 = vmatpush.bf16.msra.mxu0 %v4375
    %4995 = vmatpush.bf16.msra.mxu0 %v4374
    %4996 = vmatpush.bf16.msra.mxu0 %v4373
    %4997 = vmatpush.bf16.msra.mxu0 %v4372
    %4998 = vmatpush.bf16.msra.mxu0 %v4371
    %4999 = vmatpush.bf16.msra.mxu0 %v4370
    %5000 = vmatmul.bf16.gmra.mxu0 %v3126
    %v5001 = vpop.f32.mrf.mxu0
    %v5002 = vadd.f32 %v4989, %v5001
    %v5003 = vpop.f32.mrf.mxu0
    %5004 = vdwg.mxu0
    %5005 = vmatpush.bf16.msra.mxu0 %v4385
    %5006 = vmatpush.bf16.msra.mxu0 %v4384
    %5007 = vmatpush.bf16.msra.mxu0 %v4383
    %5008 = vmatpush.bf16.msra.mxu0 %v4382
    %5009 = vmatpush.bf16.msra.mxu0 %v4381
    %5010 = vmatpush.bf16.msra.mxu0 %v4380
    %5011 = vmatpush.bf16.msra.mxu0 %v4379
    %5012 = vmatpush.bf16.msra.mxu0 %v4378
    %5013 = vmatmul.bf16.gmra.mxu0 %v3127
    %v5014 = vpop.f32.mrf.mxu0
    %v5015 = vadd.f32 %v5002, %v5014
    %v5016 = vpop.f32.mrf.mxu0
    %5017 = vdwg.mxu0
    %5018 = vmatpush.bf16.msra.mxu0 %v4393
    %5019 = vmatpush.bf16.msra.mxu0 %v4392
    %5020 = vmatpush.bf16.msra.mxu0 %v4391
    %5021 = vmatpush.bf16.msra.mxu0 %v4390
    %5022 = vmatpush.bf16.msra.mxu0 %v4389
    %5023 = vmatpush.bf16.msra.mxu0 %v4388
    %5024 = vmatpush.bf16.msra.mxu0 %v4387
    %5025 = vmatpush.bf16.msra.mxu0 %v4386
    %5026 = vmatmul.bf16.gmra.mxu0 %v3130
    %v5027 = vpop.f32.mrf.mxu0
    %v5028 = vadd.f32 %v5015, %v5027
    %v5029 = vpop.f32.mrf.mxu0
    %5030 = vdwg.mxu0
    %5031 = vmatpush.bf16.msra.mxu0 %v4401
    %5032 = vmatpush.bf16.msra.mxu0 %v4400
    %5033 = vmatpush.bf16.msra.mxu0 %v4399
    %5034 = vmatpush.bf16.msra.mxu0 %v4398
    %5035 = vmatpush.bf16.msra.mxu0 %v4397
    %5036 = vmatpush.bf16.msra.mxu0 %v4396
    %5037 = vmatpush.bf16.msra.mxu0 %v4395
    %5038 = vmatpush.bf16.msra.mxu0 %v4394
    %5039 = vmatmul.bf16.gmra.mxu0 %v3131
    %v5040 = vpop.f32.mrf.mxu0
    %v5041 = vadd.f32 %v5028, %v5040
    %v5042 = vpop.f32.mrf.mxu0
    %5043 = vdwg.mxu0
    %5044 = vmatpush.bf16.msra.mxu0 %v4409
    %5045 = vmatpush.bf16.msra.mxu0 %v4408
    %5046 = vmatpush.bf16.msra.mxu0 %v4407
    %5047 = vmatpush.bf16.msra.mxu0 %v4406
    %5048 = vmatpush.bf16.msra.mxu0 %v4405
    %5049 = vmatpush.bf16.msra.mxu0 %v4404
    %5050 = vmatpush.bf16.msra.mxu0 %v4403
    %5051 = vmatpush.bf16.msra.mxu0 %v4402
    %5052 = vmatmul.bf16.gmra.mxu0 %v3132
    %v5053 = vpop.f32.mrf.mxu0
    %v5054 = vadd.f32 %v5041, %v5053
    %v5055 = vpop.f32.mrf.mxu0
    %5056 = vdwg.mxu0
    %5057 = vmatpush.bf16.msra.mxu0 %v4417
    %5058 = vmatpush.bf16.msra.mxu0 %v4416
    %5059 = vmatpush.bf16.msra.mxu0 %v4415
    %5060 = vmatpush.bf16.msra.mxu0 %v4414
    %5061 = vmatpush.bf16.msra.mxu0 %v4413
    %5062 = vmatpush.bf16.msra.mxu0 %v4412
    %5063 = vmatpush.bf16.msra.mxu0 %v4411
    %5064 = vmatpush.bf16.msra.mxu0 %v4410
    %5065 = vmatmul.bf16.gmra.mxu0 %v3133
    %v5066 = vpop.f32.mrf.mxu0
    %v5067 = vadd.f32 %v5054, %v5066
    %v5068 = vpop.f32.mrf.mxu0
    %5069 = vdwg.mxu0
    %5070 = vmatpush.bf16.msra.mxu0 %v4425
    %5071 = vmatpush.bf16.msra.mxu0 %v4424
    %5072 = vmatpush.bf16.msra.mxu0 %v4423
    %5073 = vmatpush.bf16.msra.mxu0 %v4422
    %5074 = vmatpush.bf16.msra.mxu0 %v4421
    %5075 = vmatpush.bf16.msra.mxu0 %v4420
    %5076 = vmatpush.bf16.msra.mxu0 %v4419
    %5077 = vmatpush.bf16.msra.mxu0 %v4418
    %5078 = vmatmul.bf16.gmra.mxu0 %v3134
    %v5079 = vpop.f32.mrf.mxu0
    %v5080 = vadd.f32 %v5067, %v5079
    %v5081 = vpop.f32.mrf.mxu0
    %5082 = vdwg.mxu0
    %5083 = vmatpush.bf16.msra.mxu0 %v4433
    %5084 = vmatpush.bf16.msra.mxu0 %v4432
    %5085 = vmatpush.bf16.msra.mxu0 %v4431
    %5086 = vmatpush.bf16.msra.mxu0 %v4430
    %5087 = vmatpush.bf16.msra.mxu0 %v4429
    %5088 = vmatpush.bf16.msra.mxu0 %v4428
    %5089 = vmatpush.bf16.msra.mxu0 %v4427
    %5090 = vmatpush.bf16.msra.mxu0 %v4426
    %5091 = vmatmul.bf16.gmra.mxu0 %v3135
    %v5092 = vpop.f32.mrf.mxu0
    %v5093 = vadd.f32 %v5080, %v5092
    %v5094 = vpop.f32.mrf.mxu0
    %5095 = vdwg.mxu0
    %5096 = vmatpush.bf16.msra.mxu0 %v4441
    %5097 = vmatpush.bf16.msra.mxu0 %v4440
    %5098 = vmatpush.bf16.msra.mxu0 %v4439
    %5099 = vmatpush.bf16.msra.mxu0 %v4438
    %5100 = vmatpush.bf16.msra.mxu0 %v4437
    %5101 = vmatpush.bf16.msra.mxu0 %v4436
    %5102 = vmatpush.bf16.msra.mxu0 %v4435
    %5103 = vmatpush.bf16.msra.mxu0 %v4434
    %5104 = vmatmul.bf16.gmra.mxu0 %v3136
    %v5105 = vpop.f32.mrf.mxu0
    %v5106 = vadd.f32 %v5093, %v5105
    %v5107 = vpop.f32.mrf.mxu0
    %5108 = vdwg.mxu0
    %5109 = vmatpush.bf16.msra.mxu0 %v4449
    %5110 = vmatpush.bf16.msra.mxu0 %v4448
    %5111 = vmatpush.bf16.msra.mxu0 %v4447
    %5112 = vmatpush.bf16.msra.mxu0 %v4446
    %5113 = vmatpush.bf16.msra.mxu0 %v4445
    %5114 = vmatpush.bf16.msra.mxu0 %v4444
    %5115 = vmatpush.bf16.msra.mxu0 %v4443
    %5116 = vmatpush.bf16.msra.mxu0 %v4442
    %5117 = vmatmul.bf16.gmra.mxu0 %v3137
    %v5118 = vpop.f32.mrf.mxu0
    %v5119 = vadd.f32 %v5106, %v5118
    %v5120 = vpop.f32.mrf.mxu0
    %5121 = vdwg.mxu0
    %v5122 = vmax.f32 %v5119, 0.0
    %v5123 = vld [vmem:[%s3] sm:$0xff]
    %v5124 = vld [vmem:[%s3 + $0x8] sm:$0xff]
    %v5125 = vld [vmem:[%s3 + $0x10] sm:$0xff]
    %v5126 = vld [vmem:[%s3 + $0x18] sm:$0xff]
    %v5127 = vld [vmem:[%s3 + $0x20] sm:$0xff]
    %v5128 = vld [vmem:[%s3 + $0x28] sm:$0xff]
    %v5129 = vld [vmem:[%s3 + $0x30] sm:$0xff]
    %v5130 = vld [vmem:[%s3 + $0x38] sm:$0xff]
    %v5131 = vld [vmem:[%s3 + $0x40] sm:$0xff]
    %v5132 = vld [vmem:[%s3 + $0x48] sm:$0xff]
    %v5133 = vld [vmem:[%s3 + $0x50] sm:$0xff]
    %v5134 = vld [vmem:[%s3 + $0x58] sm:$0xff]
    %v5135 = vld [vmem:[%s3 + $0x60] sm:$0xff]
    %v5136 = vld [vmem:[%s3 + $0x68] sm:$0xff]
    %v5137 = vld [vmem:[%s3 + $0x70] sm:$0xff]
    %v5138 = vld [vmem:[%s3 + $0x78] sm:$0xff]
    %v5139 = vld [vmem:[%s4] sm:$0xff]
    %v5140 = vld [vmem:[%s4 + $0x8] sm:$0xff]
    %v5141 = vld [vmem:[%s4 + $0x10] sm:$0xff]
    %v5142 = vld [vmem:[%s4 + $0x18] sm:$0xff]
    %v5143 = vld [vmem:[%s4 + $0x20] sm:$0xff]
    %v5144 = vld [vmem:[%s4 + $0x28] sm:$0xff]
    %v5145 = vld [vmem:[%s4 + $0x30] sm:$0xff]
    %v5146 = vld [vmem:[%s4 + $0x38] sm:$0xff]
    %v5147 = vld [vmem:[%s4 + $0x40] sm:$0xff]
    %v5148 = vld [vmem:[%s4 + $0x48] sm:$0xff]
    %v5149 = vld [vmem:[%s4 + $0x50] sm:$0xff]
    %v5150 = vld [vmem:[%s4 + $0x58] sm:$0xff]
    %v5151 = vld [vmem:[%s4 + $0x60] sm:$0xff]
    %v5152 = vld [vmem:[%s4 + $0x68] sm:$0xff]
    %v5153 = vld [vmem:[%s4 + $0x70] sm:$0xff]
    %v5154 = vld [vmem:[%s4 + $0x78] sm:$0xff]
    %5155 = vmatpush.msra.mxu0 %v5154
    %5156 = vmatpush.msra.mxu0 %v5153
    %5157 = vmatpush.msra.mxu0 %v5152
    %5158 = vmatpush.msra.mxu0 %v5151
    %5159 = vmatpush.msra.mxu0 %v5150
    %5160 = vmatpush.msra.mxu0 %v5149
    %5161 = vmatpush.msra.mxu0 %v5148
    %5162 = vmatpush.msra.mxu0 %v5147
    %5163 = vmatpush.msra.mxu0 %v5146
    %5164 = vmatpush.msra.mxu0 %v5145
    %5165 = vmatpush.msra.mxu0 %v5144
    %5166 = vmatpush.msra.mxu0 %v5143
    %5167 = vmatpush.msra.mxu0 %v5142
    %5168 = vmatpush.msra.mxu0 %v5141
    %5169 = vmatpush.msra.mxu0 %v5140
    %5170 = vmatpush.msra.mxu0 %v5139
    %5171 = vmatmul.f32.gmra.mxu0 %v5122
    %v5172 = vpop.f32.mrf.mxu0
    %v5173 = vadd.f32 0.0, %v5172
    %5174 = vdwg.mxu0
    %5175 = vmatpush.msra.mxu0 %v5138
    %5176 = vmatpush.msra.mxu0 %v5137
    %5177 = vmatpush.msra.mxu0 %v5136
    %5178 = vmatpush.msra.mxu0 %v5135
    %5179 = vmatpush.msra.mxu0 %v5134
    %5180 = vmatpush.msra.mxu0 %v5133
    %5181 = vmatpush.msra.mxu0 %v5132
    %5182 = vmatpush.msra.mxu0 %v5131
    %5183 = vmatpush.msra.mxu0 %v5130
    %5184 = vmatpush.msra.mxu0 %v5129
    %5185 = vmatpush.msra.mxu0 %v5128
    %5186 = vmatpush.msra.mxu0 %v5127
    %5187 = vmatpush.msra.mxu0 %v5126
    %5188 = vmatpush.msra.mxu0 %v5125
    %5189 = vmatpush.msra.mxu0 %v5124
    %5190 = vmatpush.msra.mxu0 %v5123
    %5191 = vmatmul.f32.gmra.mxu0 %v2574
    %v5192 = vpop.f32.mrf.mxu0
    %v5193 = vadd.f32 %v5173, %v5192
    %5194 = vdwg.mxu0
    %v5195 = vld [vmem:[%s5] sm:$0x1]
    %v5197 = vperm.slane %v5195, 0
    %v5199 = vadd.f32 %v5193, %v5197
    %v5200 = vmax.f32 %v5199, 0.0
    %v5201 = vld [vmem:[%s6] sm:$0xff]
    %v5202 = vld [vmem:[%s6 + $0x8] sm:$0xff]
    %v5203 = vld [vmem:[%s6 + $0x10] sm:$0xff]
    %v5204 = vld [vmem:[%s6 + $0x18] sm:$0xff]
    %v5205 = vld [vmem:[%s6 + $0x20] sm:$0xff]
    %v5206 = vld [vmem:[%s6 + $0x28] sm:$0xff]
    %v5207 = vld [vmem:[%s6 + $0x30] sm:$0xff]
    %v5208 = vld [vmem:[%s6 + $0x38] sm:$0xff]
    %v5209 = vld [vmem:[%s6 + $0x40] sm:$0xff]
    %v5210 = vld [vmem:[%s6 + $0x48] sm:$0xff]
    %v5211 = vld [vmem:[%s6 + $0x50] sm:$0xff]
    %v5212 = vld [vmem:[%s6 + $0x58] sm:$0xff]
    %v5213 = vld [vmem:[%s6 + $0x60] sm:$0xff]
    %v5214 = vld [vmem:[%s6 + $0x68] sm:$0xff]
    %v5215 = vld [vmem:[%s6 + $0x70] sm:$0xff]
    %v5216 = vld [vmem:[%s6 + $0x78] sm:$0xff]
    %v5217 = vld [vmem:[%s7] sm:$0x1]
    %v5219 = vperm.slane %v5217, 0
    %5221 = vmatpush.msra.mxu0 %v5216
    %5222 = vmatpush.msra.mxu0 %v5215
    %5223 = vmatpush.msra.mxu0 %v5214
    %5224 = vmatpush.msra.mxu0 %v5213
    %5225 = vmatpush.msra.mxu0 %v5212
    %5226 = vmatpush.msra.mxu0 %v5211
    %5227 = vmatpush.msra.mxu0 %v5210
    %5228 = vmatpush.msra.mxu0 %v5209
    %5229 = vmatpush.msra.mxu0 %v5208
    %5230 = vmatpush.msra.mxu0 %v5207
    %5231 = vmatpush.msra.mxu0 %v5206
    %5232 = vmatpush.msra.mxu0 %v5205
    %5233 = vmatpush.msra.mxu0 %v5204
    %5234 = vmatpush.msra.mxu0 %v5203
    %5235 = vmatpush.msra.mxu0 %v5202
    %5236 = vmatpush.msra.mxu0 %v5201
    %5237 = vmatmul.f32.gmra.mxu0 %v5200
    %v5238 = vpop.f32.mrf.mxu0
    %v5239 = vadd.f32 %v5219, %v5238
    %5240 = vdwg.mxu0
    %vm5241 = vcmask 74752
    %5242 = vst.msk [vmem:[#allocation2] sm:$0x3] %vm5241, %v5239
    // Predicated region
    $region34: #{multimodal_forward.3} parent=1 // pred_check
      _
    $region35: #{multimodal_forward.3} parent=1 // pred_check_branch
      %5244 = sbr.rel (0) target = $region37
    $region36: #{multimodal_forward.3} parent=1 // pred_region
      %5246 = vsyncadd [#allocation3], 0
      %s5248 = sshll.u32 [#allocation2], 4
      %s5249 = int_to_ptr.vmem [resolvable:$true] %s5248
      %s5250 = sshll.u32 %s8, 4
      %s5251 = int_to_ptr.hbm [resolvable:$true] %s5250
      %5253 = dma.vmem_to_hbm [thread:$0]  %s5249, 32, %s5251, [#allocation3]
    $region37: #{multimodal_forward.3} parent=1 // pred_fallthru
      _
    // Predicated region
    $region38: #{multimodal_forward.3} parent=1 // pred_check
      _
    $region39: #{multimodal_forward.3} parent=1 // pred_check_branch
      %5255 = sbr.rel (0) target = $region41
    $region40: #{multimodal_forward.3} parent=1 // pred_region
      %5257 = dma.done [#allocation3], 32
    $region41: #{multimodal_forward.3} parent=1 // pred_fallthru
      _
    %5258 = vsyncpa [#allocation3], 1

</llo_original>
